<compile_context>
chip_gen: v7x
topology: tpu7x:2x2x1
jax: 0.10.0
libtpu: 0.0.40
codegen_flags: <defaults>
</compile_context>

<pallas_src>
import functools

import numpy as np
import jax
import jax.numpy as jnp
from jax.experimental import pallas as pl
from jax.experimental.pallas import tpu as pltpu


def _round_up(x, m):
    return ((x + m - 1) // m) * m


# ----------------------------------------------------------------------------
# Kernel 1: fused matmul + bias (+ReLU).  Used for 1x1 convs and as fallback.
# Activation is cast to bf16 *in-kernel* (no extra HBM pass), f32 accumulation.
# ----------------------------------------------------------------------------
def _mm_bias_act_kernel(a_ref, w_ref, b_ref, o_ref, *, relu):
    a = a_ref[...].astype(jnp.bfloat16)
    acc = jnp.dot(a, w_ref[...], preferred_element_type=jnp.float32)
    y = acc + b_ref[...]
    if relu:
        y = jnp.maximum(y, 0.0)
    o_ref[...] = y.astype(o_ref.dtype)


def _mm_bias_act_acc_kernel(a_ref, w_ref, b_ref, o_ref, acc_ref, *, relu):
    # Rare path: K genuinely has to be tiled (K > 2048).
    kstep = pl.program_id(2)
    p = jnp.dot(a_ref[...].astype(jnp.bfloat16), w_ref[...],
                preferred_element_type=jnp.float32)

    @pl.when(kstep == 0)
    def _():
        acc_ref[...] = p          # write-through, no zero-init + add

    @pl.when(kstep > 0)
    def _():
        acc_ref[...] += p

    @pl.when(kstep == pl.num_programs(2) - 1)
    def _():
        y = acc_ref[...] + b_ref[...]
        if relu:
            y = jnp.maximum(y, 0.0)
        o_ref[...] = y.astype(o_ref.dtype)


def matmul_bias_act(a, w, bias, *, relu=True, out_dtype=jnp.float32):
    """act(a @ w + bias).  a: (M, K) f32/bf16 (cast in-kernel), w: (K, N) with
    BN scale folded in, bias: (N,).  Output (M, N) in out_dtype, unpadded."""
    M, K = a.shape
    Kw, N = w.shape
    assert K == Kw, (K, Kw)

    w_bf = w.astype(jnp.bfloat16)                 # weights are small; host cast
    bias_row = bias.reshape(1, N).astype(jnp.float32)
    a_item = jnp.dtype(a.dtype).itemsize

    # --- M tiling: big blocks, ragged last block masked on store ------------
    if M < 128:
        TM = M                                   # full-dim block always legal
    else:
        TM = 512 if M >= 512 else (256 if M >= 256 else 128)
        while TM > 128 and TM * K * a_item > (2 << 20):   # keep a-block <=2MiB
            TM //= 2

    # --- N tiling: full-N (weight resident across M tiles) when small -------
    if N <= 512 and K * N * 2 <= (2 << 20):
        TN = N
    elif N % 256 == 0:
        TN = 256
    else:
        TN = 128                                  # ragged last block is masked

    # --- K: single full-dim contraction block whenever it fits --------------
    K_SINGLE_MAX = 2048
    if K <= K_SINGLE_MAX:
        TK, Kt = K, 1
        a_in, w_in = a, w_bf
    else:
        TK = 2048
        Kp = _round_up(K, TK)
        a_in = jnp.pad(a, ((0, 0), (0, Kp - K))) if Kp != K else a
        w_in = jnp.pad(w_bf, ((0, Kp - K), (0, 0))) if Kp != K else w_bf
        Kt = Kp // TK

    Mt = pl.cdiv(M, TM)
    Nt = pl.cdiv(N, TN)

    cost = pl.CostEstimate(
        flops=2 * M * K * N, transcendentals=0,
        bytes_accessed=int(M * K * a_item + K * N * 2
                           + M * N * jnp.dtype(out_dtype).itemsize + N * 4))

    if Kt == 1:
        out = pl.pallas_call(
            functools.partial(_mm_bias_act_kernel, relu=relu),
            out_shape=jax.ShapeDtypeStruct((M, N), out_dtype),
            grid=(Mt, Nt),
            in_specs=[
                pl.BlockSpec((TM, TK), lambda i, j: (i, 0)),
                pl.BlockSpec((TK, TN), lambda i, j: (0, j)),
                pl.BlockSpec((1, TN), lambda i, j: (0, j)),
            ],
            out_specs=pl.BlockSpec((TM, TN), lambda i, j: (i, j)),
            compiler_params=pltpu.CompilerParams(
                dimension_semantics=("parallel", "parallel")),
            cost_estimate=cost,
        )(a_in, w_in, bias_row)
    else:
        out = pl.pallas_call(
            functools.partial(_mm_bias_act_acc_kernel, relu=relu),
            out_shape=jax.ShapeDtypeStruct((M, N), out_dtype),
            grid=(Mt, Nt, Kt),
            in_specs=[
                pl.BlockSpec((TM, TK), lambda i, j, k: (i, k)),
                pl.BlockSpec((TK, TN), lambda i, j, k: (k, j)),
                pl.BlockSpec((1, TN), lambda i, j, k: (0, j)),
            ],
            out_specs=pl.BlockSpec((TM, TN), lambda i, j, k: (i, j)),
            scratch_shapes=[pltpu.VMEM((TM, TN), jnp.float32)],
            compiler_params=pltpu.CompilerParams(
                dimension_semantics=("parallel", "parallel", "arbitrary")),
            cost_estimate=cost,
        )(a_in, w_in, bias_row)
    return out


# ----------------------------------------------------------------------------
# Kernel 2: implicit-GEMM conv for k>1, stride=1 — no im2col in HBM.
# One padded NHWC image per grid step lives in VMEM; k*k shifted windows are
# sliced in VMEM and accumulated through k*k small MXU dots.
# ----------------------------------------------------------------------------
def _conv_implicit_kernel(x_ref, w_ref, b_ref, o_ref, *, k, dilation, Ho, Wo,
                          relu):
    # x_ref: (1, Hp, Wp, Cin)   w_ref: (k*k, Cin, TN)   b_ref: (1, TN)
    # o_ref: (1, Ho*Wo, TN)
    cin = x_ref.shape[3]
    acc = None
    for dy in range(k):
        for dx in range(k):
            y0 = dy * dilation
            x0 = dx * dilation
            a = x_ref[0, y0:y0 + Ho, x0:x0 + Wo, :]          # (Ho, Wo, Cin)
            a = a.reshape(Ho * Wo, cin).astype(jnp.bfloat16)  # (M, Cin)
            p = jnp.dot(a, w_ref[dy * k + dx],
                        preferred_element_type=jnp.float32)
            acc = p if acc is None else acc + p
    y = acc + b_ref[...]
    if relu:
        y = jnp.maximum(y, 0.0)
    o_ref[0] = y.astype(o_ref.dtype)


def _conv_implicit(xp, wm, bias, *, k, dilation, Ho, Wo, tn, relu, out_dtype):
    """xp: (Nb, Hp, Wp, Cin) spatially padded NHWC; wm: (k*k, Cin, Cout) bf16
    (BN scale folded); bias: (Cout,) f32.  Returns (Nb, Ho, Wo, Cout)."""
    Nb, Hp, Wp, Cin = xp.shape
    Cout = wm.shape[-1]
    Mo = Ho * Wo
    bias_row = bias.reshape(1, Cout).astype(jnp.float32)
    Nt = pl.cdiv(Cout, tn)

    cost = pl.CostEstimate(
        flops=2 * Nb * Mo * (k * k * Cin) * Cout, transcendentals=0,
        bytes_accessed=int(xp.size * jnp.dtype(xp.dtype).itemsize
                           + wm.size * 2
                           + Nb * Mo * Cout * jnp.dtype(out_dtype).itemsize))

    out = pl.pallas_call(
        functools.partial(_conv_implicit_kernel, k=k, dilation=dilation,
                          Ho=Ho, Wo=Wo, relu=relu),
        out_shape=jax.ShapeDtypeStruct((Nb, Mo, Cout), out_dtype),
        grid=(Nb, Nt),
        in_specs=[
            pl.BlockSpec((1, Hp, Wp, Cin), lambda b, j: (b, 0, 0, 0)),
            pl.BlockSpec((k * k, Cin, tn), lambda b, j: (0, 0, j)),
            pl.BlockSpec((1, tn), lambda b, j: (0, j)),
        ],
        out_specs=pl.BlockSpec((1, Mo, tn), lambda b, j: (b, 0, j)),
        compiler_params=pltpu.CompilerParams(
            dimension_semantics=("parallel", "parallel")),
        cost_estimate=cost,
    )(xp, wm, bias_row)
    return out.reshape(Nb, Ho, Wo, Cout)


# ----------------------------------------------------------------------------
# ConvBnrelu2d_1 forward: relu(bn(conv(x)))
# ----------------------------------------------------------------------------
def conv_bn_relu_nhwc(xh, w, gamma, beta, running_mean, running_var, *,
                      stride=1, padding=0, dilation=1, groups=1, eps=1e-5,
                      relu=True, out_dtype=jnp.float32):
    """NHWC activation in/out (use this to chain layers without transposes).
    xh: (Nb, H, W, Cin); w: (Cout, Cin, k, k); BN params per output channel."""
    if groups != 1:
        # TODO(synk): grouped convolution (groups > 1) not implemented.
        raise NotImplementedError("groups > 1 not supported")

    Nb, H, W, Cin = xh.shape
    Cout, Cin_w, kh, kw = w.shape
    assert Cin_w == Cin and kh == kw
    k = kh

    # Fold eval-mode BatchNorm into the weights + a per-channel bias.
    scale = gamma * jax.lax.rsqrt(running_var + eps)
    bias = beta - running_mean * scale

    eff = dilation * (k - 1) + 1
    Ho = (H + 2 * padding - eff) // stride + 1
    Wo = (W + 2 * padding - eff) // stride + 1

    xp = xh
    if padding:
        xp = jnp.pad(xh, ((0, 0), (padding, padding), (padding, padding),
                          (0, 0)))
    Hp, Wp = H + 2 * padding, W + 2 * padding

    if k == 1:
        # 1x1 conv: (Nb*Ho*Wo, Cin) is a free view of the NHWC activation.
        xs = xp
        if stride != 1:
            xs = xs[:, 0:stride * Ho:stride, 0:stride * Wo:stride, :]
        a = xs.reshape(Nb * Ho * Wo, Cin)
        wm = w.reshape(Cout, Cin).T * scale[None, :]
        y = matmul_bias_act(a, wm, bias, relu=relu, out_dtype=out_dtype)
        return y.reshape(Nb, Ho, Wo, Cout)

    # --- k > 1: pick implicit-GEMM if the per-image block fits VMEM and the
    #            in-kernel (Ho,Wo,Cin)->(Ho*Wo,Cin) reshape is layout-clean.
    x_item = jnp.dtype(xp.dtype).itemsize
    pack = 16 if x_item == 2 else 8
    w_bytes_full = k * k * Cin * Cout * 2
    if Cout <= 512 and w_bytes_full <= (2 << 20):
        tn = Cout
    elif Cout % 256 == 0:
        tn = 256
    else:
        tn = 128
    x_blk = Hp * Wp * Cin * x_item
    w_blk = k * k * Cin * tn * 2
    o_blk = Ho * Wo * tn * jnp.dtype(out_dtype).itemsize
    acc_blk = Ho * Wo * tn * 4
    vmem_need = 2 * x_blk + 2 * w_blk + 2 * o_blk + acc_blk
    use_implicit = (stride == 1 and Wo % pack == 0 and vmem_need <= (12 << 20))

    if use_implicit:
        wm = (w.transpose(2, 3, 1, 0) * scale[None, None, None, :])
        wm = wm.reshape(k * k, Cin, Cout).astype(jnp.bfloat16)
        return _conv_implicit(xp, wm, bias, k=k, dilation=dilation,
                              Ho=Ho, Wo=Wo, tn=tn, relu=relu,
                              out_dtype=out_dtype)

    # Fallback (stride>1 / unaligned / oversized): im2col + fused matmul.
    cols = [xp[:, dy * dilation:dy * dilation + stride * Ho:stride,
               dx * dilation:dx * dilation + stride * Wo:stride, :]
            for dy in range(k) for dx in range(k)]
    a = jnp.concatenate(cols, axis=-1).reshape(Nb * Ho * Wo, k * k * Cin)
    wm = w.transpose(2, 3, 1, 0).reshape(k * k * Cin, Cout) * scale[None, :]
    y = matmul_bias_act(a, wm, bias, relu=relu, out_dtype=out_dtype)
    return y.reshape(Nb, Ho, Wo, Cout)


def conv_bn_relu(x, w, gamma, beta, running_mean, running_var, *,
                 stride=1, padding=0, dilation=1, groups=1, eps=1e-5,
                 relu=True):
    """PyTorch-convention NCHW wrapper (transposes only at this boundary)."""
    xh = jnp.transpose(x, (0, 2, 3, 1))
    yh = conv_bn_relu_nhwc(xh, w, gamma, beta, running_mean, running_var,
                           stride=stride, padding=padding, dilation=dilation,
                           groups=groups, eps=eps, relu=relu,
                           out_dtype=jnp.float32)
    return jnp.transpose(yh, (0, 3, 1, 2))


# ----------------------------------------------------------------------------
# Parameter synthesis matching the PyTorch module's initialization
# ----------------------------------------------------------------------------
def make_convbnrelu_params(key, in_channels, out_channels, kernel_size=1):
    # nn.init.xavier_uniform_ on the conv weight.
    fan_in = in_channels * kernel_size * kernel_size
    fan_out = out_channels * kernel_size * kernel_size
    bound = float(np.sqrt(6.0 / (fan_in + fan_out)))
    w = jax.random.uniform(
        key, (out_channels, in_channels, kernel_size, kernel_size),
        jnp.float32, -bound, bound)
    # BatchNorm2d: weight=1, bias=0, running_mean=0, running_var=1.
    gamma = jnp.ones((out_channels,), jnp.float32)
    beta = jnp.zeros((out_channels,), jnp.float32)
    mean = jnp.zeros((out_channels,), jnp.float32)
    var = jnp.ones((out_channels,), jnp.float32)
    return dict(w=w, gamma=gamma, beta=beta, mean=mean, var=var)


def _ref_conv_bn_relu(x, p, stride, padding, eps=1e-5):
    """Plain-JAX/XLA reference (NCHW) for correctness checking."""
    y = jax.lax.conv_general_dilated(
        x, p['w'], (stride, stride),
        ((padding, padding), (padding, padding)),
        dimension_numbers=('NCHW', 'OIHW', 'NCHW'))
    scale = p['gamma'] / jnp.sqrt(p['var'] + eps)
    bias = p['beta'] - p['mean'] * scale
    y = y * scale[None, :, None, None] + bias[None, :, None, None]
    return jnp.maximum(y, 0.0)


if __name__ == "__main__":
    root = jax.random.PRNGKey(0)
    kx, k1, k2 = jax.random.split(root, 3)

    # Small example input, NCHW like PyTorch.
    x = jax.random.normal(kx, (2, 4, 16, 16), jnp.float32)

    # ConvBnrelu2d_1(4, 32)                            -> 1x1 matmul path
    p1 = make_convbnrelu_params(k1, 4, 32, kernel_size=1)
    # ConvBnrelu2d_1(32, 64, kernel_size=3, padding=1) -> implicit-GEMM path
    p2 = make_convbnrelu_params(k2, 32, 64, kernel_size=3)

    @jax.jit
    def fwd(xin):
        # Single NCHW->NHWC conversion; layers chain in bf16 NHWC; convert back
        # to NCHW f32 only at the network boundary.
        xh = jnp.transpose(xin, (0, 2, 3, 1))
        y1h = conv_bn_relu_nhwc(xh, p1['w'], p1['gamma'], p1['beta'],
                                p1['mean'], p1['var'], stride=1, padding=0,
                                out_dtype=jnp.bfloat16)
        y2h = conv_bn_relu_nhwc(y1h, p2['w'], p2['gamma'], p2['beta'],
                                p2['mean'], p2['var'], stride=1, padding=1,
                                out_dtype=jnp.float32)
        y1 = jnp.transpose(y1h.astype(jnp.float32), (0, 3, 1, 2))
        y2 = jnp.transpose(y2h, (0, 3, 1, 2))
        return y1, y2

    y1, y2 = fwd(x)
    jax.block_until_ready((y1, y2))

    assert y1.shape == (2, 32, 16, 16), y1.shape
    assert y2.shape == (2, 64, 16, 16), y2.shape
    assert bool(jnp.all(jnp.isfinite(y1))) and bool(jnp.all(jnp.isfinite(y2)))
    assert bool(jnp.all(y1 >= 0.0)) and bool(jnp.all(y2 >= 0.0))

    # Correctness vs. XLA reference (bf16 MXU operands / bf16 inter-layer
    # activation, f32 accumulation -> loose tolerance).
    r1 = _ref_conv_bn_relu(x, p1, stride=1, padding=0)
    r2 = _ref_conv_bn_relu(r1, p2, stride=1, padding=1)
    np.testing.assert_allclose(np.asarray(y1), np.asarray(r1),
                               rtol=5e-2, atol=5e-2)
    np.testing.assert_allclose(np.asarray(y2), np.asarray(r2),
                               rtol=5e-2, atol=5e-2)

    print("KERNEL_OK")
</pallas_src>

<mosaic_0001>
module attributes {stable_mosaic.version = 11 : i64} {
  func.func @_mm_bias_act_kernel(%arg0: i32, %arg1: i32, %arg2: memref<512x4xf32, #tpu.memory_space<vmem>>, %arg3: memref<4x32xbf16, #tpu.memory_space<vmem>>, %arg4: memref<1x32xf32, #tpu.memory_space<vmem>>, %arg5: memref<512x32xbf16, #tpu.memory_space<vmem>>) attributes {dimension_semantics = [#tpu.dimension_semantics<parallel>, #tpu.dimension_semantics<parallel>], iteration_bounds = array<i64: 1, 1>, scalar_prefetch = 0 : i64, scratch_operands = 0 : i64, tpu.core_type = #tpu.core_type<tc>, window_params = [{transform_indices = @transform_0, window_bounds = array<i64: 512, 4>}, {transform_indices = @transform_1, window_bounds = array<i64: 4, 32>}, {transform_indices = @transform_2, window_bounds = array<i64: 1, 32>}, {transform_indices = @transform_3, window_bounds = array<i64: 512, 32>}]} {
    %c0 = arith.constant 0 : index
    %c0_0 = arith.constant 0 : index
    %0 = vector.load %arg2[%c0, %c0_0] : memref<512x4xf32, #tpu.memory_space<vmem>>, vector<512x4xf32>
    %1 = arith.truncf %0 : vector<512x4xf32> to vector<512x4xbf16>
    %c0_1 = arith.constant 0 : index
    %c0_2 = arith.constant 0 : index
    %2 = vector.load %arg3[%c0_1, %c0_2] : memref<4x32xbf16, #tpu.memory_space<vmem>>, vector<4x32xbf16>
    %cst = arith.constant dense<0.000000e+00> : vector<512x32xf32>
    %3 = tpu.matmul %1, %2, %cst {dimension_numbers = #tpu.dot_dimension_numbers<[1], [0], [0], [1], [0, 0, 1, 1], [], []>} : vector<512x4xbf16>, vector<4x32xbf16>, vector<512x32xf32> -> vector<512x32xf32>
    %c0_3 = arith.constant 0 : index
    %c0_4 = arith.constant 0 : index
    %4 = vector.load %arg4[%c0_3, %c0_4] : memref<1x32xf32, #tpu.memory_space<vmem>>, vector<1x32xf32>
    %5 = vector.broadcast %4 : vector<1x32xf32> to vector<512x32xf32>
    %6 = arith.addf %3, %5 : vector<512x32xf32>
    %cst_5 = arith.constant 0.000000e+00 : f32
    %7 = vector.broadcast %cst_5 : f32 to vector<512x32xf32>
    %8 = arith.maximumf %6, %7 : vector<512x32xf32>
    %9 = arith.truncf %8 : vector<512x32xf32> to vector<512x32xbf16>
    %c0_6 = arith.constant 0 : index
    %c0_7 = arith.constant 0 : index
    %10 = vector.load %arg5[%c0_6, %c0_7] : memref<512x32xbf16, #tpu.memory_space<vmem>>, vector<512x32xbf16>
    tpu.vector_store %arg5[%c0_6, %c0_7], %9 {strides = array<i32>} : memref<512x32xbf16, #tpu.memory_space<vmem>>, vector<512x32xbf16>,
    return
  }
  func.func @transform_0(%arg0: i32, %arg1: i32) -> (i32, i32) {
    %c0_i32 = arith.constant 0 : i32
    %c0_i32_0 = arith.constant 0 : i32
    return %arg0, %c0_i32 : i32, i32
  }
  func.func @transform_1(%arg0: i32, %arg1: i32) -> (i32, i32) {
    %c0_i32 = arith.constant 0 : i32
    %c0_i32_0 = arith.constant 0 : i32
    return %c0_i32, %arg1 : i32, i32
  }
  func.func @transform_2(%arg0: i32, %arg1: i32) -> (i32, i32) {
    %c0_i32 = arith.constant 0 : i32
    %c0_i32_0 = arith.constant 0 : i32
    return %c0_i32, %arg1 : i32, i32
  }
  func.func @transform_3(%arg0: i32, %arg1: i32) -> (i32, i32) {
    %c0_i32 = arith.constant 0 : i32
    return %arg0, %arg1 : i32, i32
  }
}

module attributes {stable_mosaic.version = 11 : i64} {
  func.func @_conv_implicit_kernel(%arg0: i32, %arg1: i32, %arg2: memref<1x18x18x32xbf16, #tpu.memory_space<vmem>>, %arg3: memref<9x32x64xbf16, #tpu.memory_space<vmem>>, %arg4: memref<1x64xf32, #tpu.memory_space<vmem>>, %arg5: memref<1x256x64xf32, #tpu.memory_space<vmem>>) attributes {dimension_semantics = [#tpu.dimension_semantics<parallel>, #tpu.dimension_semantics<parallel>], iteration_bounds = array<i64: 2, 1>, scalar_prefetch = 0 : i64, scratch_operands = 0 : i64, tpu.core_type = #tpu.core_type<tc>, window_params = [{transform_indices = @transform_0, window_bounds = array<i64: 1, 18, 18, 32>}, {transform_indices = @transform_1, window_bounds = array<i64: 9, 32, 64>}, {transform_indices = @transform_2, window_bounds = array<i64: 1, 64>}, {transform_indices = @transform_3, window_bounds = array<i64: 1, 256, 64>}]} {
    %c0 = arith.constant 0 : index
    %c0_0 = arith.constant 0 : index
    %c0_1 = arith.constant 0 : index
    %c0_2 = arith.constant 0 : index
    %0 = vector.load %arg2[%c0, %c0_0, %c0_1, %c0_2] : memref<1x18x18x32xbf16, #tpu.memory_space<vmem>>, vector<1x16x16x32xbf16>
    %1 = vector.shape_cast %0 : vector<1x16x16x32xbf16> to vector<16x16x32xbf16>
    %2 = vector.shape_cast %1 : vector<16x16x32xbf16> to vector<256x32xbf16>
    %c0_3 = arith.constant 0 : index
    %c0_4 = arith.constant 0 : index
    %c0_5 = arith.constant 0 : index
    %3 = vector.load %arg3[%c0_3, %c0_4, %c0_5] : memref<9x32x64xbf16, #tpu.memory_space<vmem>>, vector<1x32x64xbf16>
    %4 = vector.shape_cast %3 : vector<1x32x64xbf16> to vector<32x64xbf16>
    %cst = arith.constant dense<0.000000e+00> : vector<256x64xf32>
    %5 = tpu.matmul %2, %4, %cst {dimension_numbers = #tpu.dot_dimension_numbers<[1], [0], [0], [1], [0, 0, 1, 1], [], []>} : vector<256x32xbf16>, vector<32x64xbf16>, vector<256x64xf32> -> vector<256x64xf32>
    %c0_6 = arith.constant 0 : index
    %c0_7 = arith.constant 0 : index
    %c1 = arith.constant 1 : index
    %c0_8 = arith.constant 0 : index
    %6 = vector.load %arg2[%c0_6, %c0_7, %c1, %c0_8] : memref<1x18x18x32xbf16, #tpu.memory_space<vmem>>, vector<1x16x16x32xbf16>
    %7 = vector.shape_cast %6 : vector<1x16x16x32xbf16> to vector<16x16x32xbf16>
    %8 = vector.shape_cast %7 : vector<16x16x32xbf16> to vector<256x32xbf16>
    %c1_9 = arith.constant 1 : index
    %c0_10 = arith.constant 0 : index
    %c0_11 = arith.constant 0 : index
    %9 = vector.load %arg3[%c1_9, %c0_10, %c0_11] : memref<9x32x64xbf16, #tpu.memory_space<vmem>>, vector<1x32x64xbf16>
    %10 = vector.shape_cast %9 : vector<1x32x64xbf16> to vector<32x64xbf16>
    %cst_12 = arith.constant dense<0.000000e+00> : vector<256x64xf32>
    %11 = tpu.matmul %8, %10, %cst_12 {dimension_numbers = #tpu.dot_dimension_numbers<[1], [0], [0], [1], [0, 0, 1, 1], [], []>} : vector<256x32xbf16>, vector<32x64xbf16>, vector<256x64xf32> -> vector<256x64xf32>
    %12 = arith.addf %5, %11 : vector<256x64xf32>
    %c0_13 = arith.constant 0 : index
    %c0_14 = arith.constant 0 : index
    %c2 = arith.constant 2 : index
    %c0_15 = arith.constant 0 : index
    %13 = vector.load %arg2[%c0_13, %c0_14, %c2, %c0_15] : memref<1x18x18x32xbf16, #tpu.memory_space<vmem>>, vector<1x16x16x32xbf16>
    %14 = vector.shape_cast %13 : vector<1x16x16x32xbf16> to vector<16x16x32xbf16>
    %15 = vector.shape_cast %14 : vector<16x16x32xbf16> to vector<256x32xbf16>
    %c2_16 = arith.constant 2 : index
    %c0_17 = arith.constant 0 : index
    %c0_18 = arith.constant 0 : index
    %16 = vector.load %arg3[%c2_16, %c0_17, %c0_18] : memref<9x32x64xbf16, #tpu.memory_space<vmem>>, vector<1x32x64xbf16>
    %17 = vector.shape_cast %16 : vector<1x32x64xbf16> to vector<32x64xbf16>
    %cst_19 = arith.constant dense<0.000000e+00> : vector<256x64xf32>
    %18 = tpu.matmul %15, %17, %cst_19 {dimension_numbers = #tpu.dot_dimension_numbers<[1], [0], [0], [1], [0, 0, 1, 1], [], []>} : vector<256x32xbf16>, vector<32x64xbf16>, vector<256x64xf32> -> vector<256x64xf32>
    %19 = arith.addf %12, %18 : vector<256x64xf32>
    %c0_20 = arith.constant 0 : index
    %c1_21 = arith.constant 1 : index
    %c0_22 = arith.constant 0 : index
    %c0_23 = arith.constant 0 : index
    %20 = vector.load %arg2[%c0_20, %c1_21, %c0_22, %c0_23] : memref<1x18x18x32xbf16, #tpu.memory_space<vmem>>, vector<1x16x16x32xbf16>
    %21 = vector.shape_cast %20 : vector<1x16x16x32xbf16> to vector<16x16x32xbf16>
    %22 = vector.shape_cast %21 : vector<16x16x32xbf16> to vector<256x32xbf16>
    %c3 = arith.constant 3 : index
    %c0_24 = arith.constant 0 : index
    %c0_25 = arith.constant 0 : index
    %23 = vector.load %arg3[%c3, %c0_24, %c0_25] : memref<9x32x64xbf16, #tpu.memory_space<vmem>>, vector<1x32x64xbf16>
    %24 = vector.shape_cast %23 : vector<1x32x64xbf16> to vector<32x64xbf16>
    %cst_26 = arith.constant dense<0.000000e+00> : vector<256x64xf32>
    %25 = tpu.matmul %22, %24, %cst_26 {dimension_numbers = #tpu.dot_dimension_numbers<[1], [0], [0], [1], [0, 0, 1, 1], [], []>} : vector<256x32xbf16>, vector<32x64xbf16>, vector<256x64xf32> -> vector<256x64xf32>
    %26 = arith.addf %19, %25 : vector<256x64xf32>
    %c0_27 = arith.constant 0 : index
    %c1_28 = arith.constant 1 : index
    %c1_29 = arith.constant 1 : index
    %c0_30 = arith.constant 0 : index
    %27 = vector.load %arg2[%c0_27, %c1_28, %c1_29, %c0_30] : memref<1x18x18x32xbf16, #tpu.memory_space<vmem>>, vector<1x16x16x32xbf16>
    %28 = vector.shape_cast %27 : vector<1x16x16x32xbf16> to vector<16x16x32xbf16>
    %29 = vector.shape_cast %28 : vector<16x16x32xbf16> to vector<256x32xbf16>
    %c4 = arith.constant 4 : index
    %c0_31 = arith.constant 0 : index
    %c0_32 = arith.constant 0 : index
    %30 = vector.load %arg3[%c4, %c0_31, %c0_32] : memref<9x32x64xbf16, #tpu.memory_space<vmem>>, vector<1x32x64xbf16>
    %31 = vector.shape_cast %30 : vector<1x32x64xbf16> to vector<32x64xbf16>
    %cst_33 = arith.constant dense<0.000000e+00> : vector<256x64xf32>
    %32 = tpu.matmul %29, %31, %cst_33 {dimension_numbers = #tpu.dot_dimension_numbers<[1], [0], [0], [1], [0, 0, 1, 1], [], []>} : vector<256x32xbf16>, vector<32x64xbf16>, vector<256x64xf32> -> vector<256x64xf32>
    %33 = arith.addf %26, %32 : vector<256x64xf32>
    %c0_34 = arith.constant 0 : index
    %c1_35 = arith.constant 1 : index
    %c2_36 = arith.constant 2 : index
    %c0_37 = arith.constant 0 : index
    %34 = vector.load %arg2[%c0_34, %c1_35, %c2_36, %c0_37] : memref<1x18x18x32xbf16, #tpu.memory_space<vmem>>, vector<1x16x16x32xbf16>
    %35 = vector.shape_cast %34 : vector<1x16x16x32xbf16> to vector<16x16x32xbf16>
    %36 = vector.shape_cast %35 : vector<16x16x32xbf16> to vector<256x32xbf16>
    %c5 = arith.constant 5 : index
    %c0_38 = arith.constant 0 : index
    %c0_39 = arith.constant 0 : index
    %37 = vector.load %arg3[%c5, %c0_38, %c0_39] : memref<9x32x64xbf16, #tpu.memory_space<vmem>>, vector<1x32x64xbf16>
    %38 = vector.shape_cast %37 : vector<1x32x64xbf16> to vector<32x64xbf16>
    %cst_40 = arith.constant dense<0.000000e+00> : vector<256x64xf32>
    %39 = tpu.matmul %36, %38, %cst_40 {dimension_numbers = #tpu.dot_dimension_numbers<[1], [0], [0], [1], [0, 0, 1, 1], [], []>} : vector<256x32xbf16>, vector<32x64xbf16>, vector<256x64xf32> -> vector<256x64xf32>
    %40 = arith.addf %33, %39 : vector<256x64xf32>
    %c0_41 = arith.constant 0 : index
    %c2_42 = arith.constant 2 : index
    %c0_43 = arith.constant 0 : index
    %c0_44 = arith.constant 0 : index
    %41 = vector.load %arg2[%c0_41, %c2_42, %c0_43, %c0_44] : memref<1x18x18x32xbf16, #tpu.memory_space<vmem>>, vector<1x16x16x32xbf16>
    %42 = vector.shape_cast %41 : vector<1x16x16x32xbf16> to vector<16x16x32xbf16>
    %43 = vector.shape_cast %42 : vector<16x16x32xbf16> to vector<256x32xbf16>
    %c6 = arith.constant 6 : index
    %c0_45 = arith.constant 0 : index
    %c0_46 = arith.constant 0 : index
    %44 = vector.load %arg3[%c6, %c0_45, %c0_46] : memref<9x32x64xbf16, #tpu.memory_space<vmem>>, vector<1x32x64xbf16>
    %45 = vector.shape_cast %44 : vector<1x32x64xbf16> to vector<32x64xbf16>
    %cst_47 = arith.constant dense<0.000000e+00> : vector<256x64xf32>
    %46 = tpu.matmul %43, %45, %cst_47 {dimension_numbers = #tpu.dot_dimension_numbers<[1], [0], [0], [1], [0, 0, 1, 1], [], []>} : vector<256x32xbf16>, vector<32x64xbf16>, vector<256x64xf32> -> vector<256x64xf32>
    %47 = arith.addf %40, %46 : vector<256x64xf32>
    %c0_48 = arith.constant 0 : index
    %c2_49 = arith.constant 2 : index
    %c1_50 = arith.constant 1 : index
    %c0_51 = arith.constant 0 : index
    %48 = vector.load %arg2[%c0_48, %c2_49, %c1_50, %c0_51] : memref<1x18x18x32xbf16, #tpu.memory_space<vmem>>, vector<1x16x16x32xbf16>
    %49 = vector.shape_cast %48 : vector<1x16x16x32xbf16> to vector<16x16x32xbf16>
    %50 = vector.shape_cast %49 : vector<16x16x32xbf16> to vector<256x32xbf16>
    %c7 = arith.constant 7 : index
    %c0_52 = arith.constant 0 : index
    %c0_53 = arith.constant 0 : index
    %51 = vector.load %arg3[%c7, %c0_52, %c0_53] : memref<9x32x64xbf16, #tpu.memory_space<vmem>>, vector<1x32x64xbf16>
    %52 = vector.shape_cast %51 : vector<1x32x64xbf16> to vector<32x64xbf16>
    %cst_54 = arith.constant dense<0.000000e+00> : vector<256x64xf32>
    %53 = tpu.matmul %50, %52, %cst_54 {dimension_numbers = #tpu.dot_dimension_numbers<[1], [0], [0], [1], [0, 0, 1, 1], [], []>} : vector<256x32xbf16>, vector<32x64xbf16>, vector<256x64xf32> -> vector<256x64xf32>
    %54 = arith.addf %47, %53 : vector<256x64xf32>
    %c0_55 = arith.constant 0 : index
    %c2_56 = arith.constant 2 : index
    %c2_57 = arith.constant 2 : index
    %c0_58 = arith.constant 0 : index
    %55 = vector.load %arg2[%c0_55, %c2_56, %c2_57, %c0_58] : memref<1x18x18x32xbf16, #tpu.memory_space<vmem>>, vector<1x16x16x32xbf16>
    %56 = vector.shape_cast %55 : vector<1x16x16x32xbf16> to vector<16x16x32xbf16>
    %57 = vector.shape_cast %56 : vector<16x16x32xbf16> to vector<256x32xbf16>
    %c8 = arith.constant 8 : index
    %c0_59 = arith.constant 0 : index
    %c0_60 = arith.constant 0 : index
    %58 = vector.load %arg3[%c8, %c0_59, %c0_60] : memref<9x32x64xbf16, #tpu.memory_space<vmem>>, vector<1x32x64xbf16>
    %59 = vector.shape_cast %58 : vector<1x32x64xbf16> to vector<32x64xbf16>
    %cst_61 = arith.constant dense<0.000000e+00> : vector<256x64xf32>
    %60 = tpu.matmul %57, %59, %cst_61 {dimension_numbers = #tpu.dot_dimension_numbers<[1], [0], [0], [1], [0, 0, 1, 1], [], []>} : vector<256x32xbf16>, vector<32x64xbf16>, vector<256x64xf32> -> vector<256x64xf32>
    %61 = arith.addf %54, %60 : vector<256x64xf32>
    %c0_62 = arith.constant 0 : index
    %c0_63 = arith.constant 0 : index
    %62 = vector.load %arg4[%c0_62, %c0_63] : memref<1x64xf32, #tpu.memory_space<vmem>>, vector<1x64xf32>
    %63 = vector.broadcast %62 : vector<1x64xf32> to vector<256x64xf32>
    %64 = arith.addf %61, %63 : vector<256x64xf32>
    %cst_64 = arith.constant 0.000000e+00 : f32
    %65 = vector.broadcast %cst_64 : f32 to vector<256x64xf32>
    %66 = arith.maximumf %64, %65 : vector<256x64xf32>
    %c0_65 = arith.constant 0 : index
    %c0_66 = arith.constant 0 : index
    %c0_67 = arith.constant 0 : index
    %67 = vector.load %arg5[%c0_65, %c0_66, %c0_67] : memref<1x256x64xf32, #tpu.memory_space<vmem>>, vector<1x256x64xf32>
    %68 = vector.shape_cast %67 : vector<1x256x64xf32> to vector<256x64xf32>
    %69 = vector.shape_cast %66 : vector<256x64xf32> to vector<1x256x64xf32>
    tpu.vector_store %arg5[%c0_65, %c0_66, %c0_67], %69 {strides = array<i32>} : memref<1x256x64xf32, #tpu.memory_space<vmem>>, vector<1x256x64xf32>,
    return
  }
  func.func @transform_0(%arg0: i32, %arg1: i32) -> (i32, i32, i32, i32) {
    %c0_i32 = arith.constant 0 : i32
    %c0_i32_0 = arith.constant 0 : i32
    %c0_i32_1 = arith.constant 0 : i32
    %c0_i32_2 = arith.constant 0 : i32
    return %arg0, %c0_i32, %c0_i32_0, %c0_i32_1 : i32, i32, i32, i32
  }
  func.func @transform_1(%arg0: i32, %arg1: i32) -> (i32, i32, i32) {
    %c0_i32 = arith.constant 0 : i32
    %c0_i32_0 = arith.constant 0 : i32
    %c0_i32_1 = arith.constant 0 : i32
    return %c0_i32, %c0_i32_0, %arg1 : i32, i32, i32
  }
  func.func @transform_2(%arg0: i32, %arg1: i32) -> (i32, i32) {
    %c0_i32 = arith.constant 0 : i32
    %c0_i32_0 = arith.constant 0 : i32
    return %c0_i32, %arg1 : i32, i32
  }
  func.func @transform_3(%arg0: i32, %arg1: i32) -> (i32, i32, i32) {
    %c0_i32 = arith.constant 0 : i32
    %c0_i32_0 = arith.constant 0 : i32
    return %arg0, %c0_i32, %arg1 : i32, i32, i32
  }
}

</mosaic_0001>

<llo_original>
// kernel: fwd.2
$region0: #{fwd.2}
  #allocation0 [shape = 'u32[]', space=smem, size = 0x4, offset = 0x4, fixed_abs, tag = 'smem constant byte address 0x4 - core index']
  #allocation1 [shape = 'u32[144,128]{1,0:T(1,128)}', space=vmem, size = 0x12000, scoped, tag = 'internal scratch']
  %s0 = inlined_call_operand.vmem [shape: f32[512,4], index: 0, kind: input, shape index: {}]
  %s1 = inlined_call_operand.vmem [shape: bf16[4,32], index: 1, kind: input, shape index: {}]
  %s2 = inlined_call_operand.vmem [shape: f32[1,32], index: 2, kind: input, shape index: {}]
  %s3 = inlined_call_operand.vmem [shape: bf16[512,32], index: 3, kind: output, shape index: {}]
  %s4 = sld [smem:[#allocation0]]
  $region22: #{fwd.2} parent=0
    _
  %s6 = ssub.s32 1, %s4
  %s7 = scalar_select 0, %s6, %s4
  // Predicated region
  $region2: #{fwd.2} parent=0 // pred_check
    _
  $region3: #{fwd.2} parent=0 // pred_check_branch
    %9 = sbr.rel (0) target = $region5
  $region4: #{fwd.2} parent=0 // pred_region
    _
  $region5: #{fwd.2} parent=0 // pred_fallthru
    _
  // Predicated region
  $region6: #{fwd.2} parent=0 // pred_check
    _
  $region7: #{fwd.2} parent=0 // pred_check_branch
    %11 = sbr.rel (0) target = $region9
  $region8: #{fwd.2} parent=0 // pred_region
    _
  $region9: #{fwd.2} parent=0 // pred_fallthru
    _
  // Predicated region
  $region10: #{fwd.2} parent=0 // pred_check
    _
  $region11: #{fwd.2} parent=0 // pred_check_branch
    %13 = sbr.rel (0) target = $region13
  $region12: #{fwd.2} parent=0 // pred_region
    _
  $region13: #{fwd.2} parent=0 // pred_fallthru
    _
  %v15 = vld [vmem:[%s0] sm:$0xff]
  %v16 = vld [vmem:[%s0 + $0x8] sm:$0xff]
  %v17 = vld [vmem:[%s0 + $0x10] sm:$0xff]
  %v18 = vld [vmem:[%s0 + $0x18] sm:$0xff]
  %v19 = vld [vmem:[%s0 + $0x20] sm:$0xff]
  %v20 = vld [vmem:[%s0 + $0x28] sm:$0xff]
  %v21 = vld [vmem:[%s0 + $0x30] sm:$0xff]
  %v22 = vld [vmem:[%s0 + $0x38] sm:$0xff]
  %v23 = vld [vmem:[%s0 + $0x40] sm:$0xff]
  %v24 = vld [vmem:[%s0 + $0x48] sm:$0xff]
  %v25 = vld [vmem:[%s0 + $0x50] sm:$0xff]
  %v26 = vld [vmem:[%s0 + $0x58] sm:$0xff]
  %v27 = vld [vmem:[%s0 + $0x60] sm:$0xff]
  %v28 = vld [vmem:[%s0 + $0x68] sm:$0xff]
  %v29 = vld [vmem:[%s0 + $0x70] sm:$0xff]
  %v30 = vld [vmem:[%s0 + $0x78] sm:$0xff]
  %v31 = vld [vmem:[%s0 + $0x80] sm:$0xff]
  %v32 = vld [vmem:[%s0 + $0x88] sm:$0xff]
  %v33 = vld [vmem:[%s0 + $0x90] sm:$0xff]
  %v34 = vld [vmem:[%s0 + $0x98] sm:$0xff]
  %v35 = vld [vmem:[%s0 + $0xa0] sm:$0xff]
  %v36 = vld [vmem:[%s0 + $0xa8] sm:$0xff]
  %v37 = vld [vmem:[%s0 + $0xb0] sm:$0xff]
  %v38 = vld [vmem:[%s0 + $0xb8] sm:$0xff]
  %v39 = vld [vmem:[%s0 + $0xc0] sm:$0xff]
  %v40 = vld [vmem:[%s0 + $0xc8] sm:$0xff]
  %v41 = vld [vmem:[%s0 + $0xd0] sm:$0xff]
  %v42 = vld [vmem:[%s0 + $0xd8] sm:$0xff]
  %v43 = vld [vmem:[%s0 + $0xe0] sm:$0xff]
  %v44 = vld [vmem:[%s0 + $0xe8] sm:$0xff]
  %v45 = vld [vmem:[%s0 + $0xf0] sm:$0xff]
  %v46 = vld [vmem:[%s0 + $0xf8] sm:$0xff]
  %v47 = vld [vmem:[%s0 + $0x100] sm:$0xff]
  %v48 = vld [vmem:[%s0 + $0x108] sm:$0xff]
  %v49 = vld [vmem:[%s0 + $0x110] sm:$0xff]
  %v50 = vld [vmem:[%s0 + $0x118] sm:$0xff]
  %v51 = vld [vmem:[%s0 + $0x120] sm:$0xff]
  %v52 = vld [vmem:[%s0 + $0x128] sm:$0xff]
  %v53 = vld [vmem:[%s0 + $0x130] sm:$0xff]
  %v54 = vld [vmem:[%s0 + $0x138] sm:$0xff]
  %v55 = vld [vmem:[%s0 + $0x140] sm:$0xff]
  %v56 = vld [vmem:[%s0 + $0x148] sm:$0xff]
  %v57 = vld [vmem:[%s0 + $0x150] sm:$0xff]
  %v58 = vld [vmem:[%s0 + $0x158] sm:$0xff]
  %v59 = vld [vmem:[%s0 + $0x160] sm:$0xff]
  %v60 = vld [vmem:[%s0 + $0x168] sm:$0xff]
  %v61 = vld [vmem:[%s0 + $0x170] sm:$0xff]
  %v62 = vld [vmem:[%s0 + $0x178] sm:$0xff]
  %v63 = vld [vmem:[%s0 + $0x180] sm:$0xff]
  %v64 = vld [vmem:[%s0 + $0x188] sm:$0xff]
  %v65 = vld [vmem:[%s0 + $0x190] sm:$0xff]
  %v66 = vld [vmem:[%s0 + $0x198] sm:$0xff]
  %v67 = vld [vmem:[%s0 + $0x1a0] sm:$0xff]
  %v68 = vld [vmem:[%s0 + $0x1a8] sm:$0xff]
  %v69 = vld [vmem:[%s0 + $0x1b0] sm:$0xff]
  %v70 = vld [vmem:[%s0 + $0x1b8] sm:$0xff]
  %v71 = vld [vmem:[%s0 + $0x1c0] sm:$0xff]
  %v72 = vld [vmem:[%s0 + $0x1c8] sm:$0xff]
  %v73 = vld [vmem:[%s0 + $0x1d0] sm:$0xff]
  %v74 = vld [vmem:[%s0 + $0x1d8] sm:$0xff]
  %v75 = vld [vmem:[%s0 + $0x1e0] sm:$0xff]
  %v76 = vld [vmem:[%s0 + $0x1e8] sm:$0xff]
  %v77 = vld [vmem:[%s0 + $0x1f0] sm:$0xff]
  %v78 = vld [vmem:[%s0 + $0x1f8] sm:$0xff]
  %v79 = vpack.c.bf16 %v16, %v15
  %v80 = vpack.c.bf16 %v18, %v17
  %v81 = vpack.c.bf16 %v20, %v19
  %v82 = vpack.c.bf16 %v22, %v21
  %v83 = vpack.c.bf16 %v24, %v23
  %v84 = vpack.c.bf16 %v26, %v25
  %v85 = vpack.c.bf16 %v28, %v27
  %v86 = vpack.c.bf16 %v30, %v29
  %v87 = vpack.c.bf16 %v32, %v31
  %v88 = vpack.c.bf16 %v34, %v33
  %v89 = vpack.c.bf16 %v36, %v35
  %v90 = vpack.c.bf16 %v38, %v37
  %v91 = vpack.c.bf16 %v40, %v39
  %v92 = vpack.c.bf16 %v42, %v41
  %v93 = vpack.c.bf16 %v44, %v43
  %v94 = vpack.c.bf16 %v46, %v45
  %v95 = vpack.c.bf16 %v48, %v47
  %v96 = vpack.c.bf16 %v50, %v49
  %v97 = vpack.c.bf16 %v52, %v51
  %v98 = vpack.c.bf16 %v54, %v53
  %v99 = vpack.c.bf16 %v56, %v55
  %v100 = vpack.c.bf16 %v58, %v57
  %v101 = vpack.c.bf16 %v60, %v59
  %v102 = vpack.c.bf16 %v62, %v61
  %v103 = vpack.c.bf16 %v64, %v63
  %v104 = vpack.c.bf16 %v66, %v65
  %v105 = vpack.c.bf16 %v68, %v67
  %v106 = vpack.c.bf16 %v70, %v69
  %v107 = vpack.c.bf16 %v72, %v71
  %v108 = vpack.c.bf16 %v74, %v73
  %v109 = vpack.c.bf16 %v76, %v75
  %v110 = vpack.c.bf16 %v78, %v77
  %v111 = vld [vmem:[%s1] sm:$0x3]
  %v112 = vld [vmem:[%s2] sm:$0x1]
  %v114 = vlaneseq
  %v115 = vshrl.u32 %v114, 7
  %v116 = vsub.s32 0, %v115
  %v117 = vrot.slane %v112, %v116
  %vm119 = vcmask 31744
  %v121 = vsel %vm119, %v79, 0
  %v124 = vsel %vm119, %v80, 0
  %v127 = vsel %vm119, %v81, 0
  %v130 = vsel %vm119, %v82, 0
  %v133 = vsel %vm119, %v83, 0
  %v136 = vsel %vm119, %v84, 0
  %v139 = vsel %vm119, %v85, 0
  %v142 = vsel %vm119, %v86, 0
  %v145 = vsel %vm119, %v87, 0
  %v148 = vsel %vm119, %v88, 0
  %v151 = vsel %vm119, %v89, 0
  %v154 = vsel %vm119, %v90, 0
  %v157 = vsel %vm119, %v91, 0
  %v160 = vsel %vm119, %v92, 0
  %v163 = vsel %vm119, %v93, 0
  %v166 = vsel %vm119, %v94, 0
  %v169 = vsel %vm119, %v95, 0
  %v172 = vsel %vm119, %v96, 0
  %v175 = vsel %vm119, %v97, 0
  %v178 = vsel %vm119, %v98, 0
  %v181 = vsel %vm119, %v99, 0
  %v184 = vsel %vm119, %v100, 0
  %v187 = vsel %vm119, %v101, 0
  %v190 = vsel %vm119, %v102, 0
  %v193 = vsel %vm119, %v103, 0
  %v196 = vsel %vm119, %v104, 0
  %v199 = vsel %vm119, %v105, 0
  %v202 = vsel %vm119, %v106, 0
  %v205 = vsel %vm119, %v107, 0
  %v208 = vsel %vm119, %v108, 0
  %v211 = vsel %vm119, %v109, 0
  %v214 = vsel %vm119, %v110, 0
  %vm216 = vcmask 1041408
  %v218 = vsel %vm216, %v111, 0
  %220 = vmatprep.subr.bf16.mxu0 0
  %221 = vmatpush1.bf16.msra.mxu0 %v218
  %222 = vmatprep.subr.bf16.mxu0 0
  %223 = vmatpush1.bf16.msra.mxu0 0
  %224 = vmatprep.subr.bf16.mxu0 0
  %225 = vmatpush1.bf16.msra.mxu0 0
  %226 = vmatprep.subr.bf16.mxu0 0
  %227 = vmatpush1.bf16.msra.mxu0 0
  %228 = vmatprep.subr.bf16.mxu0 0
  %229 = vmatpush1.bf16.msra.mxu0 0
  %230 = vmatprep.subr.bf16.mxu0 0
  %231 = vmatpush1.bf16.msra.mxu0 0
  %232 = vmatprep.subr.bf16.mxu0 0
  %233 = vmatpush1.bf16.msra.mxu0 0
  %234 = vmatprep.subr.bf16.mxu0 0
  %235 = vmatpush1.bf16.msra.mxu0 0
  %236 = vmatprep.subr.bf16.mxu0 0
  %237 = vmatpush1.bf16.msra.mxu0 0
  %238 = vmatprep.subr.bf16.mxu0 0
  %239 = vmatpush1.bf16.msra.mxu0 0
  %240 = vmatprep.subr.bf16.mxu0 0
  %241 = vmatpush1.bf16.msra.mxu0 0
  %242 = vmatprep.subr.bf16.mxu0 0
  %243 = vmatpush1.bf16.msra.mxu0 0
  %244 = vmatprep.subr.bf16.mxu0 0
  %245 = vmatpush1.bf16.msra.mxu0 0
  %246 = vmatprep.subr.bf16.mxu0 0
  %247 = vmatpush1.bf16.msra.mxu0 0
  %248 = vmatprep.subr.bf16.mxu0 0
  %249 = vmatpush1.bf16.msra.mxu0 0
  %250 = vmatprep.subr.bf16.mxu0 0
  %251 = vmatpush1.bf16.msra.mxu0 0
  %252 = vmatprep.mubr.bf16.mxu0 0
  %253 = vmatmul.mubr.bf16.gmra.mrb[0].mxu0 %v121
  %v254 = vpop.f32.mrb[0].mxu0
  %v255 = vadd.f32 %v117, %v254
  %v256 = vpop.f32.mrb[0].mxu0
  %v257 = vpop.f32.mrb[0].mxu0
  %v258 = vadd.f32 %v117, %v257
  %v259 = vpop.f32.mrb[0].mxu0
  %260 = vmatprep.mubr.bf16.mxu0 0
  %261 = vmatmul.mubr.bf16.gmra.mrb[0].mxu0 %v124
  %v262 = vpop.f32.mrb[0].mxu0
  %v263 = vadd.f32 %v117, %v262
  %v264 = vpop.f32.mrb[0].mxu0
  %v265 = vpop.f32.mrb[0].mxu0
  %v266 = vadd.f32 %v117, %v265
  %v267 = vpop.f32.mrb[0].mxu0
  %268 = vmatprep.mubr.bf16.mxu0 0
  %269 = vmatmul.mubr.bf16.gmra.mrb[0].mxu0 %v127
  %v270 = vpop.f32.mrb[0].mxu0
  %v271 = vadd.f32 %v117, %v270
  %v272 = vpop.f32.mrb[0].mxu0
  %v273 = vpop.f32.mrb[0].mxu0
  %v274 = vadd.f32 %v117, %v273
  %v275 = vpop.f32.mrb[0].mxu0
  %276 = vmatprep.mubr.bf16.mxu0 0
  %277 = vmatmul.mubr.bf16.gmra.mrb[0].mxu0 %v130
  %v278 = vpop.f32.mrb[0].mxu0
  %v279 = vadd.f32 %v117, %v278
  %v280 = vpop.f32.mrb[0].mxu0
  %v281 = vpop.f32.mrb[0].mxu0
  %v282 = vadd.f32 %v117, %v281
  %v283 = vpop.f32.mrb[0].mxu0
  %284 = vmatprep.mubr.bf16.mxu0 0
  %285 = vmatmul.mubr.bf16.gmra.mrb[0].mxu0 %v133
  %v286 = vpop.f32.mrb[0].mxu0
  %v287 = vadd.f32 %v117, %v286
  %v288 = vpop.f32.mrb[0].mxu0
  %v289 = vpop.f32.mrb[0].mxu0
  %v290 = vadd.f32 %v117, %v289
  %v291 = vpop.f32.mrb[0].mxu0
  %292 = vmatprep.mubr.bf16.mxu0 0
  %293 = vmatmul.mubr.bf16.gmra.mrb[0].mxu0 %v136
  %v294 = vpop.f32.mrb[0].mxu0
  %v295 = vadd.f32 %v117, %v294
  %v296 = vpop.f32.mrb[0].mxu0
  %v297 = vpop.f32.mrb[0].mxu0
  %v298 = vadd.f32 %v117, %v297
  %v299 = vpop.f32.mrb[0].mxu0
  %300 = vmatprep.mubr.bf16.mxu0 0
  %301 = vmatmul.mubr.bf16.gmra.mrb[0].mxu0 %v139
  %v302 = vpop.f32.mrb[0].mxu0
  %v303 = vadd.f32 %v117, %v302
  %v304 = vpop.f32.mrb[0].mxu0
  %v305 = vpop.f32.mrb[0].mxu0
  %v306 = vadd.f32 %v117, %v305
  %v307 = vpop.f32.mrb[0].mxu0
  %308 = vmatprep.mubr.bf16.mxu0 0
  %309 = vmatmul.mubr.bf16.gmra.mrb[0].mxu0 %v142
  %v310 = vpop.f32.mrb[0].mxu0
  %v311 = vadd.f32 %v117, %v310
  %v312 = vpop.f32.mrb[0].mxu0
  %v313 = vpop.f32.mrb[0].mxu0
  %v314 = vadd.f32 %v117, %v313
  %v315 = vpop.f32.mrb[0].mxu0
  %316 = vmatprep.mubr.bf16.mxu0 0
  %317 = vmatmul.mubr.bf16.gmra.mrb[0].mxu0 %v145
  %v318 = vpop.f32.mrb[0].mxu0
  %v319 = vadd.f32 %v117, %v318
  %v320 = vpop.f32.mrb[0].mxu0
  %v321 = vpop.f32.mrb[0].mxu0
  %v322 = vadd.f32 %v117, %v321
  %v323 = vpop.f32.mrb[0].mxu0
  %324 = vmatprep.mubr.bf16.mxu0 0
  %325 = vmatmul.mubr.bf16.gmra.mrb[0].mxu0 %v148
  %v326 = vpop.f32.mrb[0].mxu0
  %v327 = vadd.f32 %v117, %v326
  %v328 = vpop.f32.mrb[0].mxu0
  %v329 = vpop.f32.mrb[0].mxu0
  %v330 = vadd.f32 %v117, %v329
  %v331 = vpop.f32.mrb[0].mxu0
  %332 = vmatprep.mubr.bf16.mxu0 0
  %333 = vmatmul.mubr.bf16.gmra.mrb[0].mxu0 %v151
  %v334 = vpop.f32.mrb[0].mxu0
  %v335 = vadd.f32 %v117, %v334
  %v336 = vpop.f32.mrb[0].mxu0
  %v337 = vpop.f32.mrb[0].mxu0
  %v338 = vadd.f32 %v117, %v337
  %v339 = vpop.f32.mrb[0].mxu0
  %340 = vmatprep.mubr.bf16.mxu0 0
  %341 = vmatmul.mubr.bf16.gmra.mrb[0].mxu0 %v154
  %v342 = vpop.f32.mrb[0].mxu0
  %v343 = vadd.f32 %v117, %v342
  %v344 = vpop.f32.mrb[0].mxu0
  %v345 = vpop.f32.mrb[0].mxu0
  %v346 = vadd.f32 %v117, %v345
  %v347 = vpop.f32.mrb[0].mxu0
  %348 = vmatprep.mubr.bf16.mxu0 0
  %349 = vmatmul.mubr.bf16.gmra.mrb[0].mxu0 %v157
  %v350 = vpop.f32.mrb[0].mxu0
  %v351 = vadd.f32 %v117, %v350
  %v352 = vpop.f32.mrb[0].mxu0
  %v353 = vpop.f32.mrb[0].mxu0
  %v354 = vadd.f32 %v117, %v353
  %v355 = vpop.f32.mrb[0].mxu0
  %356 = vmatprep.mubr.bf16.mxu0 0
  %357 = vmatmul.mubr.bf16.gmra.mrb[0].mxu0 %v160
  %v358 = vpop.f32.mrb[0].mxu0
  %v359 = vadd.f32 %v117, %v358
  %v360 = vpop.f32.mrb[0].mxu0
  %v361 = vpop.f32.mrb[0].mxu0
  %v362 = vadd.f32 %v117, %v361
  %v363 = vpop.f32.mrb[0].mxu0
  %364 = vmatprep.mubr.bf16.mxu0 0
  %365 = vmatmul.mubr.bf16.gmra.mrb[0].mxu0 %v163
  %v366 = vpop.f32.mrb[0].mxu0
  %v367 = vadd.f32 %v117, %v366
  %v368 = vpop.f32.mrb[0].mxu0
  %v369 = vpop.f32.mrb[0].mxu0
  %v370 = vadd.f32 %v117, %v369
  %v371 = vpop.f32.mrb[0].mxu0
  %372 = vmatprep.mubr.bf16.mxu0 0
  %373 = vmatmul.mubr.bf16.gmra.mrb[0].mxu0 %v166
  %v374 = vpop.f32.mrb[0].mxu0
  %v375 = vadd.f32 %v117, %v374
  %v376 = vpop.f32.mrb[0].mxu0
  %v377 = vpop.f32.mrb[0].mxu0
  %v378 = vadd.f32 %v117, %v377
  %v379 = vpop.f32.mrb[0].mxu0
  %380 = vmatprep.mubr.bf16.mxu0 0
  %381 = vmatmul.mubr.bf16.gmra.mrb[0].mxu0 %v169
  %v382 = vpop.f32.mrb[0].mxu0
  %v383 = vadd.f32 %v117, %v382
  %v384 = vpop.f32.mrb[0].mxu0
  %v385 = vpop.f32.mrb[0].mxu0
  %v386 = vadd.f32 %v117, %v385
  %v387 = vpop.f32.mrb[0].mxu0
  %388 = vmatprep.mubr.bf16.mxu0 0
  %389 = vmatmul.mubr.bf16.gmra.mrb[0].mxu0 %v172
  %v390 = vpop.f32.mrb[0].mxu0
  %v391 = vadd.f32 %v117, %v390
  %v392 = vpop.f32.mrb[0].mxu0
  %v393 = vpop.f32.mrb[0].mxu0
  %v394 = vadd.f32 %v117, %v393
  %v395 = vpop.f32.mrb[0].mxu0
  %396 = vmatprep.mubr.bf16.mxu0 0
  %397 = vmatmul.mubr.bf16.gmra.mrb[0].mxu0 %v175
  %v398 = vpop.f32.mrb[0].mxu0
  %v399 = vadd.f32 %v117, %v398
  %v400 = vpop.f32.mrb[0].mxu0
  %v401 = vpop.f32.mrb[0].mxu0
  %v402 = vadd.f32 %v117, %v401
  %v403 = vpop.f32.mrb[0].mxu0
  %404 = vmatprep.mubr.bf16.mxu0 0
  %405 = vmatmul.mubr.bf16.gmra.mrb[0].mxu0 %v178
  %v406 = vpop.f32.mrb[0].mxu0
  %v407 = vadd.f32 %v117, %v406
  %v408 = vpop.f32.mrb[0].mxu0
  %v409 = vpop.f32.mrb[0].mxu0
  %v410 = vadd.f32 %v117, %v409
  %v411 = vpop.f32.mrb[0].mxu0
  %412 = vmatprep.mubr.bf16.mxu0 0
  %413 = vmatmul.mubr.bf16.gmra.mrb[0].mxu0 %v181
  %v414 = vpop.f32.mrb[0].mxu0
  %v415 = vadd.f32 %v117, %v414
  %v416 = vpop.f32.mrb[0].mxu0
  %v417 = vpop.f32.mrb[0].mxu0
  %v418 = vadd.f32 %v117, %v417
  %v419 = vpop.f32.mrb[0].mxu0
  %420 = vmatprep.mubr.bf16.mxu0 0
  %421 = vmatmul.mubr.bf16.gmra.mrb[0].mxu0 %v184
  %v422 = vpop.f32.mrb[0].mxu0
  %v423 = vadd.f32 %v117, %v422
  %v424 = vpop.f32.mrb[0].mxu0
  %v425 = vpop.f32.mrb[0].mxu0
  %v426 = vadd.f32 %v117, %v425
  %v427 = vpop.f32.mrb[0].mxu0
  %428 = vmatprep.mubr.bf16.mxu0 0
  %429 = vmatmul.mubr.bf16.gmra.mrb[0].mxu0 %v187
  %v430 = vpop.f32.mrb[0].mxu0
  %v431 = vadd.f32 %v117, %v430
  %v432 = vpop.f32.mrb[0].mxu0
  %v433 = vpop.f32.mrb[0].mxu0
  %v434 = vadd.f32 %v117, %v433
  %v435 = vpop.f32.mrb[0].mxu0
  %436 = vmatprep.mubr.bf16.mxu0 0
  %437 = vmatmul.mubr.bf16.gmra.mrb[0].mxu0 %v190
  %v438 = vpop.f32.mrb[0].mxu0
  %v439 = vadd.f32 %v117, %v438
  %v440 = vpop.f32.mrb[0].mxu0
  %v441 = vpop.f32.mrb[0].mxu0
  %v442 = vadd.f32 %v117, %v441
  %v443 = vpop.f32.mrb[0].mxu0
  %444 = vmatprep.mubr.bf16.mxu0 0
  %445 = vmatmul.mubr.bf16.gmra.mrb[0].mxu0 %v193
  %v446 = vpop.f32.mrb[0].mxu0
  %v447 = vadd.f32 %v117, %v446
  %v448 = vpop.f32.mrb[0].mxu0
  %v449 = vpop.f32.mrb[0].mxu0
  %v450 = vadd.f32 %v117, %v449
  %v451 = vpop.f32.mrb[0].mxu0
  %452 = vmatprep.mubr.bf16.mxu0 0
  %453 = vmatmul.mubr.bf16.gmra.mrb[0].mxu0 %v196
  %v454 = vpop.f32.mrb[0].mxu0
  %v455 = vadd.f32 %v117, %v454
  %v456 = vpop.f32.mrb[0].mxu0
  %v457 = vpop.f32.mrb[0].mxu0
  %v458 = vadd.f32 %v117, %v457
  %v459 = vpop.f32.mrb[0].mxu0
  %460 = vmatprep.mubr.bf16.mxu0 0
  %461 = vmatmul.mubr.bf16.gmra.mrb[0].mxu0 %v199
  %v462 = vpop.f32.mrb[0].mxu0
  %v463 = vadd.f32 %v117, %v462
  %v464 = vpop.f32.mrb[0].mxu0
  %v465 = vpop.f32.mrb[0].mxu0
  %v466 = vadd.f32 %v117, %v465
  %v467 = vpop.f32.mrb[0].mxu0
  %468 = vmatprep.mubr.bf16.mxu0 0
  %469 = vmatmul.mubr.bf16.gmra.mrb[0].mxu0 %v202
  %v470 = vpop.f32.mrb[0].mxu0
  %v471 = vadd.f32 %v117, %v470
  %v472 = vpop.f32.mrb[0].mxu0
  %v473 = vpop.f32.mrb[0].mxu0
  %v474 = vadd.f32 %v117, %v473
  %v475 = vpop.f32.mrb[0].mxu0
  %476 = vmatprep.mubr.bf16.mxu0 0
  %477 = vmatmul.mubr.bf16.gmra.mrb[0].mxu0 %v205
  %v478 = vpop.f32.mrb[0].mxu0
  %v479 = vadd.f32 %v117, %v478
  %v480 = vpop.f32.mrb[0].mxu0
  %v481 = vpop.f32.mrb[0].mxu0
  %v482 = vadd.f32 %v117, %v481
  %v483 = vpop.f32.mrb[0].mxu0
  %484 = vmatprep.mubr.bf16.mxu0 0
  %485 = vmatmul.mubr.bf16.gmra.mrb[0].mxu0 %v208
  %v486 = vpop.f32.mrb[0].mxu0
  %v487 = vadd.f32 %v117, %v486
  %v488 = vpop.f32.mrb[0].mxu0
  %v489 = vpop.f32.mrb[0].mxu0
  %v490 = vadd.f32 %v117, %v489
  %v491 = vpop.f32.mrb[0].mxu0
  %492 = vmatprep.mubr.bf16.mxu0 0
  %493 = vmatmul.mubr.bf16.gmra.mrb[0].mxu0 %v211
  %v494 = vpop.f32.mrb[0].mxu0
  %v495 = vadd.f32 %v117, %v494
  %v496 = vpop.f32.mrb[0].mxu0
  %v497 = vpop.f32.mrb[0].mxu0
  %v498 = vadd.f32 %v117, %v497
  %v499 = vpop.f32.mrb[0].mxu0
  %500 = vmatprep.mubr.bf16.mxu0 0
  %501 = vmatmul.mubr.bf16.gmra.mrb[0].mxu0 %v214
  %v502 = vpop.f32.mrb[0].mxu0
  %v503 = vadd.f32 %v117, %v502
  %v504 = vpop.f32.mrb[0].mxu0
  %v505 = vpop.f32.mrb[0].mxu0
  %v506 = vadd.f32 %v117, %v505
  %v507 = vpop.f32.mrb[0].mxu0
  %508 = vdwg.mxu0
  %v509 = vmax.f32 %v255, 0.0
  %v510 = vmax.f32 %v258, 0.0
  %v511 = vmax.f32 %v263, 0.0
  %v512 = vmax.f32 %v266, 0.0
  %v513 = vmax.f32 %v271, 0.0
  %v514 = vmax.f32 %v274, 0.0
  %v515 = vmax.f32 %v279, 0.0
  %v516 = vmax.f32 %v282, 0.0
  %v517 = vmax.f32 %v287, 0.0
  %v518 = vmax.f32 %v290, 0.0
  %v519 = vmax.f32 %v295, 0.0
  %v520 = vmax.f32 %v298, 0.0
  %v521 = vmax.f32 %v303, 0.0
  %v522 = vmax.f32 %v306, 0.0
  %v523 = vmax.f32 %v311, 0.0
  %v524 = vmax.f32 %v314, 0.0
  %v525 = vmax.f32 %v319, 0.0
  %v526 = vmax.f32 %v322, 0.0
  %v527 = vmax.f32 %v327, 0.0
  %v528 = vmax.f32 %v330, 0.0
  %v529 = vmax.f32 %v335, 0.0
  %v530 = vmax.f32 %v338, 0.0
  %v531 = vmax.f32 %v343, 0.0
  %v532 = vmax.f32 %v346, 0.0
  %v533 = vmax.f32 %v351, 0.0
  %v534 = vmax.f32 %v354, 0.0
  %v535 = vmax.f32 %v359, 0.0
  %v536 = vmax.f32 %v362, 0.0
  %v537 = vmax.f32 %v367, 0.0
  %v538 = vmax.f32 %v370, 0.0
  %v539 = vmax.f32 %v375, 0.0
  %v540 = vmax.f32 %v378, 0.0
  %v541 = vmax.f32 %v383, 0.0
  %v542 = vmax.f32 %v386, 0.0
  %v543 = vmax.f32 %v391, 0.0
  %v544 = vmax.f32 %v394, 0.0
  %v545 = vmax.f32 %v399, 0.0
  %v546 = vmax.f32 %v402, 0.0
  %v547 = vmax.f32 %v407, 0.0
  %v548 = vmax.f32 %v410, 0.0
  %v549 = vmax.f32 %v415, 0.0
  %v550 = vmax.f32 %v418, 0.0
  %v551 = vmax.f32 %v423, 0.0
  %v552 = vmax.f32 %v426, 0.0
  %v553 = vmax.f32 %v431, 0.0
  %v554 = vmax.f32 %v434, 0.0
  %v555 = vmax.f32 %v439, 0.0
  %v556 = vmax.f32 %v442, 0.0
  %v557 = vmax.f32 %v447, 0.0
  %v558 = vmax.f32 %v450, 0.0
  %v559 = vmax.f32 %v455, 0.0
  %v560 = vmax.f32 %v458, 0.0
  %v561 = vmax.f32 %v463, 0.0
  %v562 = vmax.f32 %v466, 0.0
  %v563 = vmax.f32 %v471, 0.0
  %v564 = vmax.f32 %v474, 0.0
  %v565 = vmax.f32 %v479, 0.0
  %v566 = vmax.f32 %v482, 0.0
  %v567 = vmax.f32 %v487, 0.0
  %v568 = vmax.f32 %v490, 0.0
  %v569 = vmax.f32 %v495, 0.0
  %v570 = vmax.f32 %v498, 0.0
  %v571 = vmax.f32 %v503, 0.0
  %v572 = vmax.f32 %v506, 0.0
  %v573 = vpack.c.bf16 %v510, %v509
  %v574 = vpack.c.bf16 %v512, %v511
  %v575 = vpack.c.bf16 %v514, %v513
  %v576 = vpack.c.bf16 %v516, %v515
  %v577 = vpack.c.bf16 %v518, %v517
  %v578 = vpack.c.bf16 %v520, %v519
  %v579 = vpack.c.bf16 %v522, %v521
  %v580 = vpack.c.bf16 %v524, %v523
  %v581 = vpack.c.bf16 %v526, %v525
  %v582 = vpack.c.bf16 %v528, %v527
  %v583 = vpack.c.bf16 %v530, %v529
  %v584 = vpack.c.bf16 %v532, %v531
  %v585 = vpack.c.bf16 %v534, %v533
  %v586 = vpack.c.bf16 %v536, %v535
  %v587 = vpack.c.bf16 %v538, %v537
  %v588 = vpack.c.bf16 %v540, %v539
  %v589 = vpack.c.bf16 %v542, %v541
  %v590 = vpack.c.bf16 %v544, %v543
  %v591 = vpack.c.bf16 %v546, %v545
  %v592 = vpack.c.bf16 %v548, %v547
  %v593 = vpack.c.bf16 %v550, %v549
  %v594 = vpack.c.bf16 %v552, %v551
  %v595 = vpack.c.bf16 %v554, %v553
  %v596 = vpack.c.bf16 %v556, %v555
  %v597 = vpack.c.bf16 %v558, %v557
  %v598 = vpack.c.bf16 %v560, %v559
  %v599 = vpack.c.bf16 %v562, %v561
  %v600 = vpack.c.bf16 %v564, %v563
  %v601 = vpack.c.bf16 %v566, %v565
  %v602 = vpack.c.bf16 %v568, %v567
  %v603 = vpack.c.bf16 %v570, %v569
  %v604 = vpack.c.bf16 %v572, %v571
  %v637 = vunpack.c.l.b16 %v573
  %v638 = vunpack.c.h.b16 %v573
  %v639 = vunpack.c.l.b16 %v574
  %v640 = vunpack.c.h.b16 %v574
  %v641 = vunpack.c.l.b16 %v575
  %v642 = vunpack.c.h.b16 %v575
  %v643 = vunpack.c.l.b16 %v576
  %v644 = vunpack.c.h.b16 %v576
  %v645 = vunpack.c.l.b16 %v577
  %v646 = vunpack.c.h.b16 %v577
  %v647 = vunpack.c.l.b16 %v578
  %v648 = vunpack.c.h.b16 %v578
  %v649 = vunpack.c.l.b16 %v579
  %v650 = vunpack.c.h.b16 %v579
  %v651 = vunpack.c.l.b16 %v580
  %v652 = vunpack.c.h.b16 %v580
  %v653 = vunpack.c.l.b16 %v581
  %v654 = vunpack.c.h.b16 %v581
  %v655 = vunpack.c.l.b16 %v582
  %v656 = vunpack.c.h.b16 %v582
  %v657 = vunpack.c.l.b16 %v583
  %v658 = vunpack.c.h.b16 %v583
  %v659 = vunpack.c.l.b16 %v584
  %v660 = vunpack.c.h.b16 %v584
  %v661 = vunpack.c.l.b16 %v585
  %v662 = vunpack.c.h.b16 %v585
  %v663 = vunpack.c.l.b16 %v586
  %v664 = vunpack.c.h.b16 %v586
  %v665 = vunpack.c.l.b16 %v587
  %v666 = vunpack.c.h.b16 %v587
  %v667 = vunpack.c.l.b16 %v588
  %v668 = vunpack.c.h.b16 %v588
  %v669 = vunpack.c.l.b16 %v589
  %v670 = vunpack.c.h.b16 %v589
  %v671 = vunpack.c.l.b16 %v590
  %v672 = vunpack.c.h.b16 %v590
  %v673 = vunpack.c.l.b16 %v591
  %v674 = vunpack.c.h.b16 %v591
  %v675 = vunpack.c.l.b16 %v592
  %v676 = vunpack.c.h.b16 %v592
  %v677 = vunpack.c.l.b16 %v593
  %v678 = vunpack.c.h.b16 %v593
  %v679 = vunpack.c.l.b16 %v594
  %v680 = vunpack.c.h.b16 %v594
  %v681 = vunpack.c.l.b16 %v595
  %v682 = vunpack.c.h.b16 %v595
  %v683 = vunpack.c.l.b16 %v596
  %v684 = vunpack.c.h.b16 %v596
  %v685 = vunpack.c.l.b16 %v597
  %v686 = vunpack.c.h.b16 %v597
  %v687 = vunpack.c.l.b16 %v598
  %v688 = vunpack.c.h.b16 %v598
  %v689 = vunpack.c.l.b16 %v599
  %v690 = vunpack.c.h.b16 %v599
  %v691 = vunpack.c.l.b16 %v600
  %v692 = vunpack.c.h.b16 %v600
  %v693 = vunpack.c.l.b16 %v601
  %v694 = vunpack.c.h.b16 %v601
  %v695 = vunpack.c.l.b16 %v602
  %v696 = vunpack.c.h.b16 %v602
  %v697 = vunpack.c.l.b16 %v603
  %v698 = vunpack.c.h.b16 %v603
  %v699 = vunpack.c.l.b16 %v604
  %v700 = vunpack.c.h.b16 %v604
  %v701 = vpack.c.b16 %v637, %v637
  %v702 = vpack.c.b16 %v638, %v638
  %v703 = vpack.c.b16 %v639, %v639
  %v704 = vpack.c.b16 %v640, %v640
  %v705 = vpack.c.b16 %v641, %v641
  %v706 = vpack.c.b16 %v642, %v642
  %v707 = vpack.c.b16 %v643, %v643
  %v708 = vpack.c.b16 %v644, %v644
  %v709 = vpack.c.b16 %v645, %v645
  %v710 = vpack.c.b16 %v646, %v646
  %v711 = vpack.c.b16 %v647, %v647
  %v712 = vpack.c.b16 %v648, %v648
  %v713 = vpack.c.b16 %v649, %v649
  %v714 = vpack.c.b16 %v650, %v650
  %v715 = vpack.c.b16 %v651, %v651
  %v716 = vpack.c.b16 %v652, %v652
  %v717 = vpack.c.b16 %v653, %v653
  %v718 = vpack.c.b16 %v654, %v654
  %v719 = vpack.c.b16 %v655, %v655
  %v720 = vpack.c.b16 %v656, %v656
  %v721 = vpack.c.b16 %v657, %v657
  %v722 = vpack.c.b16 %v658, %v658
  %v723 = vpack.c.b16 %v659, %v659
  %v724 = vpack.c.b16 %v660, %v660
  %v725 = vpack.c.b16 %v661, %v661
  %v726 = vpack.c.b16 %v662, %v662
  %v727 = vpack.c.b16 %v663, %v663
  %v728 = vpack.c.b16 %v664, %v664
  %v729 = vpack.c.b16 %v665, %v665
  %v730 = vpack.c.b16 %v666, %v666
  %v731 = vpack.c.b16 %v667, %v667
  %v732 = vpack.c.b16 %v668, %v668
  %v733 = vpack.c.b16 %v669, %v669
  %v734 = vpack.c.b16 %v670, %v670
  %v735 = vpack.c.b16 %v671, %v671
  %v736 = vpack.c.b16 %v672, %v672
  %v737 = vpack.c.b16 %v673, %v673
  %v738 = vpack.c.b16 %v674, %v674
  %v739 = vpack.c.b16 %v675, %v675
  %v740 = vpack.c.b16 %v676, %v676
  %v741 = vpack.c.b16 %v677, %v677
  %v742 = vpack.c.b16 %v678, %v678
  %v743 = vpack.c.b16 %v679, %v679
  %v744 = vpack.c.b16 %v680, %v680
  %v745 = vpack.c.b16 %v681, %v681
  %v746 = vpack.c.b16 %v682, %v682
  %v747 = vpack.c.b16 %v683, %v683
  %v748 = vpack.c.b16 %v684, %v684
  %v749 = vpack.c.b16 %v685, %v685
  %v750 = vpack.c.b16 %v686, %v686
  %v751 = vpack.c.b16 %v687, %v687
  %v752 = vpack.c.b16 %v688, %v688
  %v753 = vpack.c.b16 %v689, %v689
  %v754 = vpack.c.b16 %v690, %v690
  %v755 = vpack.c.b16 %v691, %v691
  %v756 = vpack.c.b16 %v692, %v692
  %v757 = vpack.c.b16 %v693, %v693
  %v758 = vpack.c.b16 %v694, %v694
  %v759 = vpack.c.b16 %v695, %v695
  %v760 = vpack.c.b16 %v696, %v696
  %v761 = vpack.c.b16 %v697, %v697
  %v762 = vpack.c.b16 %v698, %v698
  %v763 = vpack.c.b16 %v699, %v699
  %v764 = vpack.c.b16 %v700, %v700
  %vm829 = vcmask 257024
  %830 = vst.msk [vmem:[%s3] sm:$0xf] %vm829, %v701
  %831 = vst.msk [vmem:[%s3 + $0x4] sm:$0xf] %vm829, %v702
  %832 = vst.msk [vmem:[%s3 + $0x8] sm:$0xf] %vm829, %v703
  %833 = vst.msk [vmem:[%s3 + $0xc] sm:$0xf] %vm829, %v704
  %834 = vst.msk [vmem:[%s3 + $0x10] sm:$0xf] %vm829, %v705
  %835 = vst.msk [vmem:[%s3 + $0x14] sm:$0xf] %vm829, %v706
  %836 = vst.msk [vmem:[%s3 + $0x18] sm:$0xf] %vm829, %v707
  %837 = vst.msk [vmem:[%s3 + $0x1c] sm:$0xf] %vm829, %v708
  %838 = vst.msk [vmem:[%s3 + $0x20] sm:$0xf] %vm829, %v709
  %839 = vst.msk [vmem:[%s3 + $0x24] sm:$0xf] %vm829, %v710
  %840 = vst.msk [vmem:[%s3 + $0x28] sm:$0xf] %vm829, %v711
  %841 = vst.msk [vmem:[%s3 + $0x2c] sm:$0xf] %vm829, %v712
  %842 = vst.msk [vmem:[%s3 + $0x30] sm:$0xf] %vm829, %v713
  %843 = vst.msk [vmem:[%s3 + $0x34] sm:$0xf] %vm829, %v714
  %844 = vst.msk [vmem:[%s3 + $0x38] sm:$0xf] %vm829, %v715
  %845 = vst.msk [vmem:[%s3 + $0x3c] sm:$0xf] %vm829, %v716
  %846 = vst.msk [vmem:[%s3 + $0x40] sm:$0xf] %vm829, %v717
  %847 = vst.msk [vmem:[%s3 + $0x44] sm:$0xf] %vm829, %v718
  %848 = vst.msk [vmem:[%s3 + $0x48] sm:$0xf] %vm829, %v719
  %849 = vst.msk [vmem:[%s3 + $0x4c] sm:$0xf] %vm829, %v720
  %850 = vst.msk [vmem:[%s3 + $0x50] sm:$0xf] %vm829, %v721
  %851 = vst.msk [vmem:[%s3 + $0x54] sm:$0xf] %vm829, %v722
  %852 = vst.msk [vmem:[%s3 + $0x58] sm:$0xf] %vm829, %v723
  %853 = vst.msk [vmem:[%s3 + $0x5c] sm:$0xf] %vm829, %v724
  %854 = vst.msk [vmem:[%s3 + $0x60] sm:$0xf] %vm829, %v725
  %855 = vst.msk [vmem:[%s3 + $0x64] sm:$0xf] %vm829, %v726
  %856 = vst.msk [vmem:[%s3 + $0x68] sm:$0xf] %vm829, %v727
  %857 = vst.msk [vmem:[%s3 + $0x6c] sm:$0xf] %vm829, %v728
  %858 = vst.msk [vmem:[%s3 + $0x70] sm:$0xf] %vm829, %v729
  %859 = vst.msk [vmem:[%s3 + $0x74] sm:$0xf] %vm829, %v730
  %860 = vst.msk [vmem:[%s3 + $0x78] sm:$0xf] %vm829, %v731
  %861 = vst.msk [vmem:[%s3 + $0x7c] sm:$0xf] %vm829, %v732
  %862 = vst.msk [vmem:[%s3 + $0x80] sm:$0xf] %vm829, %v733
  %863 = vst.msk [vmem:[%s3 + $0x84] sm:$0xf] %vm829, %v734
  %864 = vst.msk [vmem:[%s3 + $0x88] sm:$0xf] %vm829, %v735
  %865 = vst.msk [vmem:[%s3 + $0x8c] sm:$0xf] %vm829, %v736
  %866 = vst.msk [vmem:[%s3 + $0x90] sm:$0xf] %vm829, %v737
  %867 = vst.msk [vmem:[%s3 + $0x94] sm:$0xf] %vm829, %v738
  %868 = vst.msk [vmem:[%s3 + $0x98] sm:$0xf] %vm829, %v739
  %869 = vst.msk [vmem:[%s3 + $0x9c] sm:$0xf] %vm829, %v740
  %870 = vst.msk [vmem:[%s3 + $0xa0] sm:$0xf] %vm829, %v741
  %871 = vst.msk [vmem:[%s3 + $0xa4] sm:$0xf] %vm829, %v742
  %872 = vst.msk [vmem:[%s3 + $0xa8] sm:$0xf] %vm829, %v743
  %873 = vst.msk [vmem:[%s3 + $0xac] sm:$0xf] %vm829, %v744
  %874 = vst.msk [vmem:[%s3 + $0xb0] sm:$0xf] %vm829, %v745
  %875 = vst.msk [vmem:[%s3 + $0xb4] sm:$0xf] %vm829, %v746
  %876 = vst.msk [vmem:[%s3 + $0xb8] sm:$0xf] %vm829, %v747
  %877 = vst.msk [vmem:[%s3 + $0xbc] sm:$0xf] %vm829, %v748
  %878 = vst.msk [vmem:[%s3 + $0xc0] sm:$0xf] %vm829, %v749
  %879 = vst.msk [vmem:[%s3 + $0xc4] sm:$0xf] %vm829, %v750
  %880 = vst.msk [vmem:[%s3 + $0xc8] sm:$0xf] %vm829, %v751
  %881 = vst.msk [vmem:[%s3 + $0xcc] sm:$0xf] %vm829, %v752
  %882 = vst.msk [vmem:[%s3 + $0xd0] sm:$0xf] %vm829, %v753
  %883 = vst.msk [vmem:[%s3 + $0xd4] sm:$0xf] %vm829, %v754
  %884 = vst.msk [vmem:[%s3 + $0xd8] sm:$0xf] %vm829, %v755
  %885 = vst.msk [vmem:[%s3 + $0xdc] sm:$0xf] %vm829, %v756
  %886 = vst.msk [vmem:[%s3 + $0xe0] sm:$0xf] %vm829, %v757
  %887 = vst.msk [vmem:[%s3 + $0xe4] sm:$0xf] %vm829, %v758
  %888 = vst.msk [vmem:[%s3 + $0xe8] sm:$0xf] %vm829, %v759
  %889 = vst.msk [vmem:[%s3 + $0xec] sm:$0xf] %vm829, %v760
  %890 = vst.msk [vmem:[%s3 + $0xf0] sm:$0xf] %vm829, %v761
  %891 = vst.msk [vmem:[%s3 + $0xf4] sm:$0xf] %vm829, %v762
  %892 = vst.msk [vmem:[%s3 + $0xf8] sm:$0xf] %vm829, %v763
  %893 = vst.msk [vmem:[%s3 + $0xfc] sm:$0xf] %vm829, %v764
  // Predicated region
  $region14: #{fwd.2} parent=0 // pred_check
    _
  $region15: #{fwd.2} parent=0 // pred_check_branch
    %895 = sbr.rel (0) target = $region17
  $region16: #{fwd.2} parent=0 // pred_region
    _
  $region17: #{fwd.2} parent=0 // pred_fallthru
    _
  // Predicated region
  $region18: #{fwd.2} parent=0 // pred_check
    _
  $region19: #{fwd.2} parent=0 // pred_check_branch
    %897 = sbr.rel (0) target = $region21
  $region20: #{fwd.2} parent=0 // pred_region
    _
  $region21: #{fwd.2} parent=0 // pred_fallthru
    _

// kernel: fwd.3
$region0: #{fwd.3}
  #allocation0 [shape = 'u32[]', space=smem, size = 0x4, offset = 0x4, fixed_abs, tag = 'smem constant byte address 0x4 - core index']
  #allocation1 [shape = 'u32[144,128]{1,0:T(1,128)}', space=vmem, size = 0x12000, scoped, tag = 'internal scratch']
  %s0 = inlined_call_operand.vmem [shape: bf16[2,18,18,32], index: 0, kind: input, shape index: {}]
  %s1 = inlined_call_operand.vmem [shape: bf16[9,32,64], index: 1, kind: input, shape index: {}]
  %s2 = inlined_call_operand.vmem [shape: f32[1,64], index: 2, kind: input, shape index: {}]
  %s3 = inlined_call_operand.hbm [shape: f32[2,256,64], index: 3, kind: output, shape index: {}]
  %s4 = sld [smem:[#allocation0]]
  $region45: #{fwd.3} parent=0
    _
  %s6 = ssub.s32 1, %s4
  %s7 = scalar_select 0, %s6, %s4
  $region1: #{fwd.3} parent=0
    #allocation2 [shape = 'u8[262144]{0}', space=vmem, size = 0x40000, scoped, tag = 'output window, operand 0']
    #allocation3 [shape = 's32[2]{0}', space=sflag, size = 0x8, scoped, tag = 'scoped memory for fwd.3']
    %8 = vsyncpa [#allocation3], 0
    %s9 = scalar_lea.sflag [#allocation3], 1
    %10 = vsyncpa %s9, 0
    loop: start=0, step=1, limit=4
    $region2: #{fwd.3} parent=1 // loop_pre_header
      _
    $region3: #{fwd.3} parent=1 // loop_header
      %s12 = sphi 0, %s16
      %p13 = scmp.ge.s32.totalorder %s12, 4
      %s19 = sphi 0, %s31
      %s20 = sphi 0, %s27
      %s21 = sphi 0, %s19
      %s22 = sphi 0, %s20
      %s23 = sphi 0, %s21
      %s24 = sphi 0, %s22
      %s34 = sphi 0, %s36
      %s37 = sphi 0, %s34
      %s38 = sphi 0, %s37
      %s54 = sphi 0, %s38
      %s60 = sphi 0, %s62
      %s63 = sphi 0, %s60
      %s64 = sphi 0, %s63
      %s80 = sphi 0, %s64
      %s86 = sphi 0, %s88
      %s89 = sphi 0, %s86
      %s90 = sphi 0, %s89
      %s106 = sphi 0, %s90
      %s114 = sphi 0, %s116
      %s117 = sphi 0, %s114
      %s118 = sphi 0, %s117
      %s134 = sphi 0, %s118
    $region4: #{fwd.3} parent=1 // loop_header_branch
      %15 = sbr.rel (%p13) target = $region8
    $region5: #{fwd.3} parent=1 // loop_body
      %s17 = ssub.s32 %s12, 1
      %s18 = ssub.s32 %s12, 2
      %s25 = sadd.s32 1, %s20
      %p26 = scmp.ge.s32.totalorder %s25, 1
      %s27 = scalar_select %p26, 0, %s25
      %s28 = sadd.s32 1, %s19
      %s29 = scalar_select %p26, %s28, %s19
      %p30 = scmp.ge.s32.totalorder %s29, 2
      %s31 = scalar_select %p30, 0, %s29
      %s32 = ssub.s32 %s19, %s31
      %p33 = scmp.eq.s32.totalorder %s32, 0
      %s35 = sadd.s32 %s34, 1
      %s36 = scalar_select %p33, %s34, %s35
      %p39 = pneg %p33
      %p40 = scmp.eq.s32.totalorder %s12, 1
      %p41 = por %p39, %p40
      %p42 = scmp.ne.s32.totalorder %s34, %s37
      %p43 = scmp.eq.s32.totalorder %s12, 0
      %p44 = por %p42, %p43
      %p45 = scmp.ne.s32.totalorder %s34, %s37
      %p46 = scmp.eq.s32.totalorder %s17, 1
      %p47 = por %p45, %p46
      %p48 = scmp.ne.s32.totalorder %s37, %s38
      %p49 = scmp.eq.s32.totalorder %s17, 0
      %p50 = por %p48, %p49
      %p51 = scmp.ne.s32.totalorder %s37, %s38
      %p52 = scmp.eq.s32.totalorder %s18, 1
      %p53 = por %p51, %p52
      %p55 = scmp.ne.s32.totalorder %s38, %s54
      %p56 = scmp.eq.s32.totalorder %s18, 0
      %p57 = por %p55, %p56
      %s58 = ssub.s32 %s20, %s27
      %p59 = scmp.eq.s32.totalorder %s58, 0
      %s61 = sadd.s32 %s60, 1
      %s62 = scalar_select %p59, %s60, %s61
      %p65 = pneg %p59
      %p66 = scmp.eq.s32.totalorder %s12, 1
      %p67 = por %p65, %p66
      %p68 = scmp.ne.s32.totalorder %s60, %s63
      %p69 = scmp.eq.s32.totalorder %s12, 0
      %p70 = por %p68, %p69
      %p71 = scmp.ne.s32.totalorder %s60, %s63
      %p72 = scmp.eq.s32.totalorder %s17, 1
      %p73 = por %p71, %p72
      %p74 = scmp.ne.s32.totalorder %s63, %s64
      %p75 = scmp.eq.s32.totalorder %s17, 0
      %p76 = por %p74, %p75
      %p77 = scmp.ne.s32.totalorder %s63, %s64
      %p78 = scmp.eq.s32.totalorder %s18, 1
      %p79 = por %p77, %p78
      %p81 = scmp.ne.s32.totalorder %s64, %s80
      %p82 = scmp.eq.s32.totalorder %s18, 0
      %p83 = por %p81, %p82
      %s84 = ssub.s32 %s20, %s27
      %p85 = scmp.eq.s32.totalorder %s84, 0
      %s87 = sadd.s32 %s86, 1
      %s88 = scalar_select %p85, %s86, %s87
      %p91 = pneg %p85
      %p92 = scmp.eq.s32.totalorder %s12, 1
      %p93 = por %p91, %p92
      %p94 = scmp.ne.s32.totalorder %s86, %s89
      %p95 = scmp.eq.s32.totalorder %s12, 0
      %p96 = por %p94, %p95
      %p97 = scmp.ne.s32.totalorder %s86, %s89
      %p98 = scmp.eq.s32.totalorder %s17, 1
      %p99 = por %p97, %p98
      %p100 = scmp.ne.s32.totalorder %s89, %s90
      %p101 = scmp.eq.s32.totalorder %s17, 0
      %p102 = por %p100, %p101
      %p103 = scmp.ne.s32.totalorder %s89, %s90
      %p104 = scmp.eq.s32.totalorder %s18, 1
      %p105 = por %p103, %p104
      %p107 = scmp.ne.s32.totalorder %s90, %s106
      %p108 = scmp.eq.s32.totalorder %s18, 0
      %p109 = por %p107, %p108
      %s110 = ssub.s32 %s19, %s31
      %s111 = ssub.s32 %s20, %s27
      %s112 = sor.u32 %s110, %s111
      %p113 = scmp.eq.s32.totalorder %s112, 0
      %s115 = sadd.s32 %s114, 1
      %s116 = scalar_select %p113, %s114, %s115
      %p119 = pneg %p113
      %p120 = scmp.eq.s32.totalorder %s12, 1
      %p121 = por %p119, %p120
      %p122 = scmp.ne.s32.totalorder %s114, %s117
      %p123 = scmp.eq.s32.totalorder %s12, 0
      %p124 = por %p122, %p123
      %p125 = scmp.ne.s32.totalorder %s114, %s117
      %p126 = scmp.eq.s32.totalorder %s17, 1
      %p127 = por %p125, %p126
      %p128 = scmp.ne.s32.totalorder %s117, %s118
      %p129 = scmp.eq.s32.totalorder %s17, 0
      %p130 = por %p128, %p129
      %p131 = scmp.ne.s32.totalorder %s117, %s118
      %p132 = scmp.eq.s32.totalorder %s18, 1
      %p133 = por %p131, %p132
      %p135 = scmp.ne.s32.totalorder %s118, %s134
      %p136 = scmp.eq.s32.totalorder %s18, 0
      %p137 = por %p135, %p136
      %p138 = scmp.le.s32.totalorder 1, %s12
      %p139 = scmp.lt.s32.totalorder %s12, 3
      %p140 = pnand %p138, %p139
      %p141 = pneg %p140
      // Predicated region
      $region9: #{fwd.3} parent=5 // pred_check
        _
      $region10: #{fwd.3} parent=5 // pred_check_branch
        %143 = sbr.rel (%p140) target = $region12
      $region11: #{fwd.3} parent=5 // pred_region
        %s144 = ssub.s32 %s12, 1
        // Predicated region
        $region13: #{fwd.3} parent=11 // pred_check
          %p145 = pneg %p76
        $region14: #{fwd.3} parent=11 // pred_check_branch
          %147 = sbr.rel (%p145) target = $region16
        $region15: #{fwd.3} parent=11 // pred_region
          %p148 = scmp.lt.s32.totalorder %s22, 0
          %s149 = scalar_select %p148, %s22, 0
          %s150 = smul.addr %s149, 4
          %s151 = scalar_lea.vmem %s1, %s150
        $region16: #{fwd.3} parent=11 // pred_fallthru
          _
        // Predicated region
        $region17: #{fwd.3} parent=11 // pred_check
          %p152 = pneg %p102
        $region18: #{fwd.3} parent=11 // pred_check_branch
          %154 = sbr.rel (%p152) target = $region20
        $region19: #{fwd.3} parent=11 // pred_region
          %p155 = scmp.lt.s32.totalorder %s22, 0
          %s156 = scalar_select %p155, %s22, 0
          %s157 = scalar_lea.vmem %s2, %s156
        $region20: #{fwd.3} parent=11 // pred_fallthru
          _
      $region12: #{fwd.3} parent=5 // pred_fallthru
        _
      %p158 = scmp.lt.s32.totalorder %s12, 2
      // Predicated region
      $region21: #{fwd.3} parent=5 // pred_check
        %p159 = pneg %p158
      $region22: #{fwd.3} parent=5 // pred_check_branch
        %161 = sbr.rel (%p159) target = $region24
      $region23: #{fwd.3} parent=5 // pred_region
        // Predicated region
        $region25: #{fwd.3} parent=23 // pred_check
          %p162 = pneg %p44
        $region26: #{fwd.3} parent=23 // pred_check_branch
          %164 = sbr.rel (%p162) target = $region28
        $region27: #{fwd.3} parent=23 // pred_region
          %p165 = scmp.lt.s32.totalorder %s19, 1
          %s166 = scalar_select %p165, %s19, 1
          %s167 = smul.addr %s166, 54
          %s168 = smul.addr %s167, 4
          %s169 = scalar_lea.vmem %s0, %s168
        $region28: #{fwd.3} parent=23 // pred_fallthru
          _
      $region24: #{fwd.3} parent=5 // pred_fallthru
        _
      %p170 = scmp.le.s32.totalorder 1, %s12
      %p171 = scmp.lt.s32.totalorder %s12, 3
      %p172 = pnand %p170, %p171
      %p173 = pneg %p172
      // Predicated region
      $region29: #{fwd.3} parent=5 // pred_check
        _
      $region30: #{fwd.3} parent=5 // pred_check_branch
        %175 = sbr.rel (%p172) target = $region32
      $region31: #{fwd.3} parent=5 // pred_region
        %s176 = ssub.s32 %s12, 1
        %p177 = scmp.lt.s32.totalorder %s21, 1
        %s178 = scalar_select %p177, %s21, 1
        %s179 = smul.addr %s178, 54
        %s180 = smul.addr %s179, 4
        %s181 = scalar_lea.vmem %s0, %s180
        %p182 = pneg %p50
        %p183 = pneg %p47
        %p184 = scmp.lt.s32.totalorder %s22, 0
        %s185 = scalar_select %p184, %s22, 0
        %s186 = smul.addr %s185, 4
        %s187 = scalar_lea.vmem %s1, %s186
        %p188 = pneg %p76
        %p189 = pneg %p73
        %p190 = scmp.lt.s32.totalorder %s22, 0
        %s191 = scalar_select %p190, %s22, 0
        %s192 = scalar_lea.vmem %s2, %s191
        %p193 = pneg %p102
        %p194 = pneg %p99
        %p195 = pneg %p130
        %p196 = pneg %p127
        %s197 = sand.u32 %s117, 1
        %s198 = scalar_lea.sflag [#allocation3], %s197
        %s199 = sand.u32 %s117, 1
        %s200 = smul.addr %s199, 256
        %s201 = scalar_lea.vmem [#allocation2], %s200
        %p202 = scmp.lt.s32.totalorder %s21, 1
        %s203 = scalar_select %p202, %s21, 1
        %s204 = smul.addr %s203, 54
        %s205 = smul.addr %s204, 4
        %s206 = scalar_lea.vmem %s0, %s205
        %p207 = scmp.lt.s32.totalorder %s22, 0
        %s208 = scalar_select %p207, %s22, 0
        %s209 = smul.addr %s208, 4
        %s210 = scalar_lea.vmem %s1, %s209
        %p211 = scmp.lt.s32.totalorder %s22, 0
        %s212 = scalar_select %p211, %s22, 0
        %s213 = scalar_lea.vmem %s2, %s212
        %v215 = vld [vmem:[%s206] sm:$0xf]
        %v216 = vld [vmem:[%s206 + $0x4] sm:$0xf]
        %v217 = vld [vmem:[%s206 + $0xc] sm:$0xf]
        %v218 = vld [vmem:[%s206 + $0x10] sm:$0xf]
        %v219 = vld [vmem:[%s206 + $0x18] sm:$0xf]
        %v220 = vld [vmem:[%s206 + $0x1c] sm:$0xf]
        %v221 = vld [vmem:[%s206 + $0x24] sm:$0xf]
        %v222 = vld [vmem:[%s206 + $0x28] sm:$0xf]
        %v223 = vld [vmem:[%s206 + $0x30] sm:$0xf]
        %v224 = vld [vmem:[%s206 + $0x34] sm:$0xf]
        %v225 = vld [vmem:[%s206 + $0x3c] sm:$0xf]
        %v226 = vld [vmem:[%s206 + $0x40] sm:$0xf]
        %v227 = vld [vmem:[%s206 + $0x48] sm:$0xf]
        %v228 = vld [vmem:[%s206 + $0x4c] sm:$0xf]
        %v229 = vld [vmem:[%s206 + $0x54] sm:$0xf]
        %v230 = vld [vmem:[%s206 + $0x58] sm:$0xf]
        %v231 = vld [vmem:[%s206 + $0x60] sm:$0xf]
        %v232 = vld [vmem:[%s206 + $0x64] sm:$0xf]
        %v233 = vld [vmem:[%s206 + $0x6c] sm:$0xf]
        %v234 = vld [vmem:[%s206 + $0x70] sm:$0xf]
        %v235 = vld [vmem:[%s206 + $0x78] sm:$0xf]
        %v236 = vld [vmem:[%s206 + $0x7c] sm:$0xf]
        %v237 = vld [vmem:[%s206 + $0x84] sm:$0xf]
        %v238 = vld [vmem:[%s206 + $0x88] sm:$0xf]
        %v239 = vld [vmem:[%s206 + $0x90] sm:$0xf]
        %v240 = vld [vmem:[%s206 + $0x94] sm:$0xf]
        %v241 = vld [vmem:[%s206 + $0x9c] sm:$0xf]
        %v242 = vld [vmem:[%s206 + $0xa0] sm:$0xf]
        %v243 = vld [vmem:[%s206 + $0xa8] sm:$0xf]
        %v244 = vld [vmem:[%s206 + $0xac] sm:$0xf]
        %v245 = vld [vmem:[%s206 + $0xb4] sm:$0xf]
        %v246 = vld [vmem:[%s206 + $0xb8] sm:$0xf]
        %v247 = vld [vmem:[%s210] sm:$0xf]
        %v248 = vld [vmem:[%s210 + $0x4] sm:$0xf]
        %v249 = vld [vmem:[%s210 + $0x8] sm:$0xf]
        %v250 = vld [vmem:[%s210 + $0xc] sm:$0xf]
        %v251 = vld [vmem:[%s206 + $0x8] sm:$0x1]
        %v252 = vld [vmem:[%s206 + $0x14] sm:$0x1]
        %v253 = vld [vmem:[%s206 + $0x20] sm:$0x1]
        %v254 = vld [vmem:[%s206 + $0x2c] sm:$0x1]
        %v255 = vld [vmem:[%s206 + $0x38] sm:$0x1]
        %v256 = vld [vmem:[%s206 + $0x44] sm:$0x1]
        %v257 = vld [vmem:[%s206 + $0x50] sm:$0x1]
        %v258 = vld [vmem:[%s206 + $0x5c] sm:$0x1]
        %v259 = vld [vmem:[%s206 + $0x68] sm:$0x1]
        %v260 = vld [vmem:[%s206 + $0x74] sm:$0x1]
        %v261 = vld [vmem:[%s206 + $0x80] sm:$0x1]
        %v262 = vld [vmem:[%s206 + $0x8c] sm:$0x1]
        %v263 = vld [vmem:[%s206 + $0x98] sm:$0x1]
        %v264 = vld [vmem:[%s206 + $0xa4] sm:$0x1]
        %v265 = vld [vmem:[%s206 + $0xb0] sm:$0x1]
        %v266 = vld [vmem:[%s206 + $0xbc] sm:$0x1]
        %vm267 = vsmask.f32 3328
        %vm268 = vsmask.f32 7440
        %vm269 = vmor %vm267, %vm268
        %v271 = vshrl.u32 %v215, 16
        %v273 = vrot.slane %v271, 4
        %v274 = vshll.u32 %v215, 16
        %v276 = vrot.slane %v274, 5
        %v277 = vor.u32 %v273, %v276
        %v278 = vrot.slane %v277, 4
        %v280 = vshll.u32 %v216, 16
        %v282 = vrot.slane %v280, 5
        %v283 = vsel %vm269, %v278, %v282
        %v284 = vshrl.u32 %v216, 16
        %v286 = vrot.slane %v284, 4
        %v287 = vor.u32 %v286, %v282
        %v288 = vrot.slane %v287, 4
        %v290 = vshll.u32 %v251, 16
        %v292 = vrot.slane %v290, 5
        %v293 = vsel %vm269, %v288, %v292
        %v295 = vshrl.u32 %v217, 16
        %v297 = vrot.slane %v295, 4
        %v298 = vshll.u32 %v217, 16
        %v300 = vrot.slane %v298, 5
        %v301 = vor.u32 %v297, %v300
        %v302 = vrot.slane %v301, 4
        %v304 = vshll.u32 %v218, 16
        %v306 = vrot.slane %v304, 5
        %v307 = vsel %vm269, %v302, %v306
        %v308 = vshrl.u32 %v218, 16
        %v310 = vrot.slane %v308, 4
        %v311 = vor.u32 %v310, %v306
        %v312 = vrot.slane %v311, 4
        %v314 = vshll.u32 %v252, 16
        %v316 = vrot.slane %v314, 5
        %v317 = vsel %vm269, %v312, %v316
        %v319 = vshrl.u32 %v219, 16
        %v321 = vrot.slane %v319, 4
        %v322 = vshll.u32 %v219, 16
        %v324 = vrot.slane %v322, 5
        %v325 = vor.u32 %v321, %v324
        %v326 = vrot.slane %v325, 4
        %v328 = vshll.u32 %v220, 16
        %v330 = vrot.slane %v328, 5
        %v331 = vsel %vm269, %v326, %v330
        %v332 = vshrl.u32 %v220, 16
        %v334 = vrot.slane %v332, 4
        %v335 = vor.u32 %v334, %v330
        %v336 = vrot.slane %v335, 4
        %v338 = vshll.u32 %v253, 16
        %v340 = vrot.slane %v338, 5
        %v341 = vsel %vm269, %v336, %v340
        %v343 = vshrl.u32 %v221, 16
        %v345 = vrot.slane %v343, 4
        %v346 = vshll.u32 %v221, 16
        %v348 = vrot.slane %v346, 5
        %v349 = vor.u32 %v345, %v348
        %v350 = vrot.slane %v349, 4
        %v352 = vshll.u32 %v222, 16
        %v354 = vrot.slane %v352, 5
        %v355 = vsel %vm269, %v350, %v354
        %v356 = vshrl.u32 %v222, 16
        %v358 = vrot.slane %v356, 4
        %v359 = vor.u32 %v358, %v354
        %v360 = vrot.slane %v359, 4
        %v362 = vshll.u32 %v254, 16
        %v364 = vrot.slane %v362, 5
        %v365 = vsel %vm269, %v360, %v364
        %v367 = vshrl.u32 %v223, 16
        %v369 = vrot.slane %v367, 4
        %v370 = vshll.u32 %v223, 16
        %v372 = vrot.slane %v370, 5
        %v373 = vor.u32 %v369, %v372
        %v374 = vrot.slane %v373, 4
        %v376 = vshll.u32 %v224, 16
        %v378 = vrot.slane %v376, 5
        %v379 = vsel %vm269, %v374, %v378
        %v380 = vshrl.u32 %v224, 16
        %v382 = vrot.slane %v380, 4
        %v383 = vor.u32 %v382, %v378
        %v384 = vrot.slane %v383, 4
        %v386 = vshll.u32 %v255, 16
        %v388 = vrot.slane %v386, 5
        %v389 = vsel %vm269, %v384, %v388
        %v391 = vshrl.u32 %v225, 16
        %v393 = vrot.slane %v391, 4
        %v394 = vshll.u32 %v225, 16
        %v396 = vrot.slane %v394, 5
        %v397 = vor.u32 %v393, %v396
        %v398 = vrot.slane %v397, 4
        %v400 = vshll.u32 %v226, 16
        %v402 = vrot.slane %v400, 5
        %v403 = vsel %vm269, %v398, %v402
        %v404 = vshrl.u32 %v226, 16
        %v406 = vrot.slane %v404, 4
        %v407 = vor.u32 %v406, %v402
        %v408 = vrot.slane %v407, 4
        %v410 = vshll.u32 %v256, 16
        %v412 = vrot.slane %v410, 5
        %v413 = vsel %vm269, %v408, %v412
        %v415 = vshrl.u32 %v227, 16
        %v417 = vrot.slane %v415, 4
        %v418 = vshll.u32 %v227, 16
        %v420 = vrot.slane %v418, 5
        %v421 = vor.u32 %v417, %v420
        %v422 = vrot.slane %v421, 4
        %v424 = vshll.u32 %v228, 16
        %v426 = vrot.slane %v424, 5
        %v427 = vsel %vm269, %v422, %v426
        %v428 = vshrl.u32 %v228, 16
        %v430 = vrot.slane %v428, 4
        %v431 = vor.u32 %v430, %v426
        %v432 = vrot.slane %v431, 4
        %v434 = vshll.u32 %v257, 16
        %v436 = vrot.slane %v434, 5
        %v437 = vsel %vm269, %v432, %v436
        %v439 = vshrl.u32 %v229, 16
        %v441 = vrot.slane %v439, 4
        %v442 = vshll.u32 %v229, 16
        %v444 = vrot.slane %v442, 5
        %v445 = vor.u32 %v441, %v444
        %v446 = vrot.slane %v445, 4
        %v448 = vshll.u32 %v230, 16
        %v450 = vrot.slane %v448, 5
        %v451 = vsel %vm269, %v446, %v450
        %v452 = vshrl.u32 %v230, 16
        %v454 = vrot.slane %v452, 4
        %v455 = vor.u32 %v454, %v450
        %v456 = vrot.slane %v455, 4
        %v458 = vshll.u32 %v258, 16
        %v460 = vrot.slane %v458, 5
        %v461 = vsel %vm269, %v456, %v460
        %v463 = vshrl.u32 %v231, 16
        %v465 = vrot.slane %v463, 4
        %v466 = vshll.u32 %v231, 16
        %v468 = vrot.slane %v466, 5
        %v469 = vor.u32 %v465, %v468
        %v470 = vrot.slane %v469, 4
        %v472 = vshll.u32 %v232, 16
        %v474 = vrot.slane %v472, 5
        %v475 = vsel %vm269, %v470, %v474
        %v476 = vshrl.u32 %v232, 16
        %v478 = vrot.slane %v476, 4
        %v479 = vor.u32 %v478, %v474
        %v480 = vrot.slane %v479, 4
        %v482 = vshll.u32 %v259, 16
        %v484 = vrot.slane %v482, 5
        %v485 = vsel %vm269, %v480, %v484
        %v487 = vshrl.u32 %v233, 16
        %v489 = vrot.slane %v487, 4
        %v490 = vshll.u32 %v233, 16
        %v492 = vrot.slane %v490, 5
        %v493 = vor.u32 %v489, %v492
        %v494 = vrot.slane %v493, 4
        %v496 = vshll.u32 %v234, 16
        %v498 = vrot.slane %v496, 5
        %v499 = vsel %vm269, %v494, %v498
        %v500 = vshrl.u32 %v234, 16
        %v502 = vrot.slane %v500, 4
        %v503 = vor.u32 %v502, %v498
        %v504 = vrot.slane %v503, 4
        %v506 = vshll.u32 %v260, 16
        %v508 = vrot.slane %v506, 5
        %v509 = vsel %vm269, %v504, %v508
        %v511 = vshrl.u32 %v235, 16
        %v513 = vrot.slane %v511, 4
        %v514 = vshll.u32 %v235, 16
        %v516 = vrot.slane %v514, 5
        %v517 = vor.u32 %v513, %v516
        %v518 = vrot.slane %v517, 4
        %v520 = vshll.u32 %v236, 16
        %v522 = vrot.slane %v520, 5
        %v523 = vsel %vm269, %v518, %v522
        %v524 = vshrl.u32 %v236, 16
        %v526 = vrot.slane %v524, 4
        %v527 = vor.u32 %v526, %v522
        %v528 = vrot.slane %v527, 4
        %v530 = vshll.u32 %v261, 16
        %v532 = vrot.slane %v530, 5
        %v533 = vsel %vm269, %v528, %v532
        %v535 = vshrl.u32 %v237, 16
        %v537 = vrot.slane %v535, 4
        %v538 = vshll.u32 %v237, 16
        %v540 = vrot.slane %v538, 5
        %v541 = vor.u32 %v537, %v540
        %v542 = vrot.slane %v541, 4
        %v544 = vshll.u32 %v238, 16
        %v546 = vrot.slane %v544, 5
        %v547 = vsel %vm269, %v542, %v546
        %v548 = vshrl.u32 %v238, 16
        %v550 = vrot.slane %v548, 4
        %v551 = vor.u32 %v550, %v546
        %v552 = vrot.slane %v551, 4
        %v554 = vshll.u32 %v262, 16
        %v556 = vrot.slane %v554, 5
        %v557 = vsel %vm269, %v552, %v556
        %v559 = vshrl.u32 %v239, 16
        %v561 = vrot.slane %v559, 4
        %v562 = vshll.u32 %v239, 16
        %v564 = vrot.slane %v562, 5
        %v565 = vor.u32 %v561, %v564
        %v566 = vrot.slane %v565, 4
        %v568 = vshll.u32 %v240, 16
        %v570 = vrot.slane %v568, 5
        %v571 = vsel %vm269, %v566, %v570
        %v572 = vshrl.u32 %v240, 16
        %v574 = vrot.slane %v572, 4
        %v575 = vor.u32 %v574, %v570
        %v576 = vrot.slane %v575, 4
        %v578 = vshll.u32 %v263, 16
        %v580 = vrot.slane %v578, 5
        %v581 = vsel %vm269, %v576, %v580
        %v583 = vshrl.u32 %v241, 16
        %v585 = vrot.slane %v583, 4
        %v586 = vshll.u32 %v241, 16
        %v588 = vrot.slane %v586, 5
        %v589 = vor.u32 %v585, %v588
        %v590 = vrot.slane %v589, 4
        %v592 = vshll.u32 %v242, 16
        %v594 = vrot.slane %v592, 5
        %v595 = vsel %vm269, %v590, %v594
        %v596 = vshrl.u32 %v242, 16
        %v598 = vrot.slane %v596, 4
        %v599 = vor.u32 %v598, %v594
        %v600 = vrot.slane %v599, 4
        %v602 = vshll.u32 %v264, 16
        %v604 = vrot.slane %v602, 5
        %v605 = vsel %vm269, %v600, %v604
        %v607 = vshrl.u32 %v243, 16
        %v609 = vrot.slane %v607, 4
        %v610 = vshll.u32 %v243, 16
        %v612 = vrot.slane %v610, 5
        %v613 = vor.u32 %v609, %v612
        %v614 = vrot.slane %v613, 4
        %v616 = vshll.u32 %v244, 16
        %v618 = vrot.slane %v616, 5
        %v619 = vsel %vm269, %v614, %v618
        %v620 = vshrl.u32 %v244, 16
        %v622 = vrot.slane %v620, 4
        %v623 = vor.u32 %v622, %v618
        %v624 = vrot.slane %v623, 4
        %v626 = vshll.u32 %v265, 16
        %v628 = vrot.slane %v626, 5
        %v629 = vsel %vm269, %v624, %v628
        %v631 = vshrl.u32 %v245, 16
        %v633 = vrot.slane %v631, 4
        %v634 = vshll.u32 %v245, 16
        %v636 = vrot.slane %v634, 5
        %v637 = vor.u32 %v633, %v636
        %v638 = vrot.slane %v637, 4
        %v640 = vshll.u32 %v246, 16
        %v642 = vrot.slane %v640, 5
        %v643 = vsel %vm269, %v638, %v642
        %v644 = vshrl.u32 %v246, 16
        %v646 = vrot.slane %v644, 4
        %v647 = vor.u32 %v646, %v642
        %v648 = vrot.slane %v647, 4
        %v650 = vshll.u32 %v266, 16
        %v652 = vrot.slane %v650, 5
        %v653 = vsel %vm269, %v648, %v652
        %s654 = scalar_lea.vmem %s210, 16
        %v655 = vld [vmem:[%s654] sm:$0xf]
        %v656 = vld [vmem:[%s654 + $0x4] sm:$0xf]
        %v657 = vld [vmem:[%s654 + $0x8] sm:$0xf]
        %v658 = vld [vmem:[%s654 + $0xc] sm:$0xf]
        %v659 = vunpack.c.l.b16 %v283
        %v660 = vunpack.c.l.b16 %v293
        %v661 = vunpack.c.l.b16 %v307
        %v662 = vunpack.c.l.b16 %v317
        %v663 = vunpack.c.l.b16 %v331
        %v664 = vunpack.c.l.b16 %v341
        %v665 = vunpack.c.l.b16 %v355
        %v666 = vunpack.c.l.b16 %v365
        %v667 = vunpack.c.l.b16 %v379
        %v668 = vunpack.c.l.b16 %v389
        %v669 = vunpack.c.l.b16 %v403
        %v670 = vunpack.c.l.b16 %v413
        %v671 = vunpack.c.l.b16 %v427
        %v672 = vunpack.c.l.b16 %v437
        %v673 = vunpack.c.l.b16 %v451
        %v674 = vunpack.c.l.b16 %v461
        %v675 = vunpack.c.l.b16 %v475
        %v676 = vunpack.c.l.b16 %v485
        %v677 = vunpack.c.l.b16 %v499
        %v678 = vunpack.c.l.b16 %v509
        %v679 = vunpack.c.l.b16 %v523
        %v680 = vunpack.c.l.b16 %v533
        %v681 = vunpack.c.l.b16 %v547
        %v682 = vunpack.c.l.b16 %v557
        %v683 = vunpack.c.l.b16 %v571
        %v684 = vunpack.c.l.b16 %v581
        %v685 = vunpack.c.l.b16 %v595
        %v686 = vunpack.c.l.b16 %v605
        %v687 = vunpack.c.l.b16 %v619
        %v688 = vunpack.c.l.b16 %v629
        %v689 = vunpack.c.l.b16 %v643
        %v690 = vunpack.c.l.b16 %v653
        %v691 = vpack.c.b16 %v660, %v659
        %v692 = vpack.c.b16 %v662, %v661
        %v693 = vpack.c.b16 %v664, %v663
        %v694 = vpack.c.b16 %v666, %v665
        %v695 = vpack.c.b16 %v668, %v667
        %v696 = vpack.c.b16 %v670, %v669
        %v697 = vpack.c.b16 %v672, %v671
        %v698 = vpack.c.b16 %v674, %v673
        %v699 = vpack.c.b16 %v676, %v675
        %v700 = vpack.c.b16 %v678, %v677
        %v701 = vpack.c.b16 %v680, %v679
        %v702 = vpack.c.b16 %v682, %v681
        %v703 = vpack.c.b16 %v684, %v683
        %v704 = vpack.c.b16 %v686, %v685
        %v705 = vpack.c.b16 %v688, %v687
        %v706 = vpack.c.b16 %v690, %v689
        %v711 = vunpack.c.l.b16 %v655
        %v712 = vunpack.c.l.b16 %v656
        %v713 = vunpack.c.l.b16 %v657
        %v714 = vunpack.c.l.b16 %v658
        %v715 = vpack.c.b16 %v712, %v711
        %v716 = vpack.c.b16 %v714, %v713
        %vm719 = vcmask 261120
        %v721 = vsel %vm719, %v691, 0
        %v724 = vsel %vm719, %v692, 0
        %v727 = vsel %vm719, %v693, 0
        %v730 = vsel %vm719, %v694, 0
        %v733 = vsel %vm719, %v695, 0
        %v736 = vsel %vm719, %v696, 0
        %v739 = vsel %vm719, %v697, 0
        %v742 = vsel %vm719, %v698, 0
        %v745 = vsel %vm719, %v699, 0
        %v748 = vsel %vm719, %v700, 0
        %v751 = vsel %vm719, %v701, 0
        %v754 = vsel %vm719, %v702, 0
        %v757 = vsel %vm719, %v703, 0
        %v760 = vsel %vm719, %v704, 0
        %v763 = vsel %vm719, %v705, 0
        %v766 = vsel %vm719, %v706, 0
        %768 = vmatprep.subr.bf16.mxu0 0
        %769 = vmatpush1.bf16.msra.mxu0 %v715
        %770 = vmatprep.subr.bf16.mxu0 0
        %771 = vmatpush1.bf16.msra.mxu0 %v716
        %772 = vmatprep.subr.bf16.mxu0 0
        %773 = vmatpush1.bf16.msra.mxu0 0
        %774 = vmatprep.subr.bf16.mxu0 0
        %775 = vmatpush1.bf16.msra.mxu0 0
        %776 = vmatprep.subr.bf16.mxu0 0
        %777 = vmatpush1.bf16.msra.mxu0 0
        %778 = vmatprep.subr.bf16.mxu0 0
        %779 = vmatpush1.bf16.msra.mxu0 0
        %780 = vmatprep.subr.bf16.mxu0 0
        %781 = vmatpush1.bf16.msra.mxu0 0
        %782 = vmatprep.subr.bf16.mxu0 0
        %783 = vmatpush1.bf16.msra.mxu0 0
        %784 = vmatprep.subr.bf16.mxu0 0
        %785 = vmatpush1.bf16.msra.mxu0 0
        %786 = vmatprep.subr.bf16.mxu0 0
        %787 = vmatpush1.bf16.msra.mxu0 0
        %788 = vmatprep.subr.bf16.mxu0 0
        %789 = vmatpush1.bf16.msra.mxu0 0
        %790 = vmatprep.subr.bf16.mxu0 0
        %791 = vmatpush1.bf16.msra.mxu0 0
        %792 = vmatprep.subr.bf16.mxu0 0
        %793 = vmatpush1.bf16.msra.mxu0 0
        %794 = vmatprep.subr.bf16.mxu0 0
        %795 = vmatpush1.bf16.msra.mxu0 0
        %796 = vmatprep.subr.bf16.mxu0 0
        %797 = vmatpush1.bf16.msra.mxu0 0
        %798 = vmatprep.subr.bf16.mxu0 0
        %799 = vmatpush1.bf16.msra.mxu0 0
        %800 = vmatprep.mubr.bf16.mxu0 0
        %801 = vmatmul.mubr.bf16.gmra.mrb[0].mxu0 %v721
        %v802 = vpop.f32.mrb[0].mxu0
        %v803 = vadd.f32 0.0, %v802
        %v804 = vpop.f32.mrb[0].mxu0
        %v805 = vpop.f32.mrb[0].mxu0
        %v806 = vadd.f32 0.0, %v805
        %v807 = vpop.f32.mrb[0].mxu0
        %808 = vmatprep.mubr.bf16.mxu0 0
        %809 = vmatmul.mubr.bf16.gmra.mrb[0].mxu0 %v724
        %v810 = vpop.f32.mrb[0].mxu0
        %v811 = vadd.f32 0.0, %v810
        %v812 = vpop.f32.mrb[0].mxu0
        %v813 = vpop.f32.mrb[0].mxu0
        %v814 = vadd.f32 0.0, %v813
        %v815 = vpop.f32.mrb[0].mxu0
        %816 = vmatprep.mubr.bf16.mxu0 0
        %817 = vmatmul.mubr.bf16.gmra.mrb[0].mxu0 %v727
        %v818 = vpop.f32.mrb[0].mxu0
        %v819 = vadd.f32 0.0, %v818
        %v820 = vpop.f32.mrb[0].mxu0
        %v821 = vpop.f32.mrb[0].mxu0
        %v822 = vadd.f32 0.0, %v821
        %v823 = vpop.f32.mrb[0].mxu0
        %824 = vmatprep.mubr.bf16.mxu0 0
        %825 = vmatmul.mubr.bf16.gmra.mrb[0].mxu0 %v730
        %v826 = vpop.f32.mrb[0].mxu0
        %v827 = vadd.f32 0.0, %v826
        %v828 = vpop.f32.mrb[0].mxu0
        %v829 = vpop.f32.mrb[0].mxu0
        %v830 = vadd.f32 0.0, %v829
        %v831 = vpop.f32.mrb[0].mxu0
        %832 = vmatprep.mubr.bf16.mxu0 0
        %833 = vmatmul.mubr.bf16.gmra.mrb[0].mxu0 %v733
        %v834 = vpop.f32.mrb[0].mxu0
        %v835 = vadd.f32 0.0, %v834
        %v836 = vpop.f32.mrb[0].mxu0
        %v837 = vpop.f32.mrb[0].mxu0
        %v838 = vadd.f32 0.0, %v837
        %v839 = vpop.f32.mrb[0].mxu0
        %840 = vmatprep.mubr.bf16.mxu0 0
        %841 = vmatmul.mubr.bf16.gmra.mrb[0].mxu0 %v736
        %v842 = vpop.f32.mrb[0].mxu0
        %v843 = vadd.f32 0.0, %v842
        %v844 = vpop.f32.mrb[0].mxu0
        %v845 = vpop.f32.mrb[0].mxu0
        %v846 = vadd.f32 0.0, %v845
        %v847 = vpop.f32.mrb[0].mxu0
        %848 = vmatprep.mubr.bf16.mxu0 0
        %849 = vmatmul.mubr.bf16.gmra.mrb[0].mxu0 %v739
        %v850 = vpop.f32.mrb[0].mxu0
        %v851 = vadd.f32 0.0, %v850
        %v852 = vpop.f32.mrb[0].mxu0
        %v853 = vpop.f32.mrb[0].mxu0
        %v854 = vadd.f32 0.0, %v853
        %v855 = vpop.f32.mrb[0].mxu0
        %856 = vmatprep.mubr.bf16.mxu0 0
        %857 = vmatmul.mubr.bf16.gmra.mrb[0].mxu0 %v742
        %v858 = vpop.f32.mrb[0].mxu0
        %v859 = vadd.f32 0.0, %v858
        %v860 = vpop.f32.mrb[0].mxu0
        %v861 = vpop.f32.mrb[0].mxu0
        %v862 = vadd.f32 0.0, %v861
        %v863 = vpop.f32.mrb[0].mxu0
        %864 = vmatprep.mubr.bf16.mxu0 0
        %865 = vmatmul.mubr.bf16.gmra.mrb[0].mxu0 %v745
        %v866 = vpop.f32.mrb[0].mxu0
        %v867 = vadd.f32 0.0, %v866
        %v868 = vpop.f32.mrb[0].mxu0
        %v869 = vpop.f32.mrb[0].mxu0
        %v870 = vadd.f32 0.0, %v869
        %v871 = vpop.f32.mrb[0].mxu0
        %872 = vmatprep.mubr.bf16.mxu0 0
        %873 = vmatmul.mubr.bf16.gmra.mrb[0].mxu0 %v748
        %v874 = vpop.f32.mrb[0].mxu0
        %v875 = vadd.f32 0.0, %v874
        %v876 = vpop.f32.mrb[0].mxu0
        %v877 = vpop.f32.mrb[0].mxu0
        %v878 = vadd.f32 0.0, %v877
        %v879 = vpop.f32.mrb[0].mxu0
        %880 = vmatprep.mubr.bf16.mxu0 0
        %881 = vmatmul.mubr.bf16.gmra.mrb[0].mxu0 %v751
        %v882 = vpop.f32.mrb[0].mxu0
        %v883 = vadd.f32 0.0, %v882
        %v884 = vpop.f32.mrb[0].mxu0
        %v885 = vpop.f32.mrb[0].mxu0
        %v886 = vadd.f32 0.0, %v885
        %v887 = vpop.f32.mrb[0].mxu0
        %888 = vmatprep.mubr.bf16.mxu0 0
        %889 = vmatmul.mubr.bf16.gmra.mrb[0].mxu0 %v754
        %v890 = vpop.f32.mrb[0].mxu0
        %v891 = vadd.f32 0.0, %v890
        %v892 = vpop.f32.mrb[0].mxu0
        %v893 = vpop.f32.mrb[0].mxu0
        %v894 = vadd.f32 0.0, %v893
        %v895 = vpop.f32.mrb[0].mxu0
        %896 = vmatprep.mubr.bf16.mxu0 0
        %897 = vmatmul.mubr.bf16.gmra.mrb[0].mxu0 %v757
        %v898 = vpop.f32.mrb[0].mxu0
        %v899 = vadd.f32 0.0, %v898
        %v900 = vpop.f32.mrb[0].mxu0
        %v901 = vpop.f32.mrb[0].mxu0
        %v902 = vadd.f32 0.0, %v901
        %v903 = vpop.f32.mrb[0].mxu0
        %904 = vmatprep.mubr.bf16.mxu0 0
        %905 = vmatmul.mubr.bf16.gmra.mrb[0].mxu0 %v760
        %v906 = vpop.f32.mrb[0].mxu0
        %v907 = vadd.f32 0.0, %v906
        %v908 = vpop.f32.mrb[0].mxu0
        %v909 = vpop.f32.mrb[0].mxu0
        %v910 = vadd.f32 0.0, %v909
        %v911 = vpop.f32.mrb[0].mxu0
        %912 = vmatprep.mubr.bf16.mxu0 0
        %913 = vmatmul.mubr.bf16.gmra.mrb[0].mxu0 %v763
        %v914 = vpop.f32.mrb[0].mxu0
        %v915 = vadd.f32 0.0, %v914
        %v916 = vpop.f32.mrb[0].mxu0
        %v917 = vpop.f32.mrb[0].mxu0
        %v918 = vadd.f32 0.0, %v917
        %v919 = vpop.f32.mrb[0].mxu0
        %920 = vmatprep.mubr.bf16.mxu0 0
        %921 = vmatmul.mubr.bf16.gmra.mrb[0].mxu0 %v766
        %v922 = vpop.f32.mrb[0].mxu0
        %v923 = vadd.f32 0.0, %v922
        %v924 = vpop.f32.mrb[0].mxu0
        %v925 = vpop.f32.mrb[0].mxu0
        %v926 = vadd.f32 0.0, %v925
        %v927 = vpop.f32.mrb[0].mxu0
        %928 = vdwg.mxu0
        %v961 = vunpack.c.l.b16 %v215
        %v962 = vunpack.c.l.b16 %v216
        %v963 = vunpack.c.l.b16 %v217
        %v964 = vunpack.c.l.b16 %v218
        %v965 = vunpack.c.l.b16 %v219
        %v966 = vunpack.c.l.b16 %v220
        %v967 = vunpack.c.l.b16 %v221
        %v968 = vunpack.c.l.b16 %v222
        %v969 = vunpack.c.l.b16 %v223
        %v970 = vunpack.c.l.b16 %v224
        %v971 = vunpack.c.l.b16 %v225
        %v972 = vunpack.c.l.b16 %v226
        %v973 = vunpack.c.l.b16 %v227
        %v974 = vunpack.c.l.b16 %v228
        %v975 = vunpack.c.l.b16 %v229
        %v976 = vunpack.c.l.b16 %v230
        %v977 = vunpack.c.l.b16 %v231
        %v978 = vunpack.c.l.b16 %v232
        %v979 = vunpack.c.l.b16 %v233
        %v980 = vunpack.c.l.b16 %v234
        %v981 = vunpack.c.l.b16 %v235
        %v982 = vunpack.c.l.b16 %v236
        %v983 = vunpack.c.l.b16 %v237
        %v984 = vunpack.c.l.b16 %v238
        %v985 = vunpack.c.l.b16 %v239
        %v986 = vunpack.c.l.b16 %v240
        %v987 = vunpack.c.l.b16 %v241
        %v988 = vunpack.c.l.b16 %v242
        %v989 = vunpack.c.l.b16 %v243
        %v990 = vunpack.c.l.b16 %v244
        %v991 = vunpack.c.l.b16 %v245
        %v992 = vunpack.c.l.b16 %v246
        %v993 = vpack.c.b16 %v962, %v961
        %v994 = vpack.c.b16 %v964, %v963
        %v995 = vpack.c.b16 %v966, %v965
        %v996 = vpack.c.b16 %v968, %v967
        %v997 = vpack.c.b16 %v970, %v969
        %v998 = vpack.c.b16 %v972, %v971
        %v999 = vpack.c.b16 %v974, %v973
        %v1000 = vpack.c.b16 %v976, %v975
        %v1001 = vpack.c.b16 %v978, %v977
        %v1002 = vpack.c.b16 %v980, %v979
        %v1003 = vpack.c.b16 %v982, %v981
        %v1004 = vpack.c.b16 %v984, %v983
        %v1005 = vpack.c.b16 %v986, %v985
        %v1006 = vpack.c.b16 %v988, %v987
        %v1007 = vpack.c.b16 %v990, %v989
        %v1008 = vpack.c.b16 %v992, %v991
        %v1013 = vunpack.c.l.b16 %v247
        %v1014 = vunpack.c.l.b16 %v248
        %v1015 = vunpack.c.l.b16 %v249
        %v1016 = vunpack.c.l.b16 %v250
        %v1017 = vpack.c.b16 %v1014, %v1013
        %v1018 = vpack.c.b16 %v1016, %v1015
        %v1022 = vsel %vm719, %v993, 0
        %v1025 = vsel %vm719, %v994, 0
        %v1028 = vsel %vm719, %v995, 0
        %v1031 = vsel %vm719, %v996, 0
        %v1034 = vsel %vm719, %v997, 0
        %v1037 = vsel %vm719, %v998, 0
        %v1040 = vsel %vm719, %v999, 0
        %v1043 = vsel %vm719, %v1000, 0
        %v1046 = vsel %vm719, %v1001, 0
        %v1049 = vsel %vm719, %v1002, 0
        %v1052 = vsel %vm719, %v1003, 0
        %v1055 = vsel %vm719, %v1004, 0
        %v1058 = vsel %vm719, %v1005, 0
        %v1061 = vsel %vm719, %v1006, 0
        %v1064 = vsel %vm719, %v1007, 0
        %v1067 = vsel %vm719, %v1008, 0
        %1069 = vmatprep.subr.bf16.mxu0 0
        %1070 = vmatpush1.bf16.msra.mxu0 %v1017
        %1071 = vmatprep.subr.bf16.mxu0 0
        %1072 = vmatpush1.bf16.msra.mxu0 %v1018
        %1073 = vmatprep.subr.bf16.mxu0 0
        %1074 = vmatpush1.bf16.msra.mxu0 0
        %1075 = vmatprep.subr.bf16.mxu0 0
        %1076 = vmatpush1.bf16.msra.mxu0 0
        %1077 = vmatprep.subr.bf16.mxu0 0
        %1078 = vmatpush1.bf16.msra.mxu0 0
        %1079 = vmatprep.subr.bf16.mxu0 0
        %1080 = vmatpush1.bf16.msra.mxu0 0
        %1081 = vmatprep.subr.bf16.mxu0 0
        %1082 = vmatpush1.bf16.msra.mxu0 0
        %1083 = vmatprep.subr.bf16.mxu0 0
        %1084 = vmatpush1.bf16.msra.mxu0 0
        %1085 = vmatprep.subr.bf16.mxu0 0
        %1086 = vmatpush1.bf16.msra.mxu0 0
        %1087 = vmatprep.subr.bf16.mxu0 0
        %1088 = vmatpush1.bf16.msra.mxu0 0
        %1089 = vmatprep.subr.bf16.mxu0 0
        %1090 = vmatpush1.bf16.msra.mxu0 0
        %1091 = vmatprep.subr.bf16.mxu0 0
        %1092 = vmatpush1.bf16.msra.mxu0 0
        %1093 = vmatprep.subr.bf16.mxu0 0
        %1094 = vmatpush1.bf16.msra.mxu0 0
        %1095 = vmatprep.subr.bf16.mxu0 0
        %1096 = vmatpush1.bf16.msra.mxu0 0
        %1097 = vmatprep.subr.bf16.mxu0 0
        %1098 = vmatpush1.bf16.msra.mxu0 0
        %1099 = vmatprep.subr.bf16.mxu0 0
        %1100 = vmatpush1.bf16.msra.mxu0 0
        %1101 = vmatprep.mubr.bf16.mxu0 0
        %1102 = vmatmul.mubr.bf16.gmra.mrb[0].mxu0 %v1022
        %v1103 = vpop.f32.mrb[0].mxu0
        %v1104 = vadd.f32 %v803, %v1103
        %v1105 = vpop.f32.mrb[0].mxu0
        %v1106 = vpop.f32.mrb[0].mxu0
        %v1107 = vadd.f32 %v806, %v1106
        %v1108 = vpop.f32.mrb[0].mxu0
        %1109 = vmatprep.mubr.bf16.mxu0 0
        %1110 = vmatmul.mubr.bf16.gmra.mrb[0].mxu0 %v1025
        %v1111 = vpop.f32.mrb[0].mxu0
        %v1112 = vadd.f32 %v811, %v1111
        %v1113 = vpop.f32.mrb[0].mxu0
        %v1114 = vpop.f32.mrb[0].mxu0
        %v1115 = vadd.f32 %v814, %v1114
        %v1116 = vpop.f32.mrb[0].mxu0
        %1117 = vmatprep.mubr.bf16.mxu0 0
        %1118 = vmatmul.mubr.bf16.gmra.mrb[0].mxu0 %v1028
        %v1119 = vpop.f32.mrb[0].mxu0
        %v1120 = vadd.f32 %v819, %v1119
        %v1121 = vpop.f32.mrb[0].mxu0
        %v1122 = vpop.f32.mrb[0].mxu0
        %v1123 = vadd.f32 %v822, %v1122
        %v1124 = vpop.f32.mrb[0].mxu0
        %1125 = vmatprep.mubr.bf16.mxu0 0
        %1126 = vmatmul.mubr.bf16.gmra.mrb[0].mxu0 %v1031
        %v1127 = vpop.f32.mrb[0].mxu0
        %v1128 = vadd.f32 %v827, %v1127
        %v1129 = vpop.f32.mrb[0].mxu0
        %v1130 = vpop.f32.mrb[0].mxu0
        %v1131 = vadd.f32 %v830, %v1130
        %v1132 = vpop.f32.mrb[0].mxu0
        %1133 = vmatprep.mubr.bf16.mxu0 0
        %1134 = vmatmul.mubr.bf16.gmra.mrb[0].mxu0 %v1034
        %v1135 = vpop.f32.mrb[0].mxu0
        %v1136 = vadd.f32 %v835, %v1135
        %v1137 = vpop.f32.mrb[0].mxu0
        %v1138 = vpop.f32.mrb[0].mxu0
        %v1139 = vadd.f32 %v838, %v1138
        %v1140 = vpop.f32.mrb[0].mxu0
        %1141 = vmatprep.mubr.bf16.mxu0 0
        %1142 = vmatmul.mubr.bf16.gmra.mrb[0].mxu0 %v1037
        %v1143 = vpop.f32.mrb[0].mxu0
        %v1144 = vadd.f32 %v843, %v1143
        %v1145 = vpop.f32.mrb[0].mxu0
        %v1146 = vpop.f32.mrb[0].mxu0
        %v1147 = vadd.f32 %v846, %v1146
        %v1148 = vpop.f32.mrb[0].mxu0
        %1149 = vmatprep.mubr.bf16.mxu0 0
        %1150 = vmatmul.mubr.bf16.gmra.mrb[0].mxu0 %v1040
        %v1151 = vpop.f32.mrb[0].mxu0
        %v1152 = vadd.f32 %v851, %v1151
        %v1153 = vpop.f32.mrb[0].mxu0
        %v1154 = vpop.f32.mrb[0].mxu0
        %v1155 = vadd.f32 %v854, %v1154
        %v1156 = vpop.f32.mrb[0].mxu0
        %1157 = vmatprep.mubr.bf16.mxu0 0
        %1158 = vmatmul.mubr.bf16.gmra.mrb[0].mxu0 %v1043
        %v1159 = vpop.f32.mrb[0].mxu0
        %v1160 = vadd.f32 %v859, %v1159
        %v1161 = vpop.f32.mrb[0].mxu0
        %v1162 = vpop.f32.mrb[0].mxu0
        %v1163 = vadd.f32 %v862, %v1162
        %v1164 = vpop.f32.mrb[0].mxu0
        %1165 = vmatprep.mubr.bf16.mxu0 0
        %1166 = vmatmul.mubr.bf16.gmra.mrb[0].mxu0 %v1046
        %v1167 = vpop.f32.mrb[0].mxu0
        %v1168 = vadd.f32 %v867, %v1167
        %v1169 = vpop.f32.mrb[0].mxu0
        %v1170 = vpop.f32.mrb[0].mxu0
        %v1171 = vadd.f32 %v870, %v1170
        %v1172 = vpop.f32.mrb[0].mxu0
        %1173 = vmatprep.mubr.bf16.mxu0 0
        %1174 = vmatmul.mubr.bf16.gmra.mrb[0].mxu0 %v1049
        %v1175 = vpop.f32.mrb[0].mxu0
        %v1176 = vadd.f32 %v875, %v1175
        %v1177 = vpop.f32.mrb[0].mxu0
        %v1178 = vpop.f32.mrb[0].mxu0
        %v1179 = vadd.f32 %v878, %v1178
        %v1180 = vpop.f32.mrb[0].mxu0
        %1181 = vmatprep.mubr.bf16.mxu0 0
        %1182 = vmatmul.mubr.bf16.gmra.mrb[0].mxu0 %v1052
        %v1183 = vpop.f32.mrb[0].mxu0
        %v1184 = vadd.f32 %v883, %v1183
        %v1185 = vpop.f32.mrb[0].mxu0
        %v1186 = vpop.f32.mrb[0].mxu0
        %v1187 = vadd.f32 %v886, %v1186
        %v1188 = vpop.f32.mrb[0].mxu0
        %1189 = vmatprep.mubr.bf16.mxu0 0
        %1190 = vmatmul.mubr.bf16.gmra.mrb[0].mxu0 %v1055
        %v1191 = vpop.f32.mrb[0].mxu0
        %v1192 = vadd.f32 %v891, %v1191
        %v1193 = vpop.f32.mrb[0].mxu0
        %v1194 = vpop.f32.mrb[0].mxu0
        %v1195 = vadd.f32 %v894, %v1194
        %v1196 = vpop.f32.mrb[0].mxu0
        %1197 = vmatprep.mubr.bf16.mxu0 0
        %1198 = vmatmul.mubr.bf16.gmra.mrb[0].mxu0 %v1058
        %v1199 = vpop.f32.mrb[0].mxu0
        %v1200 = vadd.f32 %v899, %v1199
        %v1201 = vpop.f32.mrb[0].mxu0
        %v1202 = vpop.f32.mrb[0].mxu0
        %v1203 = vadd.f32 %v902, %v1202
        %v1204 = vpop.f32.mrb[0].mxu0
        %1205 = vmatprep.mubr.bf16.mxu0 0
        %1206 = vmatmul.mubr.bf16.gmra.mrb[0].mxu0 %v1061
        %v1207 = vpop.f32.mrb[0].mxu0
        %v1208 = vadd.f32 %v907, %v1207
        %v1209 = vpop.f32.mrb[0].mxu0
        %v1210 = vpop.f32.mrb[0].mxu0
        %v1211 = vadd.f32 %v910, %v1210
        %v1212 = vpop.f32.mrb[0].mxu0
        %1213 = vmatprep.mubr.bf16.mxu0 0
        %1214 = vmatmul.mubr.bf16.gmra.mrb[0].mxu0 %v1064
        %v1215 = vpop.f32.mrb[0].mxu0
        %v1216 = vadd.f32 %v915, %v1215
        %v1217 = vpop.f32.mrb[0].mxu0
        %v1218 = vpop.f32.mrb[0].mxu0
        %v1219 = vadd.f32 %v918, %v1218
        %v1220 = vpop.f32.mrb[0].mxu0
        %1221 = vmatprep.mubr.bf16.mxu0 0
        %1222 = vmatmul.mubr.bf16.gmra.mrb[0].mxu0 %v1067
        %v1223 = vpop.f32.mrb[0].mxu0
        %v1224 = vadd.f32 %v923, %v1223
        %v1225 = vpop.f32.mrb[0].mxu0
        %v1226 = vpop.f32.mrb[0].mxu0
        %v1227 = vadd.f32 %v926, %v1226
        %v1228 = vpop.f32.mrb[0].mxu0
        %1229 = vdwg.mxu0
        %v1230 = vld [vmem:[%s206] sm:$0xe]
        %v1231 = vld [vmem:[%s206 + $0xc] sm:$0xe]
        %v1232 = vld [vmem:[%s206 + $0x18] sm:$0xe]
        %v1233 = vld [vmem:[%s206 + $0x24] sm:$0xe]
        %v1234 = vld [vmem:[%s206 + $0x30] sm:$0xe]
        %v1235 = vld [vmem:[%s206 + $0x3c] sm:$0xe]
        %v1236 = vld [vmem:[%s206 + $0x48] sm:$0xe]
        %v1237 = vld [vmem:[%s206 + $0x54] sm:$0xe]
        %v1238 = vld [vmem:[%s206 + $0x60] sm:$0xe]
        %v1239 = vld [vmem:[%s206 + $0x6c] sm:$0xe]
        %v1240 = vld [vmem:[%s206 + $0x78] sm:$0xe]
        %v1241 = vld [vmem:[%s206 + $0x84] sm:$0xe]
        %v1242 = vld [vmem:[%s206 + $0x90] sm:$0xe]
        %v1243 = vld [vmem:[%s206 + $0x9c] sm:$0xe]
        %v1244 = vld [vmem:[%s206 + $0xa8] sm:$0xe]
        %v1245 = vld [vmem:[%s206 + $0xb4] sm:$0xe]
        %vm1278 = vcmask 1042432
        %vm1279 = vcmask 1046532
        %vm1280 = vmor %vm1278, %vm1279
        %v1281 = vrot.slane %v1230, 5
        %v1282 = vrot.slane %v1281, 4
        %v1283 = vrot.slane %v216, 5
        %v1284 = vsel %vm1280, %v1282, %v1283
        %v1285 = vrot.slane %v1283, 4
        %v1286 = vrot.slane %v251, 5
        %v1287 = vsel %vm1280, %v1285, %v1286
        %v1288 = vrot.slane %v1231, 5
        %v1289 = vrot.slane %v1288, 4
        %v1290 = vrot.slane %v218, 5
        %v1291 = vsel %vm1280, %v1289, %v1290
        %v1292 = vrot.slane %v1290, 4
        %v1293 = vrot.slane %v252, 5
        %v1294 = vsel %vm1280, %v1292, %v1293
        %v1295 = vrot.slane %v1232, 5
        %v1296 = vrot.slane %v1295, 4
        %v1297 = vrot.slane %v220, 5
        %v1298 = vsel %vm1280, %v1296, %v1297
        %v1299 = vrot.slane %v1297, 4
        %v1300 = vrot.slane %v253, 5
        %v1301 = vsel %vm1280, %v1299, %v1300
        %v1302 = vrot.slane %v1233, 5
        %v1303 = vrot.slane %v1302, 4
        %v1304 = vrot.slane %v222, 5
        %v1305 = vsel %vm1280, %v1303, %v1304
        %v1306 = vrot.slane %v1304, 4
        %v1307 = vrot.slane %v254, 5
        %v1308 = vsel %vm1280, %v1306, %v1307
        %v1309 = vrot.slane %v1234, 5
        %v1310 = vrot.slane %v1309, 4
        %v1311 = vrot.slane %v224, 5
        %v1312 = vsel %vm1280, %v1310, %v1311
        %v1313 = vrot.slane %v1311, 4
        %v1314 = vrot.slane %v255, 5
        %v1315 = vsel %vm1280, %v1313, %v1314
        %v1316 = vrot.slane %v1235, 5
        %v1317 = vrot.slane %v1316, 4
        %v1318 = vrot.slane %v226, 5
        %v1319 = vsel %vm1280, %v1317, %v1318
        %v1320 = vrot.slane %v1318, 4
        %v1321 = vrot.slane %v256, 5
        %v1322 = vsel %vm1280, %v1320, %v1321
        %v1323 = vrot.slane %v1236, 5
        %v1324 = vrot.slane %v1323, 4
        %v1325 = vrot.slane %v228, 5
        %v1326 = vsel %vm1280, %v1324, %v1325
        %v1327 = vrot.slane %v1325, 4
        %v1328 = vrot.slane %v257, 5
        %v1329 = vsel %vm1280, %v1327, %v1328
        %v1330 = vrot.slane %v1237, 5
        %v1331 = vrot.slane %v1330, 4
        %v1332 = vrot.slane %v230, 5
        %v1333 = vsel %vm1280, %v1331, %v1332
        %v1334 = vrot.slane %v1332, 4
        %v1335 = vrot.slane %v258, 5
        %v1336 = vsel %vm1280, %v1334, %v1335
        %v1337 = vrot.slane %v1238, 5
        %v1338 = vrot.slane %v1337, 4
        %v1339 = vrot.slane %v232, 5
        %v1340 = vsel %vm1280, %v1338, %v1339
        %v1341 = vrot.slane %v1339, 4
        %v1342 = vrot.slane %v259, 5
        %v1343 = vsel %vm1280, %v1341, %v1342
        %v1344 = vrot.slane %v1239, 5
        %v1345 = vrot.slane %v1344, 4
        %v1346 = vrot.slane %v234, 5
        %v1347 = vsel %vm1280, %v1345, %v1346
        %v1348 = vrot.slane %v1346, 4
        %v1349 = vrot.slane %v260, 5
        %v1350 = vsel %vm1280, %v1348, %v1349
        %v1351 = vrot.slane %v1240, 5
        %v1352 = vrot.slane %v1351, 4
        %v1353 = vrot.slane %v236, 5
        %v1354 = vsel %vm1280, %v1352, %v1353
        %v1355 = vrot.slane %v1353, 4
        %v1356 = vrot.slane %v261, 5
        %v1357 = vsel %vm1280, %v1355, %v1356
        %v1358 = vrot.slane %v1241, 5
        %v1359 = vrot.slane %v1358, 4
        %v1360 = vrot.slane %v238, 5
        %v1361 = vsel %vm1280, %v1359, %v1360
        %v1362 = vrot.slane %v1360, 4
        %v1363 = vrot.slane %v262, 5
        %v1364 = vsel %vm1280, %v1362, %v1363
        %v1365 = vrot.slane %v1242, 5
        %v1366 = vrot.slane %v1365, 4
        %v1367 = vrot.slane %v240, 5
        %v1368 = vsel %vm1280, %v1366, %v1367
        %v1369 = vrot.slane %v1367, 4
        %v1370 = vrot.slane %v263, 5
        %v1371 = vsel %vm1280, %v1369, %v1370
        %v1372 = vrot.slane %v1243, 5
        %v1373 = vrot.slane %v1372, 4
        %v1374 = vrot.slane %v242, 5
        %v1375 = vsel %vm1280, %v1373, %v1374
        %v1376 = vrot.slane %v1374, 4
        %v1377 = vrot.slane %v264, 5
        %v1378 = vsel %vm1280, %v1376, %v1377
        %v1379 = vrot.slane %v1244, 5
        %v1380 = vrot.slane %v1379, 4
        %v1381 = vrot.slane %v244, 5
        %v1382 = vsel %vm1280, %v1380, %v1381
        %v1383 = vrot.slane %v1381, 4
        %v1384 = vrot.slane %v265, 5
        %v1385 = vsel %vm1280, %v1383, %v1384
        %v1386 = vrot.slane %v1245, 5
        %v1387 = vrot.slane %v1386, 4
        %v1388 = vrot.slane %v246, 5
        %v1389 = vsel %vm1280, %v1387, %v1388
        %v1390 = vrot.slane %v1388, 4
        %v1391 = vrot.slane %v266, 5
        %v1392 = vsel %vm1280, %v1390, %v1391
        %s1393 = scalar_lea.vmem %s210, 32
        %v1394 = vld [vmem:[%s1393] sm:$0xf]
        %v1395 = vld [vmem:[%s1393 + $0x4] sm:$0xf]
        %v1396 = vld [vmem:[%s1393 + $0x8] sm:$0xf]
        %v1397 = vld [vmem:[%s1393 + $0xc] sm:$0xf]
        %v1398 = vunpack.c.l.b16 %v1284
        %v1399 = vunpack.c.l.b16 %v1287
        %v1400 = vunpack.c.l.b16 %v1291
        %v1401 = vunpack.c.l.b16 %v1294
        %v1402 = vunpack.c.l.b16 %v1298
        %v1403 = vunpack.c.l.b16 %v1301
        %v1404 = vunpack.c.l.b16 %v1305
        %v1405 = vunpack.c.l.b16 %v1308
        %v1406 = vunpack.c.l.b16 %v1312
        %v1407 = vunpack.c.l.b16 %v1315
        %v1408 = vunpack.c.l.b16 %v1319
        %v1409 = vunpack.c.l.b16 %v1322
        %v1410 = vunpack.c.l.b16 %v1326
        %v1411 = vunpack.c.l.b16 %v1329
        %v1412 = vunpack.c.l.b16 %v1333
        %v1413 = vunpack.c.l.b16 %v1336
        %v1414 = vunpack.c.l.b16 %v1340
        %v1415 = vunpack.c.l.b16 %v1343
        %v1416 = vunpack.c.l.b16 %v1347
        %v1417 = vunpack.c.l.b16 %v1350
        %v1418 = vunpack.c.l.b16 %v1354
        %v1419 = vunpack.c.l.b16 %v1357
        %v1420 = vunpack.c.l.b16 %v1361
        %v1421 = vunpack.c.l.b16 %v1364
        %v1422 = vunpack.c.l.b16 %v1368
        %v1423 = vunpack.c.l.b16 %v1371
        %v1424 = vunpack.c.l.b16 %v1375
        %v1425 = vunpack.c.l.b16 %v1378
        %v1426 = vunpack.c.l.b16 %v1382
        %v1427 = vunpack.c.l.b16 %v1385
        %v1428 = vunpack.c.l.b16 %v1389
        %v1429 = vunpack.c.l.b16 %v1392
        %v1430 = vpack.c.b16 %v1399, %v1398
        %v1431 = vpack.c.b16 %v1401, %v1400
        %v1432 = vpack.c.b16 %v1403, %v1402
        %v1433 = vpack.c.b16 %v1405, %v1404
        %v1434 = vpack.c.b16 %v1407, %v1406
        %v1435 = vpack.c.b16 %v1409, %v1408
        %v1436 = vpack.c.b16 %v1411, %v1410
        %v1437 = vpack.c.b16 %v1413, %v1412
        %v1438 = vpack.c.b16 %v1415, %v1414
        %v1439 = vpack.c.b16 %v1417, %v1416
        %v1440 = vpack.c.b16 %v1419, %v1418
        %v1441 = vpack.c.b16 %v1421, %v1420
        %v1442 = vpack.c.b16 %v1423, %v1422
        %v1443 = vpack.c.b16 %v1425, %v1424
        %v1444 = vpack.c.b16 %v1427, %v1426
        %v1445 = vpack.c.b16 %v1429, %v1428
        %v1450 = vunpack.c.l.b16 %v1394
        %v1451 = vunpack.c.l.b16 %v1395
        %v1452 = vunpack.c.l.b16 %v1396
        %v1453 = vunpack.c.l.b16 %v1397
        %v1454 = vpack.c.b16 %v1451, %v1450
        %v1455 = vpack.c.b16 %v1453, %v1452
        %v1459 = vsel %vm719, %v1430, 0
        %v1462 = vsel %vm719, %v1431, 0
        %v1465 = vsel %vm719, %v1432, 0
        %v1468 = vsel %vm719, %v1433, 0
        %v1471 = vsel %vm719, %v1434, 0
        %v1474 = vsel %vm719, %v1435, 0
        %v1477 = vsel %vm719, %v1436, 0
        %v1480 = vsel %vm719, %v1437, 0
        %v1483 = vsel %vm719, %v1438, 0
        %v1486 = vsel %vm719, %v1439, 0
        %v1489 = vsel %vm719, %v1440, 0
        %v1492 = vsel %vm719, %v1441, 0
        %v1495 = vsel %vm719, %v1442, 0
        %v1498 = vsel %vm719, %v1443, 0
        %v1501 = vsel %vm719, %v1444, 0
        %v1504 = vsel %vm719, %v1445, 0
        %1506 = vmatprep.subr.bf16.mxu0 0
        %1507 = vmatpush1.bf16.msra.mxu0 %v1454
        %1508 = vmatprep.subr.bf16.mxu0 0
        %1509 = vmatpush1.bf16.msra.mxu0 %v1455
        %1510 = vmatprep.subr.bf16.mxu0 0
        %1511 = vmatpush1.bf16.msra.mxu0 0
        %1512 = vmatprep.subr.bf16.mxu0 0
        %1513 = vmatpush1.bf16.msra.mxu0 0
        %1514 = vmatprep.subr.bf16.mxu0 0
        %1515 = vmatpush1.bf16.msra.mxu0 0
        %1516 = vmatprep.subr.bf16.mxu0 0
        %1517 = vmatpush1.bf16.msra.mxu0 0
        %1518 = vmatprep.subr.bf16.mxu0 0
        %1519 = vmatpush1.bf16.msra.mxu0 0
        %1520 = vmatprep.subr.bf16.mxu0 0
        %1521 = vmatpush1.bf16.msra.mxu0 0
        %1522 = vmatprep.subr.bf16.mxu0 0
        %1523 = vmatpush1.bf16.msra.mxu0 0
        %1524 = vmatprep.subr.bf16.mxu0 0
        %1525 = vmatpush1.bf16.msra.mxu0 0
        %1526 = vmatprep.subr.bf16.mxu0 0
        %1527 = vmatpush1.bf16.msra.mxu0 0
        %1528 = vmatprep.subr.bf16.mxu0 0
        %1529 = vmatpush1.bf16.msra.mxu0 0
        %1530 = vmatprep.subr.bf16.mxu0 0
        %1531 = vmatpush1.bf16.msra.mxu0 0
        %1532 = vmatprep.subr.bf16.mxu0 0
        %1533 = vmatpush1.bf16.msra.mxu0 0
        %1534 = vmatprep.subr.bf16.mxu0 0
        %1535 = vmatpush1.bf16.msra.mxu0 0
        %1536 = vmatprep.subr.bf16.mxu0 0
        %1537 = vmatpush1.bf16.msra.mxu0 0
        %1538 = vmatprep.mubr.bf16.mxu0 0
        %1539 = vmatmul.mubr.bf16.gmra.mrb[0].mxu0 %v1459
        %v1540 = vpop.f32.mrb[0].mxu0
        %v1541 = vadd.f32 0.0, %v1540
        %v1542 = vpop.f32.mrb[0].mxu0
        %v1543 = vpop.f32.mrb[0].mxu0
        %v1544 = vadd.f32 0.0, %v1543
        %v1545 = vpop.f32.mrb[0].mxu0
        %1546 = vmatprep.mubr.bf16.mxu0 0
        %1547 = vmatmul.mubr.bf16.gmra.mrb[0].mxu0 %v1462
        %v1548 = vpop.f32.mrb[0].mxu0
        %v1549 = vadd.f32 0.0, %v1548
        %v1550 = vpop.f32.mrb[0].mxu0
        %v1551 = vpop.f32.mrb[0].mxu0
        %v1552 = vadd.f32 0.0, %v1551
        %v1553 = vpop.f32.mrb[0].mxu0
        %1554 = vmatprep.mubr.bf16.mxu0 0
        %1555 = vmatmul.mubr.bf16.gmra.mrb[0].mxu0 %v1465
        %v1556 = vpop.f32.mrb[0].mxu0
        %v1557 = vadd.f32 0.0, %v1556
        %v1558 = vpop.f32.mrb[0].mxu0
        %v1559 = vpop.f32.mrb[0].mxu0
        %v1560 = vadd.f32 0.0, %v1559
        %v1561 = vpop.f32.mrb[0].mxu0
        %1562 = vmatprep.mubr.bf16.mxu0 0
        %1563 = vmatmul.mubr.bf16.gmra.mrb[0].mxu0 %v1468
        %v1564 = vpop.f32.mrb[0].mxu0
        %v1565 = vadd.f32 0.0, %v1564
        %v1566 = vpop.f32.mrb[0].mxu0
        %v1567 = vpop.f32.mrb[0].mxu0
        %v1568 = vadd.f32 0.0, %v1567
        %v1569 = vpop.f32.mrb[0].mxu0
        %1570 = vmatprep.mubr.bf16.mxu0 0
        %1571 = vmatmul.mubr.bf16.gmra.mrb[0].mxu0 %v1471
        %v1572 = vpop.f32.mrb[0].mxu0
        %v1573 = vadd.f32 0.0, %v1572
        %v1574 = vpop.f32.mrb[0].mxu0
        %v1575 = vpop.f32.mrb[0].mxu0
        %v1576 = vadd.f32 0.0, %v1575
        %v1577 = vpop.f32.mrb[0].mxu0
        %1578 = vmatprep.mubr.bf16.mxu0 0
        %1579 = vmatmul.mubr.bf16.gmra.mrb[0].mxu0 %v1474
        %v1580 = vpop.f32.mrb[0].mxu0
        %v1581 = vadd.f32 0.0, %v1580
        %v1582 = vpop.f32.mrb[0].mxu0
        %v1583 = vpop.f32.mrb[0].mxu0
        %v1584 = vadd.f32 0.0, %v1583
        %v1585 = vpop.f32.mrb[0].mxu0
        %1586 = vmatprep.mubr.bf16.mxu0 0
        %1587 = vmatmul.mubr.bf16.gmra.mrb[0].mxu0 %v1477
        %v1588 = vpop.f32.mrb[0].mxu0
        %v1589 = vadd.f32 0.0, %v1588
        %v1590 = vpop.f32.mrb[0].mxu0
        %v1591 = vpop.f32.mrb[0].mxu0
        %v1592 = vadd.f32 0.0, %v1591
        %v1593 = vpop.f32.mrb[0].mxu0
        %1594 = vmatprep.mubr.bf16.mxu0 0
        %1595 = vmatmul.mubr.bf16.gmra.mrb[0].mxu0 %v1480
        %v1596 = vpop.f32.mrb[0].mxu0
        %v1597 = vadd.f32 0.0, %v1596
        %v1598 = vpop.f32.mrb[0].mxu0
        %v1599 = vpop.f32.mrb[0].mxu0
        %v1600 = vadd.f32 0.0, %v1599
        %v1601 = vpop.f32.mrb[0].mxu0
        %1602 = vmatprep.mubr.bf16.mxu0 0
        %1603 = vmatmul.mubr.bf16.gmra.mrb[0].mxu0 %v1483
        %v1604 = vpop.f32.mrb[0].mxu0
        %v1605 = vadd.f32 0.0, %v1604
        %v1606 = vpop.f32.mrb[0].mxu0
        %v1607 = vpop.f32.mrb[0].mxu0
        %v1608 = vadd.f32 0.0, %v1607
        %v1609 = vpop.f32.mrb[0].mxu0
        %1610 = vmatprep.mubr.bf16.mxu0 0
        %1611 = vmatmul.mubr.bf16.gmra.mrb[0].mxu0 %v1486
        %v1612 = vpop.f32.mrb[0].mxu0
        %v1613 = vadd.f32 0.0, %v1612
        %v1614 = vpop.f32.mrb[0].mxu0
        %v1615 = vpop.f32.mrb[0].mxu0
        %v1616 = vadd.f32 0.0, %v1615
        %v1617 = vpop.f32.mrb[0].mxu0
        %1618 = vmatprep.mubr.bf16.mxu0 0
        %1619 = vmatmul.mubr.bf16.gmra.mrb[0].mxu0 %v1489
        %v1620 = vpop.f32.mrb[0].mxu0
        %v1621 = vadd.f32 0.0, %v1620
        %v1622 = vpop.f32.mrb[0].mxu0
        %v1623 = vpop.f32.mrb[0].mxu0
        %v1624 = vadd.f32 0.0, %v1623
        %v1625 = vpop.f32.mrb[0].mxu0
        %1626 = vmatprep.mubr.bf16.mxu0 0
        %1627 = vmatmul.mubr.bf16.gmra.mrb[0].mxu0 %v1492
        %v1628 = vpop.f32.mrb[0].mxu0
        %v1629 = vadd.f32 0.0, %v1628
        %v1630 = vpop.f32.mrb[0].mxu0
        %v1631 = vpop.f32.mrb[0].mxu0
        %v1632 = vadd.f32 0.0, %v1631
        %v1633 = vpop.f32.mrb[0].mxu0
        %1634 = vmatprep.mubr.bf16.mxu0 0
        %1635 = vmatmul.mubr.bf16.gmra.mrb[0].mxu0 %v1495
        %v1636 = vpop.f32.mrb[0].mxu0
        %v1637 = vadd.f32 0.0, %v1636
        %v1638 = vpop.f32.mrb[0].mxu0
        %v1639 = vpop.f32.mrb[0].mxu0
        %v1640 = vadd.f32 0.0, %v1639
        %v1641 = vpop.f32.mrb[0].mxu0
        %1642 = vmatprep.mubr.bf16.mxu0 0
        %1643 = vmatmul.mubr.bf16.gmra.mrb[0].mxu0 %v1498
        %v1644 = vpop.f32.mrb[0].mxu0
        %v1645 = vadd.f32 0.0, %v1644
        %v1646 = vpop.f32.mrb[0].mxu0
        %v1647 = vpop.f32.mrb[0].mxu0
        %v1648 = vadd.f32 0.0, %v1647
        %v1649 = vpop.f32.mrb[0].mxu0
        %1650 = vmatprep.mubr.bf16.mxu0 0
        %1651 = vmatmul.mubr.bf16.gmra.mrb[0].mxu0 %v1501
        %v1652 = vpop.f32.mrb[0].mxu0
        %v1653 = vadd.f32 0.0, %v1652
        %v1654 = vpop.f32.mrb[0].mxu0
        %v1655 = vpop.f32.mrb[0].mxu0
        %v1656 = vadd.f32 0.0, %v1655
        %v1657 = vpop.f32.mrb[0].mxu0
        %1658 = vmatprep.mubr.bf16.mxu0 0
        %1659 = vmatmul.mubr.bf16.gmra.mrb[0].mxu0 %v1504
        %v1660 = vpop.f32.mrb[0].mxu0
        %v1661 = vadd.f32 0.0, %v1660
        %v1662 = vpop.f32.mrb[0].mxu0
        %v1663 = vpop.f32.mrb[0].mxu0
        %v1664 = vadd.f32 0.0, %v1663
        %v1665 = vpop.f32.mrb[0].mxu0
        %1666 = vdwg.mxu0
        %v1667 = vadd.f32 %v1104, %v1541
        %v1668 = vadd.f32 %v1107, %v1544
        %v1669 = vadd.f32 %v1112, %v1549
        %v1670 = vadd.f32 %v1115, %v1552
        %v1671 = vadd.f32 %v1120, %v1557
        %v1672 = vadd.f32 %v1123, %v1560
        %v1673 = vadd.f32 %v1128, %v1565
        %v1674 = vadd.f32 %v1131, %v1568
        %v1675 = vadd.f32 %v1136, %v1573
        %v1676 = vadd.f32 %v1139, %v1576
        %v1677 = vadd.f32 %v1144, %v1581
        %v1678 = vadd.f32 %v1147, %v1584
        %v1679 = vadd.f32 %v1152, %v1589
        %v1680 = vadd.f32 %v1155, %v1592
        %v1681 = vadd.f32 %v1160, %v1597
        %v1682 = vadd.f32 %v1163, %v1600
        %v1683 = vadd.f32 %v1168, %v1605
        %v1684 = vadd.f32 %v1171, %v1608
        %v1685 = vadd.f32 %v1176, %v1613
        %v1686 = vadd.f32 %v1179, %v1616
        %v1687 = vadd.f32 %v1184, %v1621
        %v1688 = vadd.f32 %v1187, %v1624
        %v1689 = vadd.f32 %v1192, %v1629
        %v1690 = vadd.f32 %v1195, %v1632
        %v1691 = vadd.f32 %v1200, %v1637
        %v1692 = vadd.f32 %v1203, %v1640
        %v1693 = vadd.f32 %v1208, %v1645
        %v1694 = vadd.f32 %v1211, %v1648
        %v1695 = vadd.f32 %v1216, %v1653
        %v1696 = vadd.f32 %v1219, %v1656
        %v1697 = vadd.f32 %v1224, %v1661
        %v1698 = vadd.f32 %v1227, %v1664
        %s1699 = scalar_lea.vmem %s206, 12
        %v1700 = vld [vmem:[%s1699] sm:$0xf]
        %v1701 = vld [vmem:[%s1699 + $0x4] sm:$0xf]
        %v1702 = vld [vmem:[%s1699 + $0xc] sm:$0xf]
        %v1703 = vld [vmem:[%s1699 + $0x10] sm:$0xf]
        %v1704 = vld [vmem:[%s1699 + $0x18] sm:$0xf]
        %v1705 = vld [vmem:[%s1699 + $0x1c] sm:$0xf]
        %v1706 = vld [vmem:[%s1699 + $0x24] sm:$0xf]
        %v1707 = vld [vmem:[%s1699 + $0x28] sm:$0xf]
        %v1708 = vld [vmem:[%s1699 + $0x30] sm:$0xf]
        %v1709 = vld [vmem:[%s1699 + $0x34] sm:$0xf]
        %v1710 = vld [vmem:[%s1699 + $0x3c] sm:$0xf]
        %v1711 = vld [vmem:[%s1699 + $0x40] sm:$0xf]
        %v1712 = vld [vmem:[%s1699 + $0x48] sm:$0xf]
        %v1713 = vld [vmem:[%s1699 + $0x4c] sm:$0xf]
        %v1714 = vld [vmem:[%s1699 + $0x54] sm:$0xf]
        %v1715 = vld [vmem:[%s1699 + $0x58] sm:$0xf]
        %v1716 = vld [vmem:[%s1699 + $0x60] sm:$0xf]
        %v1717 = vld [vmem:[%s1699 + $0x64] sm:$0xf]
        %v1718 = vld [vmem:[%s1699 + $0x6c] sm:$0xf]
        %v1719 = vld [vmem:[%s1699 + $0x70] sm:$0xf]
        %v1720 = vld [vmem:[%s1699 + $0x78] sm:$0xf]
        %v1721 = vld [vmem:[%s1699 + $0x7c] sm:$0xf]
        %v1722 = vld [vmem:[%s1699 + $0x84] sm:$0xf]
        %v1723 = vld [vmem:[%s1699 + $0x88] sm:$0xf]
        %v1724 = vld [vmem:[%s1699 + $0x90] sm:$0xf]
        %v1725 = vld [vmem:[%s1699 + $0x94] sm:$0xf]
        %v1726 = vld [vmem:[%s1699 + $0x9c] sm:$0xf]
        %v1727 = vld [vmem:[%s1699 + $0xa0] sm:$0xf]
        %v1728 = vld [vmem:[%s1699 + $0xa8] sm:$0xf]
        %v1729 = vld [vmem:[%s1699 + $0xac] sm:$0xf]
        %v1730 = vld [vmem:[%s1699 + $0xb4] sm:$0xf]
        %v1731 = vld [vmem:[%s1699 + $0xb8] sm:$0xf]
        %s1732 = scalar_lea.vmem %s210, 48
        %v1733 = vld [vmem:[%s1732] sm:$0xf]
        %v1734 = vld [vmem:[%s1732 + $0x4] sm:$0xf]
        %v1735 = vld [vmem:[%s1732 + $0x8] sm:$0xf]
        %v1736 = vld [vmem:[%s1732 + $0xc] sm:$0xf]
        %v1769 = vunpack.c.l.b16 %v1700
        %v1770 = vunpack.c.l.b16 %v1701
        %v1771 = vunpack.c.l.b16 %v1702
        %v1772 = vunpack.c.l.b16 %v1703
        %v1773 = vunpack.c.l.b16 %v1704
        %v1774 = vunpack.c.l.b16 %v1705
        %v1775 = vunpack.c.l.b16 %v1706
        %v1776 = vunpack.c.l.b16 %v1707
        %v1777 = vunpack.c.l.b16 %v1708
        %v1778 = vunpack.c.l.b16 %v1709
        %v1779 = vunpack.c.l.b16 %v1710
        %v1780 = vunpack.c.l.b16 %v1711
        %v1781 = vunpack.c.l.b16 %v1712
        %v1782 = vunpack.c.l.b16 %v1713
        %v1783 = vunpack.c.l.b16 %v1714
        %v1784 = vunpack.c.l.b16 %v1715
        %v1785 = vunpack.c.l.b16 %v1716
        %v1786 = vunpack.c.l.b16 %v1717
        %v1787 = vunpack.c.l.b16 %v1718
        %v1788 = vunpack.c.l.b16 %v1719
        %v1789 = vunpack.c.l.b16 %v1720
        %v1790 = vunpack.c.l.b16 %v1721
        %v1791 = vunpack.c.l.b16 %v1722
        %v1792 = vunpack.c.l.b16 %v1723
        %v1793 = vunpack.c.l.b16 %v1724
        %v1794 = vunpack.c.l.b16 %v1725
        %v1795 = vunpack.c.l.b16 %v1726
        %v1796 = vunpack.c.l.b16 %v1727
        %v1797 = vunpack.c.l.b16 %v1728
        %v1798 = vunpack.c.l.b16 %v1729
        %v1799 = vunpack.c.l.b16 %v1730
        %v1800 = vunpack.c.l.b16 %v1731
        %v1801 = vpack.c.b16 %v1770, %v1769
        %v1802 = vpack.c.b16 %v1772, %v1771
        %v1803 = vpack.c.b16 %v1774, %v1773
        %v1804 = vpack.c.b16 %v1776, %v1775
        %v1805 = vpack.c.b16 %v1778, %v1777
        %v1806 = vpack.c.b16 %v1780, %v1779
        %v1807 = vpack.c.b16 %v1782, %v1781
        %v1808 = vpack.c.b16 %v1784, %v1783
        %v1809 = vpack.c.b16 %v1786, %v1785
        %v1810 = vpack.c.b16 %v1788, %v1787
        %v1811 = vpack.c.b16 %v1790, %v1789
        %v1812 = vpack.c.b16 %v1792, %v1791
        %v1813 = vpack.c.b16 %v1794, %v1793
        %v1814 = vpack.c.b16 %v1796, %v1795
        %v1815 = vpack.c.b16 %v1798, %v1797
        %v1816 = vpack.c.b16 %v1800, %v1799
        %v1821 = vunpack.c.l.b16 %v1733
        %v1822 = vunpack.c.l.b16 %v1734
        %v1823 = vunpack.c.l.b16 %v1735
        %v1824 = vunpack.c.l.b16 %v1736
        %v1825 = vpack.c.b16 %v1822, %v1821
        %v1826 = vpack.c.b16 %v1824, %v1823
        %v1830 = vsel %vm719, %v1801, 0
        %v1833 = vsel %vm719, %v1802, 0
        %v1836 = vsel %vm719, %v1803, 0
        %v1839 = vsel %vm719, %v1804, 0
        %v1842 = vsel %vm719, %v1805, 0
        %v1845 = vsel %vm719, %v1806, 0
        %v1848 = vsel %vm719, %v1807, 0
        %v1851 = vsel %vm719, %v1808, 0
        %v1854 = vsel %vm719, %v1809, 0
        %v1857 = vsel %vm719, %v1810, 0
        %v1860 = vsel %vm719, %v1811, 0
        %v1863 = vsel %vm719, %v1812, 0
        %v1866 = vsel %vm719, %v1813, 0
        %v1869 = vsel %vm719, %v1814, 0
        %v1872 = vsel %vm719, %v1815, 0
        %v1875 = vsel %vm719, %v1816, 0
        %1877 = vmatprep.subr.bf16.mxu0 0
        %1878 = vmatpush1.bf16.msra.mxu0 %v1825
        %1879 = vmatprep.subr.bf16.mxu0 0
        %1880 = vmatpush1.bf16.msra.mxu0 %v1826
        %1881 = vmatprep.subr.bf16.mxu0 0
        %1882 = vmatpush1.bf16.msra.mxu0 0
        %1883 = vmatprep.subr.bf16.mxu0 0
        %1884 = vmatpush1.bf16.msra.mxu0 0
        %1885 = vmatprep.subr.bf16.mxu0 0
        %1886 = vmatpush1.bf16.msra.mxu0 0
        %1887 = vmatprep.subr.bf16.mxu0 0
        %1888 = vmatpush1.bf16.msra.mxu0 0
        %1889 = vmatprep.subr.bf16.mxu0 0
        %1890 = vmatpush1.bf16.msra.mxu0 0
        %1891 = vmatprep.subr.bf16.mxu0 0
        %1892 = vmatpush1.bf16.msra.mxu0 0
        %1893 = vmatprep.subr.bf16.mxu0 0
        %1894 = vmatpush1.bf16.msra.mxu0 0
        %1895 = vmatprep.subr.bf16.mxu0 0
        %1896 = vmatpush1.bf16.msra.mxu0 0
        %1897 = vmatprep.subr.bf16.mxu0 0
        %1898 = vmatpush1.bf16.msra.mxu0 0
        %1899 = vmatprep.subr.bf16.mxu0 0
        %1900 = vmatpush1.bf16.msra.mxu0 0
        %1901 = vmatprep.subr.bf16.mxu0 0
        %1902 = vmatpush1.bf16.msra.mxu0 0
        %1903 = vmatprep.subr.bf16.mxu0 0
        %1904 = vmatpush1.bf16.msra.mxu0 0
        %1905 = vmatprep.subr.bf16.mxu0 0
        %1906 = vmatpush1.bf16.msra.mxu0 0
        %1907 = vmatprep.subr.bf16.mxu0 0
        %1908 = vmatpush1.bf16.msra.mxu0 0
        %1909 = vmatprep.mubr.bf16.mxu0 0
        %1910 = vmatmul.mubr.bf16.gmra.mrb[0].mxu0 %v1830
        %v1911 = vpop.f32.mrb[0].mxu0
        %v1912 = vadd.f32 0.0, %v1911
        %v1913 = vpop.f32.mrb[0].mxu0
        %v1914 = vpop.f32.mrb[0].mxu0
        %v1915 = vadd.f32 0.0, %v1914
        %v1916 = vpop.f32.mrb[0].mxu0
        %1917 = vmatprep.mubr.bf16.mxu0 0
        %1918 = vmatmul.mubr.bf16.gmra.mrb[0].mxu0 %v1833
        %v1919 = vpop.f32.mrb[0].mxu0
        %v1920 = vadd.f32 0.0, %v1919
        %v1921 = vpop.f32.mrb[0].mxu0
        %v1922 = vpop.f32.mrb[0].mxu0
        %v1923 = vadd.f32 0.0, %v1922
        %v1924 = vpop.f32.mrb[0].mxu0
        %1925 = vmatprep.mubr.bf16.mxu0 0
        %1926 = vmatmul.mubr.bf16.gmra.mrb[0].mxu0 %v1836
        %v1927 = vpop.f32.mrb[0].mxu0
        %v1928 = vadd.f32 0.0, %v1927
        %v1929 = vpop.f32.mrb[0].mxu0
        %v1930 = vpop.f32.mrb[0].mxu0
        %v1931 = vadd.f32 0.0, %v1930
        %v1932 = vpop.f32.mrb[0].mxu0
        %1933 = vmatprep.mubr.bf16.mxu0 0
        %1934 = vmatmul.mubr.bf16.gmra.mrb[0].mxu0 %v1839
        %v1935 = vpop.f32.mrb[0].mxu0
        %v1936 = vadd.f32 0.0, %v1935
        %v1937 = vpop.f32.mrb[0].mxu0
        %v1938 = vpop.f32.mrb[0].mxu0
        %v1939 = vadd.f32 0.0, %v1938
        %v1940 = vpop.f32.mrb[0].mxu0
        %1941 = vmatprep.mubr.bf16.mxu0 0
        %1942 = vmatmul.mubr.bf16.gmra.mrb[0].mxu0 %v1842
        %v1943 = vpop.f32.mrb[0].mxu0
        %v1944 = vadd.f32 0.0, %v1943
        %v1945 = vpop.f32.mrb[0].mxu0
        %v1946 = vpop.f32.mrb[0].mxu0
        %v1947 = vadd.f32 0.0, %v1946
        %v1948 = vpop.f32.mrb[0].mxu0
        %1949 = vmatprep.mubr.bf16.mxu0 0
        %1950 = vmatmul.mubr.bf16.gmra.mrb[0].mxu0 %v1845
        %v1951 = vpop.f32.mrb[0].mxu0
        %v1952 = vadd.f32 0.0, %v1951
        %v1953 = vpop.f32.mrb[0].mxu0
        %v1954 = vpop.f32.mrb[0].mxu0
        %v1955 = vadd.f32 0.0, %v1954
        %v1956 = vpop.f32.mrb[0].mxu0
        %1957 = vmatprep.mubr.bf16.mxu0 0
        %1958 = vmatmul.mubr.bf16.gmra.mrb[0].mxu0 %v1848
        %v1959 = vpop.f32.mrb[0].mxu0
        %v1960 = vadd.f32 0.0, %v1959
        %v1961 = vpop.f32.mrb[0].mxu0
        %v1962 = vpop.f32.mrb[0].mxu0
        %v1963 = vadd.f32 0.0, %v1962
        %v1964 = vpop.f32.mrb[0].mxu0
        %1965 = vmatprep.mubr.bf16.mxu0 0
        %1966 = vmatmul.mubr.bf16.gmra.mrb[0].mxu0 %v1851
        %v1967 = vpop.f32.mrb[0].mxu0
        %v1968 = vadd.f32 0.0, %v1967
        %v1969 = vpop.f32.mrb[0].mxu0
        %v1970 = vpop.f32.mrb[0].mxu0
        %v1971 = vadd.f32 0.0, %v1970
        %v1972 = vpop.f32.mrb[0].mxu0
        %1973 = vmatprep.mubr.bf16.mxu0 0
        %1974 = vmatmul.mubr.bf16.gmra.mrb[0].mxu0 %v1854
        %v1975 = vpop.f32.mrb[0].mxu0
        %v1976 = vadd.f32 0.0, %v1975
        %v1977 = vpop.f32.mrb[0].mxu0
        %v1978 = vpop.f32.mrb[0].mxu0
        %v1979 = vadd.f32 0.0, %v1978
        %v1980 = vpop.f32.mrb[0].mxu0
        %1981 = vmatprep.mubr.bf16.mxu0 0
        %1982 = vmatmul.mubr.bf16.gmra.mrb[0].mxu0 %v1857
        %v1983 = vpop.f32.mrb[0].mxu0
        %v1984 = vadd.f32 0.0, %v1983
        %v1985 = vpop.f32.mrb[0].mxu0
        %v1986 = vpop.f32.mrb[0].mxu0
        %v1987 = vadd.f32 0.0, %v1986
        %v1988 = vpop.f32.mrb[0].mxu0
        %1989 = vmatprep.mubr.bf16.mxu0 0
        %1990 = vmatmul.mubr.bf16.gmra.mrb[0].mxu0 %v1860
        %v1991 = vpop.f32.mrb[0].mxu0
        %v1992 = vadd.f32 0.0, %v1991
        %v1993 = vpop.f32.mrb[0].mxu0
        %v1994 = vpop.f32.mrb[0].mxu0
        %v1995 = vadd.f32 0.0, %v1994
        %v1996 = vpop.f32.mrb[0].mxu0
        %1997 = vmatprep.mubr.bf16.mxu0 0
        %1998 = vmatmul.mubr.bf16.gmra.mrb[0].mxu0 %v1863
        %v1999 = vpop.f32.mrb[0].mxu0
        %v2000 = vadd.f32 0.0, %v1999
        %v2001 = vpop.f32.mrb[0].mxu0
        %v2002 = vpop.f32.mrb[0].mxu0
        %v2003 = vadd.f32 0.0, %v2002
        %v2004 = vpop.f32.mrb[0].mxu0
        %2005 = vmatprep.mubr.bf16.mxu0 0
        %2006 = vmatmul.mubr.bf16.gmra.mrb[0].mxu0 %v1866
        %v2007 = vpop.f32.mrb[0].mxu0
        %v2008 = vadd.f32 0.0, %v2007
        %v2009 = vpop.f32.mrb[0].mxu0
        %v2010 = vpop.f32.mrb[0].mxu0
        %v2011 = vadd.f32 0.0, %v2010
        %v2012 = vpop.f32.mrb[0].mxu0
        %2013 = vmatprep.mubr.bf16.mxu0 0
        %2014 = vmatmul.mubr.bf16.gmra.mrb[0].mxu0 %v1869
        %v2015 = vpop.f32.mrb[0].mxu0
        %v2016 = vadd.f32 0.0, %v2015
        %v2017 = vpop.f32.mrb[0].mxu0
        %v2018 = vpop.f32.mrb[0].mxu0
        %v2019 = vadd.f32 0.0, %v2018
        %v2020 = vpop.f32.mrb[0].mxu0
        %2021 = vmatprep.mubr.bf16.mxu0 0
        %2022 = vmatmul.mubr.bf16.gmra.mrb[0].mxu0 %v1872
        %v2023 = vpop.f32.mrb[0].mxu0
        %v2024 = vadd.f32 0.0, %v2023
        %v2025 = vpop.f32.mrb[0].mxu0
        %v2026 = vpop.f32.mrb[0].mxu0
        %v2027 = vadd.f32 0.0, %v2026
        %v2028 = vpop.f32.mrb[0].mxu0
        %2029 = vmatprep.mubr.bf16.mxu0 0
        %2030 = vmatmul.mubr.bf16.gmra.mrb[0].mxu0 %v1875
        %v2031 = vpop.f32.mrb[0].mxu0
        %v2032 = vadd.f32 0.0, %v2031
        %v2033 = vpop.f32.mrb[0].mxu0
        %v2034 = vpop.f32.mrb[0].mxu0
        %v2035 = vadd.f32 0.0, %v2034
        %v2036 = vpop.f32.mrb[0].mxu0
        %2037 = vdwg.mxu0
        %v2038 = vadd.f32 %v1667, %v1912
        %v2039 = vadd.f32 %v1668, %v1915
        %v2040 = vadd.f32 %v1669, %v1920
        %v2041 = vadd.f32 %v1670, %v1923
        %v2042 = vadd.f32 %v1671, %v1928
        %v2043 = vadd.f32 %v1672, %v1931
        %v2044 = vadd.f32 %v1673, %v1936
        %v2045 = vadd.f32 %v1674, %v1939
        %v2046 = vadd.f32 %v1675, %v1944
        %v2047 = vadd.f32 %v1676, %v1947
        %v2048 = vadd.f32 %v1677, %v1952
        %v2049 = vadd.f32 %v1678, %v1955
        %v2050 = vadd.f32 %v1679, %v1960
        %v2051 = vadd.f32 %v1680, %v1963
        %v2052 = vadd.f32 %v1681, %v1968
        %v2053 = vadd.f32 %v1682, %v1971
        %v2054 = vadd.f32 %v1683, %v1976
        %v2055 = vadd.f32 %v1684, %v1979
        %v2056 = vadd.f32 %v1685, %v1984
        %v2057 = vadd.f32 %v1686, %v1987
        %v2058 = vadd.f32 %v1687, %v1992
        %v2059 = vadd.f32 %v1688, %v1995
        %v2060 = vadd.f32 %v1689, %v2000
        %v2061 = vadd.f32 %v1690, %v2003
        %v2062 = vadd.f32 %v1691, %v2008
        %v2063 = vadd.f32 %v1692, %v2011
        %v2064 = vadd.f32 %v1693, %v2016
        %v2065 = vadd.f32 %v1694, %v2019
        %v2066 = vadd.f32 %v1695, %v2024
        %v2067 = vadd.f32 %v1696, %v2027
        %v2068 = vadd.f32 %v1697, %v2032
        %v2069 = vadd.f32 %v1698, %v2035
        %v2070 = vld [vmem:[%s1699] sm:$0xf]
        %v2071 = vld [vmem:[%s1699 + $0x4] sm:$0xf]
        %v2072 = vld [vmem:[%s1699 + $0x8] sm:$0x1]
        %v2073 = vld [vmem:[%s1699 + $0xc] sm:$0xf]
        %v2074 = vld [vmem:[%s1699 + $0x10] sm:$0xf]
        %v2075 = vld [vmem:[%s1699 + $0x14] sm:$0x1]
        %v2076 = vld [vmem:[%s1699 + $0x18] sm:$0xf]
        %v2077 = vld [vmem:[%s1699 + $0x1c] sm:$0xf]
        %v2078 = vld [vmem:[%s1699 + $0x20] sm:$0x1]
        %v2079 = vld [vmem:[%s1699 + $0x24] sm:$0xf]
        %v2080 = vld [vmem:[%s1699 + $0x28] sm:$0xf]
        %v2081 = vld [vmem:[%s1699 + $0x2c] sm:$0x1]
        %v2082 = vld [vmem:[%s1699 + $0x30] sm:$0xf]
        %v2083 = vld [vmem:[%s1699 + $0x34] sm:$0xf]
        %v2084 = vld [vmem:[%s1699 + $0x38] sm:$0x1]
        %v2085 = vld [vmem:[%s1699 + $0x3c] sm:$0xf]
        %v2086 = vld [vmem:[%s1699 + $0x40] sm:$0xf]
        %v2087 = vld [vmem:[%s1699 + $0x44] sm:$0x1]
        %v2088 = vld [vmem:[%s1699 + $0x48] sm:$0xf]
        %v2089 = vld [vmem:[%s1699 + $0x4c] sm:$0xf]
        %v2090 = vld [vmem:[%s1699 + $0x50] sm:$0x1]
        %v2091 = vld [vmem:[%s1699 + $0x54] sm:$0xf]
        %v2092 = vld [vmem:[%s1699 + $0x58] sm:$0xf]
        %v2093 = vld [vmem:[%s1699 + $0x5c] sm:$0x1]
        %v2094 = vld [vmem:[%s1699 + $0x60] sm:$0xf]
        %v2095 = vld [vmem:[%s1699 + $0x64] sm:$0xf]
        %v2096 = vld [vmem:[%s1699 + $0x68] sm:$0x1]
        %v2097 = vld [vmem:[%s1699 + $0x6c] sm:$0xf]
        %v2098 = vld [vmem:[%s1699 + $0x70] sm:$0xf]
        %v2099 = vld [vmem:[%s1699 + $0x74] sm:$0x1]
        %v2100 = vld [vmem:[%s1699 + $0x78] sm:$0xf]
        %v2101 = vld [vmem:[%s1699 + $0x7c] sm:$0xf]
        %v2102 = vld [vmem:[%s1699 + $0x80] sm:$0x1]
        %v2103 = vld [vmem:[%s1699 + $0x84] sm:$0xf]
        %v2104 = vld [vmem:[%s1699 + $0x88] sm:$0xf]
        %v2105 = vld [vmem:[%s1699 + $0x8c] sm:$0x1]
        %v2106 = vld [vmem:[%s1699 + $0x90] sm:$0xf]
        %v2107 = vld [vmem:[%s1699 + $0x94] sm:$0xf]
        %v2108 = vld [vmem:[%s1699 + $0x98] sm:$0x1]
        %v2109 = vld [vmem:[%s1699 + $0x9c] sm:$0xf]
        %v2110 = vld [vmem:[%s1699 + $0xa0] sm:$0xf]
        %v2111 = vld [vmem:[%s1699 + $0xa4] sm:$0x1]
        %v2112 = vld [vmem:[%s1699 + $0xa8] sm:$0xf]
        %v2113 = vld [vmem:[%s1699 + $0xac] sm:$0xf]
        %v2114 = vld [vmem:[%s1699 + $0xb0] sm:$0x1]
        %v2115 = vld [vmem:[%s1699 + $0xb4] sm:$0xf]
        %v2116 = vld [vmem:[%s1699 + $0xb8] sm:$0xf]
        %v2117 = vld [vmem:[%s1699 + $0xbc] sm:$0x1]
        %v2119 = vshrl.u32 %v2070, 16
        %v2121 = vrot.slane %v2119, 4
        %v2122 = vshll.u32 %v2070, 16
        %v2124 = vrot.slane %v2122, 5
        %v2125 = vor.u32 %v2121, %v2124
        %v2126 = vrot.slane %v2125, 4
        %v2128 = vshll.u32 %v2071, 16
        %v2130 = vrot.slane %v2128, 5
        %v2131 = vsel %vm269, %v2126, %v2130
        %v2132 = vshrl.u32 %v2071, 16
        %v2134 = vrot.slane %v2132, 4
        %v2135 = vor.u32 %v2134, %v2130
        %v2136 = vrot.slane %v2135, 4
        %v2138 = vshll.u32 %v2072, 16
        %v2140 = vrot.slane %v2138, 5
        %v2141 = vsel %vm269, %v2136, %v2140
        %v2143 = vshrl.u32 %v2073, 16
        %v2145 = vrot.slane %v2143, 4
        %v2146 = vshll.u32 %v2073, 16
        %v2148 = vrot.slane %v2146, 5
        %v2149 = vor.u32 %v2145, %v2148
        %v2150 = vrot.slane %v2149, 4
        %v2152 = vshll.u32 %v2074, 16
        %v2154 = vrot.slane %v2152, 5
        %v2155 = vsel %vm269, %v2150, %v2154
        %v2156 = vshrl.u32 %v2074, 16
        %v2158 = vrot.slane %v2156, 4
        %v2159 = vor.u32 %v2158, %v2154
        %v2160 = vrot.slane %v2159, 4
        %v2162 = vshll.u32 %v2075, 16
        %v2164 = vrot.slane %v2162, 5
        %v2165 = vsel %vm269, %v2160, %v2164
        %v2167 = vshrl.u32 %v2076, 16
        %v2169 = vrot.slane %v2167, 4
        %v2170 = vshll.u32 %v2076, 16
        %v2172 = vrot.slane %v2170, 5
        %v2173 = vor.u32 %v2169, %v2172
        %v2174 = vrot.slane %v2173, 4
        %v2176 = vshll.u32 %v2077, 16
        %v2178 = vrot.slane %v2176, 5
        %v2179 = vsel %vm269, %v2174, %v2178
        %v2180 = vshrl.u32 %v2077, 16
        %v2182 = vrot.slane %v2180, 4
        %v2183 = vor.u32 %v2182, %v2178
        %v2184 = vrot.slane %v2183, 4
        %v2186 = vshll.u32 %v2078, 16
        %v2188 = vrot.slane %v2186, 5
        %v2189 = vsel %vm269, %v2184, %v2188
        %v2191 = vshrl.u32 %v2079, 16
        %v2193 = vrot.slane %v2191, 4
        %v2194 = vshll.u32 %v2079, 16
        %v2196 = vrot.slane %v2194, 5
        %v2197 = vor.u32 %v2193, %v2196
        %v2198 = vrot.slane %v2197, 4
        %v2200 = vshll.u32 %v2080, 16
        %v2202 = vrot.slane %v2200, 5
        %v2203 = vsel %vm269, %v2198, %v2202
        %v2204 = vshrl.u32 %v2080, 16
        %v2206 = vrot.slane %v2204, 4
        %v2207 = vor.u32 %v2206, %v2202
        %v2208 = vrot.slane %v2207, 4
        %v2210 = vshll.u32 %v2081, 16
        %v2212 = vrot.slane %v2210, 5
        %v2213 = vsel %vm269, %v2208, %v2212
        %v2215 = vshrl.u32 %v2082, 16
        %v2217 = vrot.slane %v2215, 4
        %v2218 = vshll.u32 %v2082, 16
        %v2220 = vrot.slane %v2218, 5
        %v2221 = vor.u32 %v2217, %v2220
        %v2222 = vrot.slane %v2221, 4
        %v2224 = vshll.u32 %v2083, 16
        %v2226 = vrot.slane %v2224, 5
        %v2227 = vsel %vm269, %v2222, %v2226
        %v2228 = vshrl.u32 %v2083, 16
        %v2230 = vrot.slane %v2228, 4
        %v2231 = vor.u32 %v2230, %v2226
        %v2232 = vrot.slane %v2231, 4
        %v2234 = vshll.u32 %v2084, 16
        %v2236 = vrot.slane %v2234, 5
        %v2237 = vsel %vm269, %v2232, %v2236
        %v2239 = vshrl.u32 %v2085, 16
        %v2241 = vrot.slane %v2239, 4
        %v2242 = vshll.u32 %v2085, 16
        %v2244 = vrot.slane %v2242, 5
        %v2245 = vor.u32 %v2241, %v2244
        %v2246 = vrot.slane %v2245, 4
        %v2248 = vshll.u32 %v2086, 16
        %v2250 = vrot.slane %v2248, 5
        %v2251 = vsel %vm269, %v2246, %v2250
        %v2252 = vshrl.u32 %v2086, 16
        %v2254 = vrot.slane %v2252, 4
        %v2255 = vor.u32 %v2254, %v2250
        %v2256 = vrot.slane %v2255, 4
        %v2258 = vshll.u32 %v2087, 16
        %v2260 = vrot.slane %v2258, 5
        %v2261 = vsel %vm269, %v2256, %v2260
        %v2263 = vshrl.u32 %v2088, 16
        %v2265 = vrot.slane %v2263, 4
        %v2266 = vshll.u32 %v2088, 16
        %v2268 = vrot.slane %v2266, 5
        %v2269 = vor.u32 %v2265, %v2268
        %v2270 = vrot.slane %v2269, 4
        %v2272 = vshll.u32 %v2089, 16
        %v2274 = vrot.slane %v2272, 5
        %v2275 = vsel %vm269, %v2270, %v2274
        %v2276 = vshrl.u32 %v2089, 16
        %v2278 = vrot.slane %v2276, 4
        %v2279 = vor.u32 %v2278, %v2274
        %v2280 = vrot.slane %v2279, 4
        %v2282 = vshll.u32 %v2090, 16
        %v2284 = vrot.slane %v2282, 5
        %v2285 = vsel %vm269, %v2280, %v2284
        %v2287 = vshrl.u32 %v2091, 16
        %v2289 = vrot.slane %v2287, 4
        %v2290 = vshll.u32 %v2091, 16
        %v2292 = vrot.slane %v2290, 5
        %v2293 = vor.u32 %v2289, %v2292
        %v2294 = vrot.slane %v2293, 4
        %v2296 = vshll.u32 %v2092, 16
        %v2298 = vrot.slane %v2296, 5
        %v2299 = vsel %vm269, %v2294, %v2298
        %v2300 = vshrl.u32 %v2092, 16
        %v2302 = vrot.slane %v2300, 4
        %v2303 = vor.u32 %v2302, %v2298
        %v2304 = vrot.slane %v2303, 4
        %v2306 = vshll.u32 %v2093, 16
        %v2308 = vrot.slane %v2306, 5
        %v2309 = vsel %vm269, %v2304, %v2308
        %v2311 = vshrl.u32 %v2094, 16
        %v2313 = vrot.slane %v2311, 4
        %v2314 = vshll.u32 %v2094, 16
        %v2316 = vrot.slane %v2314, 5
        %v2317 = vor.u32 %v2313, %v2316
        %v2318 = vrot.slane %v2317, 4
        %v2320 = vshll.u32 %v2095, 16
        %v2322 = vrot.slane %v2320, 5
        %v2323 = vsel %vm269, %v2318, %v2322
        %v2324 = vshrl.u32 %v2095, 16
        %v2326 = vrot.slane %v2324, 4
        %v2327 = vor.u32 %v2326, %v2322
        %v2328 = vrot.slane %v2327, 4
        %v2330 = vshll.u32 %v2096, 16
        %v2332 = vrot.slane %v2330, 5
        %v2333 = vsel %vm269, %v2328, %v2332
        %v2335 = vshrl.u32 %v2097, 16
        %v2337 = vrot.slane %v2335, 4
        %v2338 = vshll.u32 %v2097, 16
        %v2340 = vrot.slane %v2338, 5
        %v2341 = vor.u32 %v2337, %v2340
        %v2342 = vrot.slane %v2341, 4
        %v2344 = vshll.u32 %v2098, 16
        %v2346 = vrot.slane %v2344, 5
        %v2347 = vsel %vm269, %v2342, %v2346
        %v2348 = vshrl.u32 %v2098, 16
        %v2350 = vrot.slane %v2348, 4
        %v2351 = vor.u32 %v2350, %v2346
        %v2352 = vrot.slane %v2351, 4
        %v2354 = vshll.u32 %v2099, 16
        %v2356 = vrot.slane %v2354, 5
        %v2357 = vsel %vm269, %v2352, %v2356
        %v2359 = vshrl.u32 %v2100, 16
        %v2361 = vrot.slane %v2359, 4
        %v2362 = vshll.u32 %v2100, 16
        %v2364 = vrot.slane %v2362, 5
        %v2365 = vor.u32 %v2361, %v2364
        %v2366 = vrot.slane %v2365, 4
        %v2368 = vshll.u32 %v2101, 16
        %v2370 = vrot.slane %v2368, 5
        %v2371 = vsel %vm269, %v2366, %v2370
        %v2372 = vshrl.u32 %v2101, 16
        %v2374 = vrot.slane %v2372, 4
        %v2375 = vor.u32 %v2374, %v2370
        %v2376 = vrot.slane %v2375, 4
        %v2378 = vshll.u32 %v2102, 16
        %v2380 = vrot.slane %v2378, 5
        %v2381 = vsel %vm269, %v2376, %v2380
        %v2383 = vshrl.u32 %v2103, 16
        %v2385 = vrot.slane %v2383, 4
        %v2386 = vshll.u32 %v2103, 16
        %v2388 = vrot.slane %v2386, 5
        %v2389 = vor.u32 %v2385, %v2388
        %v2390 = vrot.slane %v2389, 4
        %v2392 = vshll.u32 %v2104, 16
        %v2394 = vrot.slane %v2392, 5
        %v2395 = vsel %vm269, %v2390, %v2394
        %v2396 = vshrl.u32 %v2104, 16
        %v2398 = vrot.slane %v2396, 4
        %v2399 = vor.u32 %v2398, %v2394
        %v2400 = vrot.slane %v2399, 4
        %v2402 = vshll.u32 %v2105, 16
        %v2404 = vrot.slane %v2402, 5
        %v2405 = vsel %vm269, %v2400, %v2404
        %v2407 = vshrl.u32 %v2106, 16
        %v2409 = vrot.slane %v2407, 4
        %v2410 = vshll.u32 %v2106, 16
        %v2412 = vrot.slane %v2410, 5
        %v2413 = vor.u32 %v2409, %v2412
        %v2414 = vrot.slane %v2413, 4
        %v2416 = vshll.u32 %v2107, 16
        %v2418 = vrot.slane %v2416, 5
        %v2419 = vsel %vm269, %v2414, %v2418
        %v2420 = vshrl.u32 %v2107, 16
        %v2422 = vrot.slane %v2420, 4
        %v2423 = vor.u32 %v2422, %v2418
        %v2424 = vrot.slane %v2423, 4
        %v2426 = vshll.u32 %v2108, 16
        %v2428 = vrot.slane %v2426, 5
        %v2429 = vsel %vm269, %v2424, %v2428
        %v2431 = vshrl.u32 %v2109, 16
        %v2433 = vrot.slane %v2431, 4
        %v2434 = vshll.u32 %v2109, 16
        %v2436 = vrot.slane %v2434, 5
        %v2437 = vor.u32 %v2433, %v2436
        %v2438 = vrot.slane %v2437, 4
        %v2440 = vshll.u32 %v2110, 16
        %v2442 = vrot.slane %v2440, 5
        %v2443 = vsel %vm269, %v2438, %v2442
        %v2444 = vshrl.u32 %v2110, 16
        %v2446 = vrot.slane %v2444, 4
        %v2447 = vor.u32 %v2446, %v2442
        %v2448 = vrot.slane %v2447, 4
        %v2450 = vshll.u32 %v2111, 16
        %v2452 = vrot.slane %v2450, 5
        %v2453 = vsel %vm269, %v2448, %v2452
        %v2455 = vshrl.u32 %v2112, 16
        %v2457 = vrot.slane %v2455, 4
        %v2458 = vshll.u32 %v2112, 16
        %v2460 = vrot.slane %v2458, 5
        %v2461 = vor.u32 %v2457, %v2460
        %v2462 = vrot.slane %v2461, 4
        %v2464 = vshll.u32 %v2113, 16
        %v2466 = vrot.slane %v2464, 5
        %v2467 = vsel %vm269, %v2462, %v2466
        %v2468 = vshrl.u32 %v2113, 16
        %v2470 = vrot.slane %v2468, 4
        %v2471 = vor.u32 %v2470, %v2466
        %v2472 = vrot.slane %v2471, 4
        %v2474 = vshll.u32 %v2114, 16
        %v2476 = vrot.slane %v2474, 5
        %v2477 = vsel %vm269, %v2472, %v2476
        %v2479 = vshrl.u32 %v2115, 16
        %v2481 = vrot.slane %v2479, 4
        %v2482 = vshll.u32 %v2115, 16
        %v2484 = vrot.slane %v2482, 5
        %v2485 = vor.u32 %v2481, %v2484
        %v2486 = vrot.slane %v2485, 4
        %v2488 = vshll.u32 %v2116, 16
        %v2490 = vrot.slane %v2488, 5
        %v2491 = vsel %vm269, %v2486, %v2490
        %v2492 = vshrl.u32 %v2116, 16
        %v2494 = vrot.slane %v2492, 4
        %v2495 = vor.u32 %v2494, %v2490
        %v2496 = vrot.slane %v2495, 4
        %v2498 = vshll.u32 %v2117, 16
        %v2500 = vrot.slane %v2498, 5
        %v2501 = vsel %vm269, %v2496, %v2500
        %s2502 = scalar_lea.vmem %s210, 64
        %v2503 = vld [vmem:[%s2502] sm:$0xf]
        %v2504 = vld [vmem:[%s2502 + $0x4] sm:$0xf]
        %v2505 = vld [vmem:[%s2502 + $0x8] sm:$0xf]
        %v2506 = vld [vmem:[%s2502 + $0xc] sm:$0xf]
        %v2507 = vunpack.c.l.b16 %v2131
        %v2508 = vunpack.c.l.b16 %v2141
        %v2509 = vunpack.c.l.b16 %v2155
        %v2510 = vunpack.c.l.b16 %v2165
        %v2511 = vunpack.c.l.b16 %v2179
        %v2512 = vunpack.c.l.b16 %v2189
        %v2513 = vunpack.c.l.b16 %v2203
        %v2514 = vunpack.c.l.b16 %v2213
        %v2515 = vunpack.c.l.b16 %v2227
        %v2516 = vunpack.c.l.b16 %v2237
        %v2517 = vunpack.c.l.b16 %v2251
        %v2518 = vunpack.c.l.b16 %v2261
        %v2519 = vunpack.c.l.b16 %v2275
        %v2520 = vunpack.c.l.b16 %v2285
        %v2521 = vunpack.c.l.b16 %v2299
        %v2522 = vunpack.c.l.b16 %v2309
        %v2523 = vunpack.c.l.b16 %v2323
        %v2524 = vunpack.c.l.b16 %v2333
        %v2525 = vunpack.c.l.b16 %v2347
        %v2526 = vunpack.c.l.b16 %v2357
        %v2527 = vunpack.c.l.b16 %v2371
        %v2528 = vunpack.c.l.b16 %v2381
        %v2529 = vunpack.c.l.b16 %v2395
        %v2530 = vunpack.c.l.b16 %v2405
        %v2531 = vunpack.c.l.b16 %v2419
        %v2532 = vunpack.c.l.b16 %v2429
        %v2533 = vunpack.c.l.b16 %v2443
        %v2534 = vunpack.c.l.b16 %v2453
        %v2535 = vunpack.c.l.b16 %v2467
        %v2536 = vunpack.c.l.b16 %v2477
        %v2537 = vunpack.c.l.b16 %v2491
        %v2538 = vunpack.c.l.b16 %v2501
        %v2539 = vpack.c.b16 %v2508, %v2507
        %v2540 = vpack.c.b16 %v2510, %v2509
        %v2541 = vpack.c.b16 %v2512, %v2511
        %v2542 = vpack.c.b16 %v2514, %v2513
        %v2543 = vpack.c.b16 %v2516, %v2515
        %v2544 = vpack.c.b16 %v2518, %v2517
        %v2545 = vpack.c.b16 %v2520, %v2519
        %v2546 = vpack.c.b16 %v2522, %v2521
        %v2547 = vpack.c.b16 %v2524, %v2523
        %v2548 = vpack.c.b16 %v2526, %v2525
        %v2549 = vpack.c.b16 %v2528, %v2527
        %v2550 = vpack.c.b16 %v2530, %v2529
        %v2551 = vpack.c.b16 %v2532, %v2531
        %v2552 = vpack.c.b16 %v2534, %v2533
        %v2553 = vpack.c.b16 %v2536, %v2535
        %v2554 = vpack.c.b16 %v2538, %v2537
        %v2559 = vunpack.c.l.b16 %v2503
        %v2560 = vunpack.c.l.b16 %v2504
        %v2561 = vunpack.c.l.b16 %v2505
        %v2562 = vunpack.c.l.b16 %v2506
        %v2563 = vpack.c.b16 %v2560, %v2559
        %v2564 = vpack.c.b16 %v2562, %v2561
        %v2568 = vsel %vm719, %v2539, 0
        %v2571 = vsel %vm719, %v2540, 0
        %v2574 = vsel %vm719, %v2541, 0
        %v2577 = vsel %vm719, %v2542, 0
        %v2580 = vsel %vm719, %v2543, 0
        %v2583 = vsel %vm719, %v2544, 0
        %v2586 = vsel %vm719, %v2545, 0
        %v2589 = vsel %vm719, %v2546, 0
        %v2592 = vsel %vm719, %v2547, 0
        %v2595 = vsel %vm719, %v2548, 0
        %v2598 = vsel %vm719, %v2549, 0
        %v2601 = vsel %vm719, %v2550, 0
        %v2604 = vsel %vm719, %v2551, 0
        %v2607 = vsel %vm719, %v2552, 0
        %v2610 = vsel %vm719, %v2553, 0
        %v2613 = vsel %vm719, %v2554, 0
        %2615 = vmatprep.subr.bf16.mxu0 0
        %2616 = vmatpush1.bf16.msra.mxu0 %v2563
        %2617 = vmatprep.subr.bf16.mxu0 0
        %2618 = vmatpush1.bf16.msra.mxu0 %v2564
        %2619 = vmatprep.subr.bf16.mxu0 0
        %2620 = vmatpush1.bf16.msra.mxu0 0
        %2621 = vmatprep.subr.bf16.mxu0 0
        %2622 = vmatpush1.bf16.msra.mxu0 0
        %2623 = vmatprep.subr.bf16.mxu0 0
        %2624 = vmatpush1.bf16.msra.mxu0 0
        %2625 = vmatprep.subr.bf16.mxu0 0
        %2626 = vmatpush1.bf16.msra.mxu0 0
        %2627 = vmatprep.subr.bf16.mxu0 0
        %2628 = vmatpush1.bf16.msra.mxu0 0
        %2629 = vmatprep.subr.bf16.mxu0 0
        %2630 = vmatpush1.bf16.msra.mxu0 0
        %2631 = vmatprep.subr.bf16.mxu0 0
        %2632 = vmatpush1.bf16.msra.mxu0 0
        %2633 = vmatprep.subr.bf16.mxu0 0
        %2634 = vmatpush1.bf16.msra.mxu0 0
        %2635 = vmatprep.subr.bf16.mxu0 0
        %2636 = vmatpush1.bf16.msra.mxu0 0
        %2637 = vmatprep.subr.bf16.mxu0 0
        %2638 = vmatpush1.bf16.msra.mxu0 0
        %2639 = vmatprep.subr.bf16.mxu0 0
        %2640 = vmatpush1.bf16.msra.mxu0 0
        %2641 = vmatprep.subr.bf16.mxu0 0
        %2642 = vmatpush1.bf16.msra.mxu0 0
        %2643 = vmatprep.subr.bf16.mxu0 0
        %2644 = vmatpush1.bf16.msra.mxu0 0
        %2645 = vmatprep.subr.bf16.mxu0 0
        %2646 = vmatpush1.bf16.msra.mxu0 0
        %2647 = vmatprep.mubr.bf16.mxu0 0
        %2648 = vmatmul.mubr.bf16.gmra.mrb[0].mxu0 %v2568
        %v2649 = vpop.f32.mrb[0].mxu0
        %v2650 = vadd.f32 0.0, %v2649
        %v2651 = vpop.f32.mrb[0].mxu0
        %v2652 = vpop.f32.mrb[0].mxu0
        %v2653 = vadd.f32 0.0, %v2652
        %v2654 = vpop.f32.mrb[0].mxu0
        %2655 = vmatprep.mubr.bf16.mxu0 0
        %2656 = vmatmul.mubr.bf16.gmra.mrb[0].mxu0 %v2571
        %v2657 = vpop.f32.mrb[0].mxu0
        %v2658 = vadd.f32 0.0, %v2657
        %v2659 = vpop.f32.mrb[0].mxu0
        %v2660 = vpop.f32.mrb[0].mxu0
        %v2661 = vadd.f32 0.0, %v2660
        %v2662 = vpop.f32.mrb[0].mxu0
        %2663 = vmatprep.mubr.bf16.mxu0 0
        %2664 = vmatmul.mubr.bf16.gmra.mrb[0].mxu0 %v2574
        %v2665 = vpop.f32.mrb[0].mxu0
        %v2666 = vadd.f32 0.0, %v2665
        %v2667 = vpop.f32.mrb[0].mxu0
        %v2668 = vpop.f32.mrb[0].mxu0
        %v2669 = vadd.f32 0.0, %v2668
        %v2670 = vpop.f32.mrb[0].mxu0
        %2671 = vmatprep.mubr.bf16.mxu0 0
        %2672 = vmatmul.mubr.bf16.gmra.mrb[0].mxu0 %v2577
        %v2673 = vpop.f32.mrb[0].mxu0
        %v2674 = vadd.f32 0.0, %v2673
        %v2675 = vpop.f32.mrb[0].mxu0
        %v2676 = vpop.f32.mrb[0].mxu0
        %v2677 = vadd.f32 0.0, %v2676
        %v2678 = vpop.f32.mrb[0].mxu0
        %2679 = vmatprep.mubr.bf16.mxu0 0
        %2680 = vmatmul.mubr.bf16.gmra.mrb[0].mxu0 %v2580
        %v2681 = vpop.f32.mrb[0].mxu0
        %v2682 = vadd.f32 0.0, %v2681
        %v2683 = vpop.f32.mrb[0].mxu0
        %v2684 = vpop.f32.mrb[0].mxu0
        %v2685 = vadd.f32 0.0, %v2684
        %v2686 = vpop.f32.mrb[0].mxu0
        %2687 = vmatprep.mubr.bf16.mxu0 0
        %2688 = vmatmul.mubr.bf16.gmra.mrb[0].mxu0 %v2583
        %v2689 = vpop.f32.mrb[0].mxu0
        %v2690 = vadd.f32 0.0, %v2689
        %v2691 = vpop.f32.mrb[0].mxu0
        %v2692 = vpop.f32.mrb[0].mxu0
        %v2693 = vadd.f32 0.0, %v2692
        %v2694 = vpop.f32.mrb[0].mxu0
        %2695 = vmatprep.mubr.bf16.mxu0 0
        %2696 = vmatmul.mubr.bf16.gmra.mrb[0].mxu0 %v2586
        %v2697 = vpop.f32.mrb[0].mxu0
        %v2698 = vadd.f32 0.0, %v2697
        %v2699 = vpop.f32.mrb[0].mxu0
        %v2700 = vpop.f32.mrb[0].mxu0
        %v2701 = vadd.f32 0.0, %v2700
        %v2702 = vpop.f32.mrb[0].mxu0
        %2703 = vmatprep.mubr.bf16.mxu0 0
        %2704 = vmatmul.mubr.bf16.gmra.mrb[0].mxu0 %v2589
        %v2705 = vpop.f32.mrb[0].mxu0
        %v2706 = vadd.f32 0.0, %v2705
        %v2707 = vpop.f32.mrb[0].mxu0
        %v2708 = vpop.f32.mrb[0].mxu0
        %v2709 = vadd.f32 0.0, %v2708
        %v2710 = vpop.f32.mrb[0].mxu0
        %2711 = vmatprep.mubr.bf16.mxu0 0
        %2712 = vmatmul.mubr.bf16.gmra.mrb[0].mxu0 %v2592
        %v2713 = vpop.f32.mrb[0].mxu0
        %v2714 = vadd.f32 0.0, %v2713
        %v2715 = vpop.f32.mrb[0].mxu0
        %v2716 = vpop.f32.mrb[0].mxu0
        %v2717 = vadd.f32 0.0, %v2716
        %v2718 = vpop.f32.mrb[0].mxu0
        %2719 = vmatprep.mubr.bf16.mxu0 0
        %2720 = vmatmul.mubr.bf16.gmra.mrb[0].mxu0 %v2595
        %v2721 = vpop.f32.mrb[0].mxu0
        %v2722 = vadd.f32 0.0, %v2721
        %v2723 = vpop.f32.mrb[0].mxu0
        %v2724 = vpop.f32.mrb[0].mxu0
        %v2725 = vadd.f32 0.0, %v2724
        %v2726 = vpop.f32.mrb[0].mxu0
        %2727 = vmatprep.mubr.bf16.mxu0 0
        %2728 = vmatmul.mubr.bf16.gmra.mrb[0].mxu0 %v2598
        %v2729 = vpop.f32.mrb[0].mxu0
        %v2730 = vadd.f32 0.0, %v2729
        %v2731 = vpop.f32.mrb[0].mxu0
        %v2732 = vpop.f32.mrb[0].mxu0
        %v2733 = vadd.f32 0.0, %v2732
        %v2734 = vpop.f32.mrb[0].mxu0
        %2735 = vmatprep.mubr.bf16.mxu0 0
        %2736 = vmatmul.mubr.bf16.gmra.mrb[0].mxu0 %v2601
        %v2737 = vpop.f32.mrb[0].mxu0
        %v2738 = vadd.f32 0.0, %v2737
        %v2739 = vpop.f32.mrb[0].mxu0
        %v2740 = vpop.f32.mrb[0].mxu0
        %v2741 = vadd.f32 0.0, %v2740
        %v2742 = vpop.f32.mrb[0].mxu0
        %2743 = vmatprep.mubr.bf16.mxu0 0
        %2744 = vmatmul.mubr.bf16.gmra.mrb[0].mxu0 %v2604
        %v2745 = vpop.f32.mrb[0].mxu0
        %v2746 = vadd.f32 0.0, %v2745
        %v2747 = vpop.f32.mrb[0].mxu0
        %v2748 = vpop.f32.mrb[0].mxu0
        %v2749 = vadd.f32 0.0, %v2748
        %v2750 = vpop.f32.mrb[0].mxu0
        %2751 = vmatprep.mubr.bf16.mxu0 0
        %2752 = vmatmul.mubr.bf16.gmra.mrb[0].mxu0 %v2607
        %v2753 = vpop.f32.mrb[0].mxu0
        %v2754 = vadd.f32 0.0, %v2753
        %v2755 = vpop.f32.mrb[0].mxu0
        %v2756 = vpop.f32.mrb[0].mxu0
        %v2757 = vadd.f32 0.0, %v2756
        %v2758 = vpop.f32.mrb[0].mxu0
        %2759 = vmatprep.mubr.bf16.mxu0 0
        %2760 = vmatmul.mubr.bf16.gmra.mrb[0].mxu0 %v2610
        %v2761 = vpop.f32.mrb[0].mxu0
        %v2762 = vadd.f32 0.0, %v2761
        %v2763 = vpop.f32.mrb[0].mxu0
        %v2764 = vpop.f32.mrb[0].mxu0
        %v2765 = vadd.f32 0.0, %v2764
        %v2766 = vpop.f32.mrb[0].mxu0
        %2767 = vmatprep.mubr.bf16.mxu0 0
        %2768 = vmatmul.mubr.bf16.gmra.mrb[0].mxu0 %v2613
        %v2769 = vpop.f32.mrb[0].mxu0
        %v2770 = vadd.f32 0.0, %v2769
        %v2771 = vpop.f32.mrb[0].mxu0
        %v2772 = vpop.f32.mrb[0].mxu0
        %v2773 = vadd.f32 0.0, %v2772
        %v2774 = vpop.f32.mrb[0].mxu0
        %2775 = vdwg.mxu0
        %v2776 = vadd.f32 %v2038, %v2650
        %v2777 = vadd.f32 %v2039, %v2653
        %v2778 = vadd.f32 %v2040, %v2658
        %v2779 = vadd.f32 %v2041, %v2661
        %v2780 = vadd.f32 %v2042, %v2666
        %v2781 = vadd.f32 %v2043, %v2669
        %v2782 = vadd.f32 %v2044, %v2674
        %v2783 = vadd.f32 %v2045, %v2677
        %v2784 = vadd.f32 %v2046, %v2682
        %v2785 = vadd.f32 %v2047, %v2685
        %v2786 = vadd.f32 %v2048, %v2690
        %v2787 = vadd.f32 %v2049, %v2693
        %v2788 = vadd.f32 %v2050, %v2698
        %v2789 = vadd.f32 %v2051, %v2701
        %v2790 = vadd.f32 %v2052, %v2706
        %v2791 = vadd.f32 %v2053, %v2709
        %v2792 = vadd.f32 %v2054, %v2714
        %v2793 = vadd.f32 %v2055, %v2717
        %v2794 = vadd.f32 %v2056, %v2722
        %v2795 = vadd.f32 %v2057, %v2725
        %v2796 = vadd.f32 %v2058, %v2730
        %v2797 = vadd.f32 %v2059, %v2733
        %v2798 = vadd.f32 %v2060, %v2738
        %v2799 = vadd.f32 %v2061, %v2741
        %v2800 = vadd.f32 %v2062, %v2746
        %v2801 = vadd.f32 %v2063, %v2749
        %v2802 = vadd.f32 %v2064, %v2754
        %v2803 = vadd.f32 %v2065, %v2757
        %v2804 = vadd.f32 %v2066, %v2762
        %v2805 = vadd.f32 %v2067, %v2765
        %v2806 = vadd.f32 %v2068, %v2770
        %v2807 = vadd.f32 %v2069, %v2773
        %v2808 = vld [vmem:[%s1699] sm:$0xe]
        %v2809 = vld [vmem:[%s1699 + $0xc] sm:$0xe]
        %v2810 = vld [vmem:[%s1699 + $0x18] sm:$0xe]
        %v2811 = vld [vmem:[%s1699 + $0x24] sm:$0xe]
        %v2812 = vld [vmem:[%s1699 + $0x30] sm:$0xe]
        %v2813 = vld [vmem:[%s1699 + $0x3c] sm:$0xe]
        %v2814 = vld [vmem:[%s1699 + $0x48] sm:$0xe]
        %v2815 = vld [vmem:[%s1699 + $0x54] sm:$0xe]
        %v2816 = vld [vmem:[%s1699 + $0x60] sm:$0xe]
        %v2817 = vld [vmem:[%s1699 + $0x6c] sm:$0xe]
        %v2818 = vld [vmem:[%s1699 + $0x78] sm:$0xe]
        %v2819 = vld [vmem:[%s1699 + $0x84] sm:$0xe]
        %v2820 = vld [vmem:[%s1699 + $0x90] sm:$0xe]
        %v2821 = vld [vmem:[%s1699 + $0x9c] sm:$0xe]
        %v2822 = vld [vmem:[%s1699 + $0xa8] sm:$0xe]
        %v2823 = vld [vmem:[%s1699 + $0xb4] sm:$0xe]
        %v2872 = vrot.slane %v2808, 5
        %v2873 = vrot.slane %v2872, 4
        %v2874 = vrot.slane %v2071, 5
        %v2875 = vsel %vm1280, %v2873, %v2874
        %v2876 = vrot.slane %v2874, 4
        %v2877 = vrot.slane %v2072, 5
        %v2878 = vsel %vm1280, %v2876, %v2877
        %v2879 = vrot.slane %v2809, 5
        %v2880 = vrot.slane %v2879, 4
        %v2881 = vrot.slane %v2074, 5
        %v2882 = vsel %vm1280, %v2880, %v2881
        %v2883 = vrot.slane %v2881, 4
        %v2884 = vrot.slane %v2075, 5
        %v2885 = vsel %vm1280, %v2883, %v2884
        %v2886 = vrot.slane %v2810, 5
        %v2887 = vrot.slane %v2886, 4
        %v2888 = vrot.slane %v2077, 5
        %v2889 = vsel %vm1280, %v2887, %v2888
        %v2890 = vrot.slane %v2888, 4
        %v2891 = vrot.slane %v2078, 5
        %v2892 = vsel %vm1280, %v2890, %v2891
        %v2893 = vrot.slane %v2811, 5
        %v2894 = vrot.slane %v2893, 4
        %v2895 = vrot.slane %v2080, 5
        %v2896 = vsel %vm1280, %v2894, %v2895
        %v2897 = vrot.slane %v2895, 4
        %v2898 = vrot.slane %v2081, 5
        %v2899 = vsel %vm1280, %v2897, %v2898
        %v2900 = vrot.slane %v2812, 5
        %v2901 = vrot.slane %v2900, 4
        %v2902 = vrot.slane %v2083, 5
        %v2903 = vsel %vm1280, %v2901, %v2902
        %v2904 = vrot.slane %v2902, 4
        %v2905 = vrot.slane %v2084, 5
        %v2906 = vsel %vm1280, %v2904, %v2905
        %v2907 = vrot.slane %v2813, 5
        %v2908 = vrot.slane %v2907, 4
        %v2909 = vrot.slane %v2086, 5
        %v2910 = vsel %vm1280, %v2908, %v2909
        %v2911 = vrot.slane %v2909, 4
        %v2912 = vrot.slane %v2087, 5
        %v2913 = vsel %vm1280, %v2911, %v2912
        %v2914 = vrot.slane %v2814, 5
        %v2915 = vrot.slane %v2914, 4
        %v2916 = vrot.slane %v2089, 5
        %v2917 = vsel %vm1280, %v2915, %v2916
        %v2918 = vrot.slane %v2916, 4
        %v2919 = vrot.slane %v2090, 5
        %v2920 = vsel %vm1280, %v2918, %v2919
        %v2921 = vrot.slane %v2815, 5
        %v2922 = vrot.slane %v2921, 4
        %v2923 = vrot.slane %v2092, 5
        %v2924 = vsel %vm1280, %v2922, %v2923
        %v2925 = vrot.slane %v2923, 4
        %v2926 = vrot.slane %v2093, 5
        %v2927 = vsel %vm1280, %v2925, %v2926
        %v2928 = vrot.slane %v2816, 5
        %v2929 = vrot.slane %v2928, 4
        %v2930 = vrot.slane %v2095, 5
        %v2931 = vsel %vm1280, %v2929, %v2930
        %v2932 = vrot.slane %v2930, 4
        %v2933 = vrot.slane %v2096, 5
        %v2934 = vsel %vm1280, %v2932, %v2933
        %v2935 = vrot.slane %v2817, 5
        %v2936 = vrot.slane %v2935, 4
        %v2937 = vrot.slane %v2098, 5
        %v2938 = vsel %vm1280, %v2936, %v2937
        %v2939 = vrot.slane %v2937, 4
        %v2940 = vrot.slane %v2099, 5
        %v2941 = vsel %vm1280, %v2939, %v2940
        %v2942 = vrot.slane %v2818, 5
        %v2943 = vrot.slane %v2942, 4
        %v2944 = vrot.slane %v2101, 5
        %v2945 = vsel %vm1280, %v2943, %v2944
        %v2946 = vrot.slane %v2944, 4
        %v2947 = vrot.slane %v2102, 5
        %v2948 = vsel %vm1280, %v2946, %v2947
        %v2949 = vrot.slane %v2819, 5
        %v2950 = vrot.slane %v2949, 4
        %v2951 = vrot.slane %v2104, 5
        %v2952 = vsel %vm1280, %v2950, %v2951
        %v2953 = vrot.slane %v2951, 4
        %v2954 = vrot.slane %v2105, 5
        %v2955 = vsel %vm1280, %v2953, %v2954
        %v2956 = vrot.slane %v2820, 5
        %v2957 = vrot.slane %v2956, 4
        %v2958 = vrot.slane %v2107, 5
        %v2959 = vsel %vm1280, %v2957, %v2958
        %v2960 = vrot.slane %v2958, 4
        %v2961 = vrot.slane %v2108, 5
        %v2962 = vsel %vm1280, %v2960, %v2961
        %v2963 = vrot.slane %v2821, 5
        %v2964 = vrot.slane %v2963, 4
        %v2965 = vrot.slane %v2110, 5
        %v2966 = vsel %vm1280, %v2964, %v2965
        %v2967 = vrot.slane %v2965, 4
        %v2968 = vrot.slane %v2111, 5
        %v2969 = vsel %vm1280, %v2967, %v2968
        %v2970 = vrot.slane %v2822, 5
        %v2971 = vrot.slane %v2970, 4
        %v2972 = vrot.slane %v2113, 5
        %v2973 = vsel %vm1280, %v2971, %v2972
        %v2974 = vrot.slane %v2972, 4
        %v2975 = vrot.slane %v2114, 5
        %v2976 = vsel %vm1280, %v2974, %v2975
        %v2977 = vrot.slane %v2823, 5
        %v2978 = vrot.slane %v2977, 4
        %v2979 = vrot.slane %v2116, 5
        %v2980 = vsel %vm1280, %v2978, %v2979
        %v2981 = vrot.slane %v2979, 4
        %v2982 = vrot.slane %v2117, 5
        %v2983 = vsel %vm1280, %v2981, %v2982
        %s2984 = scalar_lea.vmem %s210, 80
        %v2985 = vld [vmem:[%s2984] sm:$0xf]
        %v2986 = vld [vmem:[%s2984 + $0x4] sm:$0xf]
        %v2987 = vld [vmem:[%s2984 + $0x8] sm:$0xf]
        %v2988 = vld [vmem:[%s2984 + $0xc] sm:$0xf]
        %v2989 = vunpack.c.l.b16 %v2875
        %v2990 = vunpack.c.l.b16 %v2878
        %v2991 = vunpack.c.l.b16 %v2882
        %v2992 = vunpack.c.l.b16 %v2885
        %v2993 = vunpack.c.l.b16 %v2889
        %v2994 = vunpack.c.l.b16 %v2892
        %v2995 = vunpack.c.l.b16 %v2896
        %v2996 = vunpack.c.l.b16 %v2899
        %v2997 = vunpack.c.l.b16 %v2903
        %v2998 = vunpack.c.l.b16 %v2906
        %v2999 = vunpack.c.l.b16 %v2910
        %v3000 = vunpack.c.l.b16 %v2913
        %v3001 = vunpack.c.l.b16 %v2917
        %v3002 = vunpack.c.l.b16 %v2920
        %v3003 = vunpack.c.l.b16 %v2924
        %v3004 = vunpack.c.l.b16 %v2927
        %v3005 = vunpack.c.l.b16 %v2931
        %v3006 = vunpack.c.l.b16 %v2934
        %v3007 = vunpack.c.l.b16 %v2938
        %v3008 = vunpack.c.l.b16 %v2941
        %v3009 = vunpack.c.l.b16 %v2945
        %v3010 = vunpack.c.l.b16 %v2948
        %v3011 = vunpack.c.l.b16 %v2952
        %v3012 = vunpack.c.l.b16 %v2955
        %v3013 = vunpack.c.l.b16 %v2959
        %v3014 = vunpack.c.l.b16 %v2962
        %v3015 = vunpack.c.l.b16 %v2966
        %v3016 = vunpack.c.l.b16 %v2969
        %v3017 = vunpack.c.l.b16 %v2973
        %v3018 = vunpack.c.l.b16 %v2976
        %v3019 = vunpack.c.l.b16 %v2980
        %v3020 = vunpack.c.l.b16 %v2983
        %v3021 = vpack.c.b16 %v2990, %v2989
        %v3022 = vpack.c.b16 %v2992, %v2991
        %v3023 = vpack.c.b16 %v2994, %v2993
        %v3024 = vpack.c.b16 %v2996, %v2995
        %v3025 = vpack.c.b16 %v2998, %v2997
        %v3026 = vpack.c.b16 %v3000, %v2999
        %v3027 = vpack.c.b16 %v3002, %v3001
        %v3028 = vpack.c.b16 %v3004, %v3003
        %v3029 = vpack.c.b16 %v3006, %v3005
        %v3030 = vpack.c.b16 %v3008, %v3007
        %v3031 = vpack.c.b16 %v3010, %v3009
        %v3032 = vpack.c.b16 %v3012, %v3011
        %v3033 = vpack.c.b16 %v3014, %v3013
        %v3034 = vpack.c.b16 %v3016, %v3015
        %v3035 = vpack.c.b16 %v3018, %v3017
        %v3036 = vpack.c.b16 %v3020, %v3019
        %v3041 = vunpack.c.l.b16 %v2985
        %v3042 = vunpack.c.l.b16 %v2986
        %v3043 = vunpack.c.l.b16 %v2987
        %v3044 = vunpack.c.l.b16 %v2988
        %v3045 = vpack.c.b16 %v3042, %v3041
        %v3046 = vpack.c.b16 %v3044, %v3043
        %v3050 = vsel %vm719, %v3021, 0
        %v3053 = vsel %vm719, %v3022, 0
        %v3056 = vsel %vm719, %v3023, 0
        %v3059 = vsel %vm719, %v3024, 0
        %v3062 = vsel %vm719, %v3025, 0
        %v3065 = vsel %vm719, %v3026, 0
        %v3068 = vsel %vm719, %v3027, 0
        %v3071 = vsel %vm719, %v3028, 0
        %v3074 = vsel %vm719, %v3029, 0
        %v3077 = vsel %vm719, %v3030, 0
        %v3080 = vsel %vm719, %v3031, 0
        %v3083 = vsel %vm719, %v3032, 0
        %v3086 = vsel %vm719, %v3033, 0
        %v3089 = vsel %vm719, %v3034, 0
        %v3092 = vsel %vm719, %v3035, 0
        %v3095 = vsel %vm719, %v3036, 0
        %3097 = vmatprep.subr.bf16.mxu0 0
        %3098 = vmatpush1.bf16.msra.mxu0 %v3045
        %3099 = vmatprep.subr.bf16.mxu0 0
        %3100 = vmatpush1.bf16.msra.mxu0 %v3046
        %3101 = vmatprep.subr.bf16.mxu0 0
        %3102 = vmatpush1.bf16.msra.mxu0 0
        %3103 = vmatprep.subr.bf16.mxu0 0
        %3104 = vmatpush1.bf16.msra.mxu0 0
        %3105 = vmatprep.subr.bf16.mxu0 0
        %3106 = vmatpush1.bf16.msra.mxu0 0
        %3107 = vmatprep.subr.bf16.mxu0 0
        %3108 = vmatpush1.bf16.msra.mxu0 0
        %3109 = vmatprep.subr.bf16.mxu0 0
        %3110 = vmatpush1.bf16.msra.mxu0 0
        %3111 = vmatprep.subr.bf16.mxu0 0
        %3112 = vmatpush1.bf16.msra.mxu0 0
        %3113 = vmatprep.subr.bf16.mxu0 0
        %3114 = vmatpush1.bf16.msra.mxu0 0
        %3115 = vmatprep.subr.bf16.mxu0 0
        %3116 = vmatpush1.bf16.msra.mxu0 0
        %3117 = vmatprep.subr.bf16.mxu0 0
        %3118 = vmatpush1.bf16.msra.mxu0 0
        %3119 = vmatprep.subr.bf16.mxu0 0
        %3120 = vmatpush1.bf16.msra.mxu0 0
        %3121 = vmatprep.subr.bf16.mxu0 0
        %3122 = vmatpush1.bf16.msra.mxu0 0
        %3123 = vmatprep.subr.bf16.mxu0 0
        %3124 = vmatpush1.bf16.msra.mxu0 0
        %3125 = vmatprep.subr.bf16.mxu0 0
        %3126 = vmatpush1.bf16.msra.mxu0 0
        %3127 = vmatprep.subr.bf16.mxu0 0
        %3128 = vmatpush1.bf16.msra.mxu0 0
        %3129 = vmatprep.mubr.bf16.mxu0 0
        %3130 = vmatmul.mubr.bf16.gmra.mrb[0].mxu0 %v3050
        %v3131 = vpop.f32.mrb[0].mxu0
        %v3132 = vadd.f32 0.0, %v3131
        %v3133 = vpop.f32.mrb[0].mxu0
        %v3134 = vpop.f32.mrb[0].mxu0
        %v3135 = vadd.f32 0.0, %v3134
        %v3136 = vpop.f32.mrb[0].mxu0
        %3137 = vmatprep.mubr.bf16.mxu0 0
        %3138 = vmatmul.mubr.bf16.gmra.mrb[0].mxu0 %v3053
        %v3139 = vpop.f32.mrb[0].mxu0
        %v3140 = vadd.f32 0.0, %v3139
        %v3141 = vpop.f32.mrb[0].mxu0
        %v3142 = vpop.f32.mrb[0].mxu0
        %v3143 = vadd.f32 0.0, %v3142
        %v3144 = vpop.f32.mrb[0].mxu0
        %3145 = vmatprep.mubr.bf16.mxu0 0
        %3146 = vmatmul.mubr.bf16.gmra.mrb[0].mxu0 %v3056
        %v3147 = vpop.f32.mrb[0].mxu0
        %v3148 = vadd.f32 0.0, %v3147
        %v3149 = vpop.f32.mrb[0].mxu0
        %v3150 = vpop.f32.mrb[0].mxu0
        %v3151 = vadd.f32 0.0, %v3150
        %v3152 = vpop.f32.mrb[0].mxu0
        %3153 = vmatprep.mubr.bf16.mxu0 0
        %3154 = vmatmul.mubr.bf16.gmra.mrb[0].mxu0 %v3059
        %v3155 = vpop.f32.mrb[0].mxu0
        %v3156 = vadd.f32 0.0, %v3155
        %v3157 = vpop.f32.mrb[0].mxu0
        %v3158 = vpop.f32.mrb[0].mxu0
        %v3159 = vadd.f32 0.0, %v3158
        %v3160 = vpop.f32.mrb[0].mxu0
        %3161 = vmatprep.mubr.bf16.mxu0 0
        %3162 = vmatmul.mubr.bf16.gmra.mrb[0].mxu0 %v3062
        %v3163 = vpop.f32.mrb[0].mxu0
        %v3164 = vadd.f32 0.0, %v3163
        %v3165 = vpop.f32.mrb[0].mxu0
        %v3166 = vpop.f32.mrb[0].mxu0
        %v3167 = vadd.f32 0.0, %v3166
        %v3168 = vpop.f32.mrb[0].mxu0
        %3169 = vmatprep.mubr.bf16.mxu0 0
        %3170 = vmatmul.mubr.bf16.gmra.mrb[0].mxu0 %v3065
        %v3171 = vpop.f32.mrb[0].mxu0
        %v3172 = vadd.f32 0.0, %v3171
        %v3173 = vpop.f32.mrb[0].mxu0
        %v3174 = vpop.f32.mrb[0].mxu0
        %v3175 = vadd.f32 0.0, %v3174
        %v3176 = vpop.f32.mrb[0].mxu0
        %3177 = vmatprep.mubr.bf16.mxu0 0
        %3178 = vmatmul.mubr.bf16.gmra.mrb[0].mxu0 %v3068
        %v3179 = vpop.f32.mrb[0].mxu0
        %v3180 = vadd.f32 0.0, %v3179
        %v3181 = vpop.f32.mrb[0].mxu0
        %v3182 = vpop.f32.mrb[0].mxu0
        %v3183 = vadd.f32 0.0, %v3182
        %v3184 = vpop.f32.mrb[0].mxu0
        %3185 = vmatprep.mubr.bf16.mxu0 0
        %3186 = vmatmul.mubr.bf16.gmra.mrb[0].mxu0 %v3071
        %v3187 = vpop.f32.mrb[0].mxu0
        %v3188 = vadd.f32 0.0, %v3187
        %v3189 = vpop.f32.mrb[0].mxu0
        %v3190 = vpop.f32.mrb[0].mxu0
        %v3191 = vadd.f32 0.0, %v3190
        %v3192 = vpop.f32.mrb[0].mxu0
        %3193 = vmatprep.mubr.bf16.mxu0 0
        %3194 = vmatmul.mubr.bf16.gmra.mrb[0].mxu0 %v3074
        %v3195 = vpop.f32.mrb[0].mxu0
        %v3196 = vadd.f32 0.0, %v3195
        %v3197 = vpop.f32.mrb[0].mxu0
        %v3198 = vpop.f32.mrb[0].mxu0
        %v3199 = vadd.f32 0.0, %v3198
        %v3200 = vpop.f32.mrb[0].mxu0
        %3201 = vmatprep.mubr.bf16.mxu0 0
        %3202 = vmatmul.mubr.bf16.gmra.mrb[0].mxu0 %v3077
        %v3203 = vpop.f32.mrb[0].mxu0
        %v3204 = vadd.f32 0.0, %v3203
        %v3205 = vpop.f32.mrb[0].mxu0
        %v3206 = vpop.f32.mrb[0].mxu0
        %v3207 = vadd.f32 0.0, %v3206
        %v3208 = vpop.f32.mrb[0].mxu0
        %3209 = vmatprep.mubr.bf16.mxu0 0
        %3210 = vmatmul.mubr.bf16.gmra.mrb[0].mxu0 %v3080
        %v3211 = vpop.f32.mrb[0].mxu0
        %v3212 = vadd.f32 0.0, %v3211
        %v3213 = vpop.f32.mrb[0].mxu0
        %v3214 = vpop.f32.mrb[0].mxu0
        %v3215 = vadd.f32 0.0, %v3214
        %v3216 = vpop.f32.mrb[0].mxu0
        %3217 = vmatprep.mubr.bf16.mxu0 0
        %3218 = vmatmul.mubr.bf16.gmra.mrb[0].mxu0 %v3083
        %v3219 = vpop.f32.mrb[0].mxu0
        %v3220 = vadd.f32 0.0, %v3219
        %v3221 = vpop.f32.mrb[0].mxu0
        %v3222 = vpop.f32.mrb[0].mxu0
        %v3223 = vadd.f32 0.0, %v3222
        %v3224 = vpop.f32.mrb[0].mxu0
        %3225 = vmatprep.mubr.bf16.mxu0 0
        %3226 = vmatmul.mubr.bf16.gmra.mrb[0].mxu0 %v3086
        %v3227 = vpop.f32.mrb[0].mxu0
        %v3228 = vadd.f32 0.0, %v3227
        %v3229 = vpop.f32.mrb[0].mxu0
        %v3230 = vpop.f32.mrb[0].mxu0
        %v3231 = vadd.f32 0.0, %v3230
        %v3232 = vpop.f32.mrb[0].mxu0
        %3233 = vmatprep.mubr.bf16.mxu0 0
        %3234 = vmatmul.mubr.bf16.gmra.mrb[0].mxu0 %v3089
        %v3235 = vpop.f32.mrb[0].mxu0
        %v3236 = vadd.f32 0.0, %v3235
        %v3237 = vpop.f32.mrb[0].mxu0
        %v3238 = vpop.f32.mrb[0].mxu0
        %v3239 = vadd.f32 0.0, %v3238
        %v3240 = vpop.f32.mrb[0].mxu0
        %3241 = vmatprep.mubr.bf16.mxu0 0
        %3242 = vmatmul.mubr.bf16.gmra.mrb[0].mxu0 %v3092
        %v3243 = vpop.f32.mrb[0].mxu0
        %v3244 = vadd.f32 0.0, %v3243
        %v3245 = vpop.f32.mrb[0].mxu0
        %v3246 = vpop.f32.mrb[0].mxu0
        %v3247 = vadd.f32 0.0, %v3246
        %v3248 = vpop.f32.mrb[0].mxu0
        %3249 = vmatprep.mubr.bf16.mxu0 0
        %3250 = vmatmul.mubr.bf16.gmra.mrb[0].mxu0 %v3095
        %v3251 = vpop.f32.mrb[0].mxu0
        %v3252 = vadd.f32 0.0, %v3251
        %v3253 = vpop.f32.mrb[0].mxu0
        %v3254 = vpop.f32.mrb[0].mxu0
        %v3255 = vadd.f32 0.0, %v3254
        %v3256 = vpop.f32.mrb[0].mxu0
        %3257 = vdwg.mxu0
        %v3258 = vadd.f32 %v2776, %v3132
        %v3259 = vadd.f32 %v2777, %v3135
        %v3260 = vadd.f32 %v2778, %v3140
        %v3261 = vadd.f32 %v2779, %v3143
        %v3262 = vadd.f32 %v2780, %v3148
        %v3263 = vadd.f32 %v2781, %v3151
        %v3264 = vadd.f32 %v2782, %v3156
        %v3265 = vadd.f32 %v2783, %v3159
        %v3266 = vadd.f32 %v2784, %v3164
        %v3267 = vadd.f32 %v2785, %v3167
        %v3268 = vadd.f32 %v2786, %v3172
        %v3269 = vadd.f32 %v2787, %v3175
        %v3270 = vadd.f32 %v2788, %v3180
        %v3271 = vadd.f32 %v2789, %v3183
        %v3272 = vadd.f32 %v2790, %v3188
        %v3273 = vadd.f32 %v2791, %v3191
        %v3274 = vadd.f32 %v2792, %v3196
        %v3275 = vadd.f32 %v2793, %v3199
        %v3276 = vadd.f32 %v2794, %v3204
        %v3277 = vadd.f32 %v2795, %v3207
        %v3278 = vadd.f32 %v2796, %v3212
        %v3279 = vadd.f32 %v2797, %v3215
        %v3280 = vadd.f32 %v2798, %v3220
        %v3281 = vadd.f32 %v2799, %v3223
        %v3282 = vadd.f32 %v2800, %v3228
        %v3283 = vadd.f32 %v2801, %v3231
        %v3284 = vadd.f32 %v2802, %v3236
        %v3285 = vadd.f32 %v2803, %v3239
        %v3286 = vadd.f32 %v2804, %v3244
        %v3287 = vadd.f32 %v2805, %v3247
        %v3288 = vadd.f32 %v2806, %v3252
        %v3289 = vadd.f32 %v2807, %v3255
        %s3290 = scalar_lea.vmem %s206, 24
        %v3291 = vld [vmem:[%s3290] sm:$0xf]
        %v3292 = vld [vmem:[%s3290 + $0x4] sm:$0xf]
        %v3293 = vld [vmem:[%s3290 + $0xc] sm:$0xf]
        %v3294 = vld [vmem:[%s3290 + $0x10] sm:$0xf]
        %v3295 = vld [vmem:[%s3290 + $0x18] sm:$0xf]
        %v3296 = vld [vmem:[%s3290 + $0x1c] sm:$0xf]
        %v3297 = vld [vmem:[%s3290 + $0x24] sm:$0xf]
        %v3298 = vld [vmem:[%s3290 + $0x28] sm:$0xf]
        %v3299 = vld [vmem:[%s3290 + $0x30] sm:$0xf]
        %v3300 = vld [vmem:[%s3290 + $0x34] sm:$0xf]
        %v3301 = vld [vmem:[%s3290 + $0x3c] sm:$0xf]
        %v3302 = vld [vmem:[%s3290 + $0x40] sm:$0xf]
        %v3303 = vld [vmem:[%s3290 + $0x48] sm:$0xf]
        %v3304 = vld [vmem:[%s3290 + $0x4c] sm:$0xf]
        %v3305 = vld [vmem:[%s3290 + $0x54] sm:$0xf]
        %v3306 = vld [vmem:[%s3290 + $0x58] sm:$0xf]
        %v3307 = vld [vmem:[%s3290 + $0x60] sm:$0xf]
        %v3308 = vld [vmem:[%s3290 + $0x64] sm:$0xf]
        %v3309 = vld [vmem:[%s3290 + $0x6c] sm:$0xf]
        %v3310 = vld [vmem:[%s3290 + $0x70] sm:$0xf]
        %v3311 = vld [vmem:[%s3290 + $0x78] sm:$0xf]
        %v3312 = vld [vmem:[%s3290 + $0x7c] sm:$0xf]
        %v3313 = vld [vmem:[%s3290 + $0x84] sm:$0xf]
        %v3314 = vld [vmem:[%s3290 + $0x88] sm:$0xf]
        %v3315 = vld [vmem:[%s3290 + $0x90] sm:$0xf]
        %v3316 = vld [vmem:[%s3290 + $0x94] sm:$0xf]
        %v3317 = vld [vmem:[%s3290 + $0x9c] sm:$0xf]
        %v3318 = vld [vmem:[%s3290 + $0xa0] sm:$0xf]
        %v3319 = vld [vmem:[%s3290 + $0xa8] sm:$0xf]
        %v3320 = vld [vmem:[%s3290 + $0xac] sm:$0xf]
        %v3321 = vld [vmem:[%s3290 + $0xb4] sm:$0xf]
        %v3322 = vld [vmem:[%s3290 + $0xb8] sm:$0xf]
        %s3323 = scalar_lea.vmem %s210, 96
        %v3324 = vld [vmem:[%s3323] sm:$0xf]
        %v3325 = vld [vmem:[%s3323 + $0x4] sm:$0xf]
        %v3326 = vld [vmem:[%s3323 + $0x8] sm:$0xf]
        %v3327 = vld [vmem:[%s3323 + $0xc] sm:$0xf]
        %v3360 = vunpack.c.l.b16 %v3291
        %v3361 = vunpack.c.l.b16 %v3292
        %v3362 = vunpack.c.l.b16 %v3293
        %v3363 = vunpack.c.l.b16 %v3294
        %v3364 = vunpack.c.l.b16 %v3295
        %v3365 = vunpack.c.l.b16 %v3296
        %v3366 = vunpack.c.l.b16 %v3297
        %v3367 = vunpack.c.l.b16 %v3298
        %v3368 = vunpack.c.l.b16 %v3299
        %v3369 = vunpack.c.l.b16 %v3300
        %v3370 = vunpack.c.l.b16 %v3301
        %v3371 = vunpack.c.l.b16 %v3302
        %v3372 = vunpack.c.l.b16 %v3303
        %v3373 = vunpack.c.l.b16 %v3304
        %v3374 = vunpack.c.l.b16 %v3305
        %v3375 = vunpack.c.l.b16 %v3306
        %v3376 = vunpack.c.l.b16 %v3307
        %v3377 = vunpack.c.l.b16 %v3308
        %v3378 = vunpack.c.l.b16 %v3309
        %v3379 = vunpack.c.l.b16 %v3310
        %v3380 = vunpack.c.l.b16 %v3311
        %v3381 = vunpack.c.l.b16 %v3312
        %v3382 = vunpack.c.l.b16 %v3313
        %v3383 = vunpack.c.l.b16 %v3314
        %v3384 = vunpack.c.l.b16 %v3315
        %v3385 = vunpack.c.l.b16 %v3316
        %v3386 = vunpack.c.l.b16 %v3317
        %v3387 = vunpack.c.l.b16 %v3318
        %v3388 = vunpack.c.l.b16 %v3319
        %v3389 = vunpack.c.l.b16 %v3320
        %v3390 = vunpack.c.l.b16 %v3321
        %v3391 = vunpack.c.l.b16 %v3322
        %v3392 = vpack.c.b16 %v3361, %v3360
        %v3393 = vpack.c.b16 %v3363, %v3362
        %v3394 = vpack.c.b16 %v3365, %v3364
        %v3395 = vpack.c.b16 %v3367, %v3366
        %v3396 = vpack.c.b16 %v3369, %v3368
        %v3397 = vpack.c.b16 %v3371, %v3370
        %v3398 = vpack.c.b16 %v3373, %v3372
        %v3399 = vpack.c.b16 %v3375, %v3374
        %v3400 = vpack.c.b16 %v3377, %v3376
        %v3401 = vpack.c.b16 %v3379, %v3378
        %v3402 = vpack.c.b16 %v3381, %v3380
        %v3403 = vpack.c.b16 %v3383, %v3382
        %v3404 = vpack.c.b16 %v3385, %v3384
        %v3405 = vpack.c.b16 %v3387, %v3386
        %v3406 = vpack.c.b16 %v3389, %v3388
        %v3407 = vpack.c.b16 %v3391, %v3390
        %v3412 = vunpack.c.l.b16 %v3324
        %v3413 = vunpack.c.l.b16 %v3325
        %v3414 = vunpack.c.l.b16 %v3326
        %v3415 = vunpack.c.l.b16 %v3327
        %v3416 = vpack.c.b16 %v3413, %v3412
        %v3417 = vpack.c.b16 %v3415, %v3414
        %v3421 = vsel %vm719, %v3392, 0
        %v3424 = vsel %vm719, %v3393, 0
        %v3427 = vsel %vm719, %v3394, 0
        %v3430 = vsel %vm719, %v3395, 0
        %v3433 = vsel %vm719, %v3396, 0
        %v3436 = vsel %vm719, %v3397, 0
        %v3439 = vsel %vm719, %v3398, 0
        %v3442 = vsel %vm719, %v3399, 0
        %v3445 = vsel %vm719, %v3400, 0
        %v3448 = vsel %vm719, %v3401, 0
        %v3451 = vsel %vm719, %v3402, 0
        %v3454 = vsel %vm719, %v3403, 0
        %v3457 = vsel %vm719, %v3404, 0
        %v3460 = vsel %vm719, %v3405, 0
        %v3463 = vsel %vm719, %v3406, 0
        %v3466 = vsel %vm719, %v3407, 0
        %3468 = vmatprep.subr.bf16.mxu0 0
        %3469 = vmatpush1.bf16.msra.mxu0 %v3416
        %3470 = vmatprep.subr.bf16.mxu0 0
        %3471 = vmatpush1.bf16.msra.mxu0 %v3417
        %3472 = vmatprep.subr.bf16.mxu0 0
        %3473 = vmatpush1.bf16.msra.mxu0 0
        %3474 = vmatprep.subr.bf16.mxu0 0
        %3475 = vmatpush1.bf16.msra.mxu0 0
        %3476 = vmatprep.subr.bf16.mxu0 0
        %3477 = vmatpush1.bf16.msra.mxu0 0
        %3478 = vmatprep.subr.bf16.mxu0 0
        %3479 = vmatpush1.bf16.msra.mxu0 0
        %3480 = vmatprep.subr.bf16.mxu0 0
        %3481 = vmatpush1.bf16.msra.mxu0 0
        %3482 = vmatprep.subr.bf16.mxu0 0
        %3483 = vmatpush1.bf16.msra.mxu0 0
        %3484 = vmatprep.subr.bf16.mxu0 0
        %3485 = vmatpush1.bf16.msra.mxu0 0
        %3486 = vmatprep.subr.bf16.mxu0 0
        %3487 = vmatpush1.bf16.msra.mxu0 0
        %3488 = vmatprep.subr.bf16.mxu0 0
        %3489 = vmatpush1.bf16.msra.mxu0 0
        %3490 = vmatprep.subr.bf16.mxu0 0
        %3491 = vmatpush1.bf16.msra.mxu0 0
        %3492 = vmatprep.subr.bf16.mxu0 0
        %3493 = vmatpush1.bf16.msra.mxu0 0
        %3494 = vmatprep.subr.bf16.mxu0 0
        %3495 = vmatpush1.bf16.msra.mxu0 0
        %3496 = vmatprep.subr.bf16.mxu0 0
        %3497 = vmatpush1.bf16.msra.mxu0 0
        %3498 = vmatprep.subr.bf16.mxu0 0
        %3499 = vmatpush1.bf16.msra.mxu0 0
        %3500 = vmatprep.mubr.bf16.mxu0 0
        %3501 = vmatmul.mubr.bf16.gmra.mrb[0].mxu0 %v3421
        %v3502 = vpop.f32.mrb[0].mxu0
        %v3503 = vadd.f32 0.0, %v3502
        %v3504 = vpop.f32.mrb[0].mxu0
        %v3505 = vpop.f32.mrb[0].mxu0
        %v3506 = vadd.f32 0.0, %v3505
        %v3507 = vpop.f32.mrb[0].mxu0
        %3508 = vmatprep.mubr.bf16.mxu0 0
        %3509 = vmatmul.mubr.bf16.gmra.mrb[0].mxu0 %v3424
        %v3510 = vpop.f32.mrb[0].mxu0
        %v3511 = vadd.f32 0.0, %v3510
        %v3512 = vpop.f32.mrb[0].mxu0
        %v3513 = vpop.f32.mrb[0].mxu0
        %v3514 = vadd.f32 0.0, %v3513
        %v3515 = vpop.f32.mrb[0].mxu0
        %3516 = vmatprep.mubr.bf16.mxu0 0
        %3517 = vmatmul.mubr.bf16.gmra.mrb[0].mxu0 %v3427
        %v3518 = vpop.f32.mrb[0].mxu0
        %v3519 = vadd.f32 0.0, %v3518
        %v3520 = vpop.f32.mrb[0].mxu0
        %v3521 = vpop.f32.mrb[0].mxu0
        %v3522 = vadd.f32 0.0, %v3521
        %v3523 = vpop.f32.mrb[0].mxu0
        %3524 = vmatprep.mubr.bf16.mxu0 0
        %3525 = vmatmul.mubr.bf16.gmra.mrb[0].mxu0 %v3430
        %v3526 = vpop.f32.mrb[0].mxu0
        %v3527 = vadd.f32 0.0, %v3526
        %v3528 = vpop.f32.mrb[0].mxu0
        %v3529 = vpop.f32.mrb[0].mxu0
        %v3530 = vadd.f32 0.0, %v3529
        %v3531 = vpop.f32.mrb[0].mxu0
        %3532 = vmatprep.mubr.bf16.mxu0 0
        %3533 = vmatmul.mubr.bf16.gmra.mrb[0].mxu0 %v3433
        %v3534 = vpop.f32.mrb[0].mxu0
        %v3535 = vadd.f32 0.0, %v3534
        %v3536 = vpop.f32.mrb[0].mxu0
        %v3537 = vpop.f32.mrb[0].mxu0
        %v3538 = vadd.f32 0.0, %v3537
        %v3539 = vpop.f32.mrb[0].mxu0
        %3540 = vmatprep.mubr.bf16.mxu0 0
        %3541 = vmatmul.mubr.bf16.gmra.mrb[0].mxu0 %v3436
        %v3542 = vpop.f32.mrb[0].mxu0
        %v3543 = vadd.f32 0.0, %v3542
        %v3544 = vpop.f32.mrb[0].mxu0
        %v3545 = vpop.f32.mrb[0].mxu0
        %v3546 = vadd.f32 0.0, %v3545
        %v3547 = vpop.f32.mrb[0].mxu0
        %3548 = vmatprep.mubr.bf16.mxu0 0
        %3549 = vmatmul.mubr.bf16.gmra.mrb[0].mxu0 %v3439
        %v3550 = vpop.f32.mrb[0].mxu0
        %v3551 = vadd.f32 0.0, %v3550
        %v3552 = vpop.f32.mrb[0].mxu0
        %v3553 = vpop.f32.mrb[0].mxu0
        %v3554 = vadd.f32 0.0, %v3553
        %v3555 = vpop.f32.mrb[0].mxu0
        %3556 = vmatprep.mubr.bf16.mxu0 0
        %3557 = vmatmul.mubr.bf16.gmra.mrb[0].mxu0 %v3442
        %v3558 = vpop.f32.mrb[0].mxu0
        %v3559 = vadd.f32 0.0, %v3558
        %v3560 = vpop.f32.mrb[0].mxu0
        %v3561 = vpop.f32.mrb[0].mxu0
        %v3562 = vadd.f32 0.0, %v3561
        %v3563 = vpop.f32.mrb[0].mxu0
        %3564 = vmatprep.mubr.bf16.mxu0 0
        %3565 = vmatmul.mubr.bf16.gmra.mrb[0].mxu0 %v3445
        %v3566 = vpop.f32.mrb[0].mxu0
        %v3567 = vadd.f32 0.0, %v3566
        %v3568 = vpop.f32.mrb[0].mxu0
        %v3569 = vpop.f32.mrb[0].mxu0
        %v3570 = vadd.f32 0.0, %v3569
        %v3571 = vpop.f32.mrb[0].mxu0
        %3572 = vmatprep.mubr.bf16.mxu0 0
        %3573 = vmatmul.mubr.bf16.gmra.mrb[0].mxu0 %v3448
        %v3574 = vpop.f32.mrb[0].mxu0
        %v3575 = vadd.f32 0.0, %v3574
        %v3576 = vpop.f32.mrb[0].mxu0
        %v3577 = vpop.f32.mrb[0].mxu0
        %v3578 = vadd.f32 0.0, %v3577
        %v3579 = vpop.f32.mrb[0].mxu0
        %3580 = vmatprep.mubr.bf16.mxu0 0
        %3581 = vmatmul.mubr.bf16.gmra.mrb[0].mxu0 %v3451
        %v3582 = vpop.f32.mrb[0].mxu0
        %v3583 = vadd.f32 0.0, %v3582
        %v3584 = vpop.f32.mrb[0].mxu0
        %v3585 = vpop.f32.mrb[0].mxu0
        %v3586 = vadd.f32 0.0, %v3585
        %v3587 = vpop.f32.mrb[0].mxu0
        %3588 = vmatprep.mubr.bf16.mxu0 0
        %3589 = vmatmul.mubr.bf16.gmra.mrb[0].mxu0 %v3454
        %v3590 = vpop.f32.mrb[0].mxu0
        %v3591 = vadd.f32 0.0, %v3590
        %v3592 = vpop.f32.mrb[0].mxu0
        %v3593 = vpop.f32.mrb[0].mxu0
        %v3594 = vadd.f32 0.0, %v3593
        %v3595 = vpop.f32.mrb[0].mxu0
        %3596 = vmatprep.mubr.bf16.mxu0 0
        %3597 = vmatmul.mubr.bf16.gmra.mrb[0].mxu0 %v3457
        %v3598 = vpop.f32.mrb[0].mxu0
        %v3599 = vadd.f32 0.0, %v3598
        %v3600 = vpop.f32.mrb[0].mxu0
        %v3601 = vpop.f32.mrb[0].mxu0
        %v3602 = vadd.f32 0.0, %v3601
        %v3603 = vpop.f32.mrb[0].mxu0
        %3604 = vmatprep.mubr.bf16.mxu0 0
        %3605 = vmatmul.mubr.bf16.gmra.mrb[0].mxu0 %v3460
        %v3606 = vpop.f32.mrb[0].mxu0
        %v3607 = vadd.f32 0.0, %v3606
        %v3608 = vpop.f32.mrb[0].mxu0
        %v3609 = vpop.f32.mrb[0].mxu0
        %v3610 = vadd.f32 0.0, %v3609
        %v3611 = vpop.f32.mrb[0].mxu0
        %3612 = vmatprep.mubr.bf16.mxu0 0
        %3613 = vmatmul.mubr.bf16.gmra.mrb[0].mxu0 %v3463
        %v3614 = vpop.f32.mrb[0].mxu0
        %v3615 = vadd.f32 0.0, %v3614
        %v3616 = vpop.f32.mrb[0].mxu0
        %v3617 = vpop.f32.mrb[0].mxu0
        %v3618 = vadd.f32 0.0, %v3617
        %v3619 = vpop.f32.mrb[0].mxu0
        %3620 = vmatprep.mubr.bf16.mxu0 0
        %3621 = vmatmul.mubr.bf16.gmra.mrb[0].mxu0 %v3466
        %v3622 = vpop.f32.mrb[0].mxu0
        %v3623 = vadd.f32 0.0, %v3622
        %v3624 = vpop.f32.mrb[0].mxu0
        %v3625 = vpop.f32.mrb[0].mxu0
        %v3626 = vadd.f32 0.0, %v3625
        %v3627 = vpop.f32.mrb[0].mxu0
        %3628 = vdwg.mxu0
        %v3629 = vadd.f32 %v3258, %v3503
        %v3630 = vadd.f32 %v3259, %v3506
        %v3631 = vadd.f32 %v3260, %v3511
        %v3632 = vadd.f32 %v3261, %v3514
        %v3633 = vadd.f32 %v3262, %v3519
        %v3634 = vadd.f32 %v3263, %v3522
        %v3635 = vadd.f32 %v3264, %v3527
        %v3636 = vadd.f32 %v3265, %v3530
        %v3637 = vadd.f32 %v3266, %v3535
        %v3638 = vadd.f32 %v3267, %v3538
        %v3639 = vadd.f32 %v3268, %v3543
        %v3640 = vadd.f32 %v3269, %v3546
        %v3641 = vadd.f32 %v3270, %v3551
        %v3642 = vadd.f32 %v3271, %v3554
        %v3643 = vadd.f32 %v3272, %v3559
        %v3644 = vadd.f32 %v3273, %v3562
        %v3645 = vadd.f32 %v3274, %v3567
        %v3646 = vadd.f32 %v3275, %v3570
        %v3647 = vadd.f32 %v3276, %v3575
        %v3648 = vadd.f32 %v3277, %v3578
        %v3649 = vadd.f32 %v3278, %v3583
        %v3650 = vadd.f32 %v3279, %v3586
        %v3651 = vadd.f32 %v3280, %v3591
        %v3652 = vadd.f32 %v3281, %v3594
        %v3653 = vadd.f32 %v3282, %v3599
        %v3654 = vadd.f32 %v3283, %v3602
        %v3655 = vadd.f32 %v3284, %v3607
        %v3656 = vadd.f32 %v3285, %v3610
        %v3657 = vadd.f32 %v3286, %v3615
        %v3658 = vadd.f32 %v3287, %v3618
        %v3659 = vadd.f32 %v3288, %v3623
        %v3660 = vadd.f32 %v3289, %v3626
        %v3661 = vld [vmem:[%s3290] sm:$0xf]
        %v3662 = vld [vmem:[%s3290 + $0x4] sm:$0xf]
        %v3663 = vld [vmem:[%s3290 + $0x8] sm:$0x1]
        %v3664 = vld [vmem:[%s3290 + $0xc] sm:$0xf]
        %v3665 = vld [vmem:[%s3290 + $0x10] sm:$0xf]
        %v3666 = vld [vmem:[%s3290 + $0x14] sm:$0x1]
        %v3667 = vld [vmem:[%s3290 + $0x18] sm:$0xf]
        %v3668 = vld [vmem:[%s3290 + $0x1c] sm:$0xf]
        %v3669 = vld [vmem:[%s3290 + $0x20] sm:$0x1]
        %v3670 = vld [vmem:[%s3290 + $0x24] sm:$0xf]
        %v3671 = vld [vmem:[%s3290 + $0x28] sm:$0xf]
        %v3672 = vld [vmem:[%s3290 + $0x2c] sm:$0x1]
        %v3673 = vld [vmem:[%s3290 + $0x30] sm:$0xf]
        %v3674 = vld [vmem:[%s3290 + $0x34] sm:$0xf]
        %v3675 = vld [vmem:[%s3290 + $0x38] sm:$0x1]
        %v3676 = vld [vmem:[%s3290 + $0x3c] sm:$0xf]
        %v3677 = vld [vmem:[%s3290 + $0x40] sm:$0xf]
        %v3678 = vld [vmem:[%s3290 + $0x44] sm:$0x1]
        %v3679 = vld [vmem:[%s3290 + $0x48] sm:$0xf]
        %v3680 = vld [vmem:[%s3290 + $0x4c] sm:$0xf]
        %v3681 = vld [vmem:[%s3290 + $0x50] sm:$0x1]
        %v3682 = vld [vmem:[%s3290 + $0x54] sm:$0xf]
        %v3683 = vld [vmem:[%s3290 + $0x58] sm:$0xf]
        %v3684 = vld [vmem:[%s3290 + $0x5c] sm:$0x1]
        %v3685 = vld [vmem:[%s3290 + $0x60] sm:$0xf]
        %v3686 = vld [vmem:[%s3290 + $0x64] sm:$0xf]
        %v3687 = vld [vmem:[%s3290 + $0x68] sm:$0x1]
        %v3688 = vld [vmem:[%s3290 + $0x6c] sm:$0xf]
        %v3689 = vld [vmem:[%s3290 + $0x70] sm:$0xf]
        %v3690 = vld [vmem:[%s3290 + $0x74] sm:$0x1]
        %v3691 = vld [vmem:[%s3290 + $0x78] sm:$0xf]
        %v3692 = vld [vmem:[%s3290 + $0x7c] sm:$0xf]
        %v3693 = vld [vmem:[%s3290 + $0x80] sm:$0x1]
        %v3694 = vld [vmem:[%s3290 + $0x84] sm:$0xf]
        %v3695 = vld [vmem:[%s3290 + $0x88] sm:$0xf]
        %v3696 = vld [vmem:[%s3290 + $0x8c] sm:$0x1]
        %v3697 = vld [vmem:[%s3290 + $0x90] sm:$0xf]
        %v3698 = vld [vmem:[%s3290 + $0x94] sm:$0xf]
        %v3699 = vld [vmem:[%s3290 + $0x98] sm:$0x1]
        %v3700 = vld [vmem:[%s3290 + $0x9c] sm:$0xf]
        %v3701 = vld [vmem:[%s3290 + $0xa0] sm:$0xf]
        %v3702 = vld [vmem:[%s3290 + $0xa4] sm:$0x1]
        %v3703 = vld [vmem:[%s3290 + $0xa8] sm:$0xf]
        %v3704 = vld [vmem:[%s3290 + $0xac] sm:$0xf]
        %v3705 = vld [vmem:[%s3290 + $0xb0] sm:$0x1]
        %v3706 = vld [vmem:[%s3290 + $0xb4] sm:$0xf]
        %v3707 = vld [vmem:[%s3290 + $0xb8] sm:$0xf]
        %v3708 = vld [vmem:[%s3290 + $0xbc] sm:$0x1]
        %v3710 = vshrl.u32 %v3661, 16
        %v3712 = vrot.slane %v3710, 4
        %v3713 = vshll.u32 %v3661, 16
        %v3715 = vrot.slane %v3713, 5
        %v3716 = vor.u32 %v3712, %v3715
        %v3717 = vrot.slane %v3716, 4
        %v3719 = vshll.u32 %v3662, 16
        %v3721 = vrot.slane %v3719, 5
        %v3722 = vsel %vm269, %v3717, %v3721
        %v3723 = vshrl.u32 %v3662, 16
        %v3725 = vrot.slane %v3723, 4
        %v3726 = vor.u32 %v3725, %v3721
        %v3727 = vrot.slane %v3726, 4
        %v3729 = vshll.u32 %v3663, 16
        %v3731 = vrot.slane %v3729, 5
        %v3732 = vsel %vm269, %v3727, %v3731
        %v3734 = vshrl.u32 %v3664, 16
        %v3736 = vrot.slane %v3734, 4
        %v3737 = vshll.u32 %v3664, 16
        %v3739 = vrot.slane %v3737, 5
        %v3740 = vor.u32 %v3736, %v3739
        %v3741 = vrot.slane %v3740, 4
        %v3743 = vshll.u32 %v3665, 16
        %v3745 = vrot.slane %v3743, 5
        %v3746 = vsel %vm269, %v3741, %v3745
        %v3747 = vshrl.u32 %v3665, 16
        %v3749 = vrot.slane %v3747, 4
        %v3750 = vor.u32 %v3749, %v3745
        %v3751 = vrot.slane %v3750, 4
        %v3753 = vshll.u32 %v3666, 16
        %v3755 = vrot.slane %v3753, 5
        %v3756 = vsel %vm269, %v3751, %v3755
        %v3758 = vshrl.u32 %v3667, 16
        %v3760 = vrot.slane %v3758, 4
        %v3761 = vshll.u32 %v3667, 16
        %v3763 = vrot.slane %v3761, 5
        %v3764 = vor.u32 %v3760, %v3763
        %v3765 = vrot.slane %v3764, 4
        %v3767 = vshll.u32 %v3668, 16
        %v3769 = vrot.slane %v3767, 5
        %v3770 = vsel %vm269, %v3765, %v3769
        %v3771 = vshrl.u32 %v3668, 16
        %v3773 = vrot.slane %v3771, 4
        %v3774 = vor.u32 %v3773, %v3769
        %v3775 = vrot.slane %v3774, 4
        %v3777 = vshll.u32 %v3669, 16
        %v3779 = vrot.slane %v3777, 5
        %v3780 = vsel %vm269, %v3775, %v3779
        %v3782 = vshrl.u32 %v3670, 16
        %v3784 = vrot.slane %v3782, 4
        %v3785 = vshll.u32 %v3670, 16
        %v3787 = vrot.slane %v3785, 5
        %v3788 = vor.u32 %v3784, %v3787
        %v3789 = vrot.slane %v3788, 4
        %v3791 = vshll.u32 %v3671, 16
        %v3793 = vrot.slane %v3791, 5
        %v3794 = vsel %vm269, %v3789, %v3793
        %v3795 = vshrl.u32 %v3671, 16
        %v3797 = vrot.slane %v3795, 4
        %v3798 = vor.u32 %v3797, %v3793
        %v3799 = vrot.slane %v3798, 4
        %v3801 = vshll.u32 %v3672, 16
        %v3803 = vrot.slane %v3801, 5
        %v3804 = vsel %vm269, %v3799, %v3803
        %v3806 = vshrl.u32 %v3673, 16
        %v3808 = vrot.slane %v3806, 4
        %v3809 = vshll.u32 %v3673, 16
        %v3811 = vrot.slane %v3809, 5
        %v3812 = vor.u32 %v3808, %v3811
        %v3813 = vrot.slane %v3812, 4
        %v3815 = vshll.u32 %v3674, 16
        %v3817 = vrot.slane %v3815, 5
        %v3818 = vsel %vm269, %v3813, %v3817
        %v3819 = vshrl.u32 %v3674, 16
        %v3821 = vrot.slane %v3819, 4
        %v3822 = vor.u32 %v3821, %v3817
        %v3823 = vrot.slane %v3822, 4
        %v3825 = vshll.u32 %v3675, 16
        %v3827 = vrot.slane %v3825, 5
        %v3828 = vsel %vm269, %v3823, %v3827
        %v3830 = vshrl.u32 %v3676, 16
        %v3832 = vrot.slane %v3830, 4
        %v3833 = vshll.u32 %v3676, 16
        %v3835 = vrot.slane %v3833, 5
        %v3836 = vor.u32 %v3832, %v3835
        %v3837 = vrot.slane %v3836, 4
        %v3839 = vshll.u32 %v3677, 16
        %v3841 = vrot.slane %v3839, 5
        %v3842 = vsel %vm269, %v3837, %v3841
        %v3843 = vshrl.u32 %v3677, 16
        %v3845 = vrot.slane %v3843, 4
        %v3846 = vor.u32 %v3845, %v3841
        %v3847 = vrot.slane %v3846, 4
        %v3849 = vshll.u32 %v3678, 16
        %v3851 = vrot.slane %v3849, 5
        %v3852 = vsel %vm269, %v3847, %v3851
        %v3854 = vshrl.u32 %v3679, 16
        %v3856 = vrot.slane %v3854, 4
        %v3857 = vshll.u32 %v3679, 16
        %v3859 = vrot.slane %v3857, 5
        %v3860 = vor.u32 %v3856, %v3859
        %v3861 = vrot.slane %v3860, 4
        %v3863 = vshll.u32 %v3680, 16
        %v3865 = vrot.slane %v3863, 5
        %v3866 = vsel %vm269, %v3861, %v3865
        %v3867 = vshrl.u32 %v3680, 16
        %v3869 = vrot.slane %v3867, 4
        %v3870 = vor.u32 %v3869, %v3865
        %v3871 = vrot.slane %v3870, 4
        %v3873 = vshll.u32 %v3681, 16
        %v3875 = vrot.slane %v3873, 5
        %v3876 = vsel %vm269, %v3871, %v3875
        %v3878 = vshrl.u32 %v3682, 16
        %v3880 = vrot.slane %v3878, 4
        %v3881 = vshll.u32 %v3682, 16
        %v3883 = vrot.slane %v3881, 5
        %v3884 = vor.u32 %v3880, %v3883
        %v3885 = vrot.slane %v3884, 4
        %v3887 = vshll.u32 %v3683, 16
        %v3889 = vrot.slane %v3887, 5
        %v3890 = vsel %vm269, %v3885, %v3889
        %v3891 = vshrl.u32 %v3683, 16
        %v3893 = vrot.slane %v3891, 4
        %v3894 = vor.u32 %v3893, %v3889
        %v3895 = vrot.slane %v3894, 4
        %v3897 = vshll.u32 %v3684, 16
        %v3899 = vrot.slane %v3897, 5
        %v3900 = vsel %vm269, %v3895, %v3899
        %v3902 = vshrl.u32 %v3685, 16
        %v3904 = vrot.slane %v3902, 4
        %v3905 = vshll.u32 %v3685, 16
        %v3907 = vrot.slane %v3905, 5
        %v3908 = vor.u32 %v3904, %v3907
        %v3909 = vrot.slane %v3908, 4
        %v3911 = vshll.u32 %v3686, 16
        %v3913 = vrot.slane %v3911, 5
        %v3914 = vsel %vm269, %v3909, %v3913
        %v3915 = vshrl.u32 %v3686, 16
        %v3917 = vrot.slane %v3915, 4
        %v3918 = vor.u32 %v3917, %v3913
        %v3919 = vrot.slane %v3918, 4
        %v3921 = vshll.u32 %v3687, 16
        %v3923 = vrot.slane %v3921, 5
        %v3924 = vsel %vm269, %v3919, %v3923
        %v3926 = vshrl.u32 %v3688, 16
        %v3928 = vrot.slane %v3926, 4
        %v3929 = vshll.u32 %v3688, 16
        %v3931 = vrot.slane %v3929, 5
        %v3932 = vor.u32 %v3928, %v3931
        %v3933 = vrot.slane %v3932, 4
        %v3935 = vshll.u32 %v3689, 16
        %v3937 = vrot.slane %v3935, 5
        %v3938 = vsel %vm269, %v3933, %v3937
        %v3939 = vshrl.u32 %v3689, 16
        %v3941 = vrot.slane %v3939, 4
        %v3942 = vor.u32 %v3941, %v3937
        %v3943 = vrot.slane %v3942, 4
        %v3945 = vshll.u32 %v3690, 16
        %v3947 = vrot.slane %v3945, 5
        %v3948 = vsel %vm269, %v3943, %v3947
        %v3950 = vshrl.u32 %v3691, 16
        %v3952 = vrot.slane %v3950, 4
        %v3953 = vshll.u32 %v3691, 16
        %v3955 = vrot.slane %v3953, 5
        %v3956 = vor.u32 %v3952, %v3955
        %v3957 = vrot.slane %v3956, 4
        %v3959 = vshll.u32 %v3692, 16
        %v3961 = vrot.slane %v3959, 5
        %v3962 = vsel %vm269, %v3957, %v3961
        %v3963 = vshrl.u32 %v3692, 16
        %v3965 = vrot.slane %v3963, 4
        %v3966 = vor.u32 %v3965, %v3961
        %v3967 = vrot.slane %v3966, 4
        %v3969 = vshll.u32 %v3693, 16
        %v3971 = vrot.slane %v3969, 5
        %v3972 = vsel %vm269, %v3967, %v3971
        %v3974 = vshrl.u32 %v3694, 16
        %v3976 = vrot.slane %v3974, 4
        %v3977 = vshll.u32 %v3694, 16
        %v3979 = vrot.slane %v3977, 5
        %v3980 = vor.u32 %v3976, %v3979
        %v3981 = vrot.slane %v3980, 4
        %v3983 = vshll.u32 %v3695, 16
        %v3985 = vrot.slane %v3983, 5
        %v3986 = vsel %vm269, %v3981, %v3985
        %v3987 = vshrl.u32 %v3695, 16
        %v3989 = vrot.slane %v3987, 4
        %v3990 = vor.u32 %v3989, %v3985
        %v3991 = vrot.slane %v3990, 4
        %v3993 = vshll.u32 %v3696, 16
        %v3995 = vrot.slane %v3993, 5
        %v3996 = vsel %vm269, %v3991, %v3995
        %v3998 = vshrl.u32 %v3697, 16
        %v4000 = vrot.slane %v3998, 4
        %v4001 = vshll.u32 %v3697, 16
        %v4003 = vrot.slane %v4001, 5
        %v4004 = vor.u32 %v4000, %v4003
        %v4005 = vrot.slane %v4004, 4
        %v4007 = vshll.u32 %v3698, 16
        %v4009 = vrot.slane %v4007, 5
        %v4010 = vsel %vm269, %v4005, %v4009
        %v4011 = vshrl.u32 %v3698, 16
        %v4013 = vrot.slane %v4011, 4
        %v4014 = vor.u32 %v4013, %v4009
        %v4015 = vrot.slane %v4014, 4
        %v4017 = vshll.u32 %v3699, 16
        %v4019 = vrot.slane %v4017, 5
        %v4020 = vsel %vm269, %v4015, %v4019
        %v4022 = vshrl.u32 %v3700, 16
        %v4024 = vrot.slane %v4022, 4
        %v4025 = vshll.u32 %v3700, 16
        %v4027 = vrot.slane %v4025, 5
        %v4028 = vor.u32 %v4024, %v4027
        %v4029 = vrot.slane %v4028, 4
        %v4031 = vshll.u32 %v3701, 16
        %v4033 = vrot.slane %v4031, 5
        %v4034 = vsel %vm269, %v4029, %v4033
        %v4035 = vshrl.u32 %v3701, 16
        %v4037 = vrot.slane %v4035, 4
        %v4038 = vor.u32 %v4037, %v4033
        %v4039 = vrot.slane %v4038, 4
        %v4041 = vshll.u32 %v3702, 16
        %v4043 = vrot.slane %v4041, 5
        %v4044 = vsel %vm269, %v4039, %v4043
        %v4046 = vshrl.u32 %v3703, 16
        %v4048 = vrot.slane %v4046, 4
        %v4049 = vshll.u32 %v3703, 16
        %v4051 = vrot.slane %v4049, 5
        %v4052 = vor.u32 %v4048, %v4051
        %v4053 = vrot.slane %v4052, 4
        %v4055 = vshll.u32 %v3704, 16
        %v4057 = vrot.slane %v4055, 5
        %v4058 = vsel %vm269, %v4053, %v4057
        %v4059 = vshrl.u32 %v3704, 16
        %v4061 = vrot.slane %v4059, 4
        %v4062 = vor.u32 %v4061, %v4057
        %v4063 = vrot.slane %v4062, 4
        %v4065 = vshll.u32 %v3705, 16
        %v4067 = vrot.slane %v4065, 5
        %v4068 = vsel %vm269, %v4063, %v4067
        %v4070 = vshrl.u32 %v3706, 16
        %v4072 = vrot.slane %v4070, 4
        %v4073 = vshll.u32 %v3706, 16
        %v4075 = vrot.slane %v4073, 5
        %v4076 = vor.u32 %v4072, %v4075
        %v4077 = vrot.slane %v4076, 4
        %v4079 = vshll.u32 %v3707, 16
        %v4081 = vrot.slane %v4079, 5
        %v4082 = vsel %vm269, %v4077, %v4081
        %v4083 = vshrl.u32 %v3707, 16
        %v4085 = vrot.slane %v4083, 4
        %v4086 = vor.u32 %v4085, %v4081
        %v4087 = vrot.slane %v4086, 4
        %v4089 = vshll.u32 %v3708, 16
        %v4091 = vrot.slane %v4089, 5
        %v4092 = vsel %vm269, %v4087, %v4091
        %s4093 = scalar_lea.vmem %s210, 112
        %v4094 = vld [vmem:[%s4093] sm:$0xf]
        %v4095 = vld [vmem:[%s4093 + $0x4] sm:$0xf]
        %v4096 = vld [vmem:[%s4093 + $0x8] sm:$0xf]
        %v4097 = vld [vmem:[%s4093 + $0xc] sm:$0xf]
        %v4098 = vunpack.c.l.b16 %v3722
        %v4099 = vunpack.c.l.b16 %v3732
        %v4100 = vunpack.c.l.b16 %v3746
        %v4101 = vunpack.c.l.b16 %v3756
        %v4102 = vunpack.c.l.b16 %v3770
        %v4103 = vunpack.c.l.b16 %v3780
        %v4104 = vunpack.c.l.b16 %v3794
        %v4105 = vunpack.c.l.b16 %v3804
        %v4106 = vunpack.c.l.b16 %v3818
        %v4107 = vunpack.c.l.b16 %v3828
        %v4108 = vunpack.c.l.b16 %v3842
        %v4109 = vunpack.c.l.b16 %v3852
        %v4110 = vunpack.c.l.b16 %v3866
        %v4111 = vunpack.c.l.b16 %v3876
        %v4112 = vunpack.c.l.b16 %v3890
        %v4113 = vunpack.c.l.b16 %v3900
        %v4114 = vunpack.c.l.b16 %v3914
        %v4115 = vunpack.c.l.b16 %v3924
        %v4116 = vunpack.c.l.b16 %v3938
        %v4117 = vunpack.c.l.b16 %v3948
        %v4118 = vunpack.c.l.b16 %v3962
        %v4119 = vunpack.c.l.b16 %v3972
        %v4120 = vunpack.c.l.b16 %v3986
        %v4121 = vunpack.c.l.b16 %v3996
        %v4122 = vunpack.c.l.b16 %v4010
        %v4123 = vunpack.c.l.b16 %v4020
        %v4124 = vunpack.c.l.b16 %v4034
        %v4125 = vunpack.c.l.b16 %v4044
        %v4126 = vunpack.c.l.b16 %v4058
        %v4127 = vunpack.c.l.b16 %v4068
        %v4128 = vunpack.c.l.b16 %v4082
        %v4129 = vunpack.c.l.b16 %v4092
        %v4130 = vpack.c.b16 %v4099, %v4098
        %v4131 = vpack.c.b16 %v4101, %v4100
        %v4132 = vpack.c.b16 %v4103, %v4102
        %v4133 = vpack.c.b16 %v4105, %v4104
        %v4134 = vpack.c.b16 %v4107, %v4106
        %v4135 = vpack.c.b16 %v4109, %v4108
        %v4136 = vpack.c.b16 %v4111, %v4110
        %v4137 = vpack.c.b16 %v4113, %v4112
        %v4138 = vpack.c.b16 %v4115, %v4114
        %v4139 = vpack.c.b16 %v4117, %v4116
        %v4140 = vpack.c.b16 %v4119, %v4118
        %v4141 = vpack.c.b16 %v4121, %v4120
        %v4142 = vpack.c.b16 %v4123, %v4122
        %v4143 = vpack.c.b16 %v4125, %v4124
        %v4144 = vpack.c.b16 %v4127, %v4126
        %v4145 = vpack.c.b16 %v4129, %v4128
        %v4150 = vunpack.c.l.b16 %v4094
        %v4151 = vunpack.c.l.b16 %v4095
        %v4152 = vunpack.c.l.b16 %v4096
        %v4153 = vunpack.c.l.b16 %v4097
        %v4154 = vpack.c.b16 %v4151, %v4150
        %v4155 = vpack.c.b16 %v4153, %v4152
        %v4159 = vsel %vm719, %v4130, 0
        %v4162 = vsel %vm719, %v4131, 0
        %v4165 = vsel %vm719, %v4132, 0
        %v4168 = vsel %vm719, %v4133, 0
        %v4171 = vsel %vm719, %v4134, 0
        %v4174 = vsel %vm719, %v4135, 0
        %v4177 = vsel %vm719, %v4136, 0
        %v4180 = vsel %vm719, %v4137, 0
        %v4183 = vsel %vm719, %v4138, 0
        %v4186 = vsel %vm719, %v4139, 0
        %v4189 = vsel %vm719, %v4140, 0
        %v4192 = vsel %vm719, %v4141, 0
        %v4195 = vsel %vm719, %v4142, 0
        %v4198 = vsel %vm719, %v4143, 0
        %v4201 = vsel %vm719, %v4144, 0
        %v4204 = vsel %vm719, %v4145, 0
        %4206 = vmatprep.subr.bf16.mxu0 0
        %4207 = vmatpush1.bf16.msra.mxu0 %v4154
        %4208 = vmatprep.subr.bf16.mxu0 0
        %4209 = vmatpush1.bf16.msra.mxu0 %v4155
        %4210 = vmatprep.subr.bf16.mxu0 0
        %4211 = vmatpush1.bf16.msra.mxu0 0
        %4212 = vmatprep.subr.bf16.mxu0 0
        %4213 = vmatpush1.bf16.msra.mxu0 0
        %4214 = vmatprep.subr.bf16.mxu0 0
        %4215 = vmatpush1.bf16.msra.mxu0 0
        %4216 = vmatprep.subr.bf16.mxu0 0
        %4217 = vmatpush1.bf16.msra.mxu0 0
        %4218 = vmatprep.subr.bf16.mxu0 0
        %4219 = vmatpush1.bf16.msra.mxu0 0
        %4220 = vmatprep.subr.bf16.mxu0 0
        %4221 = vmatpush1.bf16.msra.mxu0 0
        %4222 = vmatprep.subr.bf16.mxu0 0
        %4223 = vmatpush1.bf16.msra.mxu0 0
        %4224 = vmatprep.subr.bf16.mxu0 0
        %4225 = vmatpush1.bf16.msra.mxu0 0
        %4226 = vmatprep.subr.bf16.mxu0 0
        %4227 = vmatpush1.bf16.msra.mxu0 0
        %4228 = vmatprep.subr.bf16.mxu0 0
        %4229 = vmatpush1.bf16.msra.mxu0 0
        %4230 = vmatprep.subr.bf16.mxu0 0
        %4231 = vmatpush1.bf16.msra.mxu0 0
        %4232 = vmatprep.subr.bf16.mxu0 0
        %4233 = vmatpush1.bf16.msra.mxu0 0
        %4234 = vmatprep.subr.bf16.mxu0 0
        %4235 = vmatpush1.bf16.msra.mxu0 0
        %4236 = vmatprep.subr.bf16.mxu0 0
        %4237 = vmatpush1.bf16.msra.mxu0 0
        %4238 = vmatprep.mubr.bf16.mxu0 0
        %4239 = vmatmul.mubr.bf16.gmra.mrb[0].mxu0 %v4159
        %v4240 = vpop.f32.mrb[0].mxu0
        %v4241 = vadd.f32 0.0, %v4240
        %v4242 = vpop.f32.mrb[0].mxu0
        %v4243 = vpop.f32.mrb[0].mxu0
        %v4244 = vadd.f32 0.0, %v4243
        %v4245 = vpop.f32.mrb[0].mxu0
        %4246 = vmatprep.mubr.bf16.mxu0 0
        %4247 = vmatmul.mubr.bf16.gmra.mrb[0].mxu0 %v4162
        %v4248 = vpop.f32.mrb[0].mxu0
        %v4249 = vadd.f32 0.0, %v4248
        %v4250 = vpop.f32.mrb[0].mxu0
        %v4251 = vpop.f32.mrb[0].mxu0
        %v4252 = vadd.f32 0.0, %v4251
        %v4253 = vpop.f32.mrb[0].mxu0
        %4254 = vmatprep.mubr.bf16.mxu0 0
        %4255 = vmatmul.mubr.bf16.gmra.mrb[0].mxu0 %v4165
        %v4256 = vpop.f32.mrb[0].mxu0
        %v4257 = vadd.f32 0.0, %v4256
        %v4258 = vpop.f32.mrb[0].mxu0
        %v4259 = vpop.f32.mrb[0].mxu0
        %v4260 = vadd.f32 0.0, %v4259
        %v4261 = vpop.f32.mrb[0].mxu0
        %4262 = vmatprep.mubr.bf16.mxu0 0
        %4263 = vmatmul.mubr.bf16.gmra.mrb[0].mxu0 %v4168
        %v4264 = vpop.f32.mrb[0].mxu0
        %v4265 = vadd.f32 0.0, %v4264
        %v4266 = vpop.f32.mrb[0].mxu0
        %v4267 = vpop.f32.mrb[0].mxu0
        %v4268 = vadd.f32 0.0, %v4267
        %v4269 = vpop.f32.mrb[0].mxu0
        %4270 = vmatprep.mubr.bf16.mxu0 0
        %4271 = vmatmul.mubr.bf16.gmra.mrb[0].mxu0 %v4171
        %v4272 = vpop.f32.mrb[0].mxu0
        %v4273 = vadd.f32 0.0, %v4272
        %v4274 = vpop.f32.mrb[0].mxu0
        %v4275 = vpop.f32.mrb[0].mxu0
        %v4276 = vadd.f32 0.0, %v4275
        %v4277 = vpop.f32.mrb[0].mxu0
        %4278 = vmatprep.mubr.bf16.mxu0 0
        %4279 = vmatmul.mubr.bf16.gmra.mrb[0].mxu0 %v4174
        %v4280 = vpop.f32.mrb[0].mxu0
        %v4281 = vadd.f32 0.0, %v4280
        %v4282 = vpop.f32.mrb[0].mxu0
        %v4283 = vpop.f32.mrb[0].mxu0
        %v4284 = vadd.f32 0.0, %v4283
        %v4285 = vpop.f32.mrb[0].mxu0
        %4286 = vmatprep.mubr.bf16.mxu0 0
        %4287 = vmatmul.mubr.bf16.gmra.mrb[0].mxu0 %v4177
        %v4288 = vpop.f32.mrb[0].mxu0
        %v4289 = vadd.f32 0.0, %v4288
        %v4290 = vpop.f32.mrb[0].mxu0
        %v4291 = vpop.f32.mrb[0].mxu0
        %v4292 = vadd.f32 0.0, %v4291
        %v4293 = vpop.f32.mrb[0].mxu0
        %4294 = vmatprep.mubr.bf16.mxu0 0
        %4295 = vmatmul.mubr.bf16.gmra.mrb[0].mxu0 %v4180
        %v4296 = vpop.f32.mrb[0].mxu0
        %v4297 = vadd.f32 0.0, %v4296
        %v4298 = vpop.f32.mrb[0].mxu0
        %v4299 = vpop.f32.mrb[0].mxu0
        %v4300 = vadd.f32 0.0, %v4299
        %v4301 = vpop.f32.mrb[0].mxu0
        %4302 = vmatprep.mubr.bf16.mxu0 0
        %4303 = vmatmul.mubr.bf16.gmra.mrb[0].mxu0 %v4183
        %v4304 = vpop.f32.mrb[0].mxu0
        %v4305 = vadd.f32 0.0, %v4304
        %v4306 = vpop.f32.mrb[0].mxu0
        %v4307 = vpop.f32.mrb[0].mxu0
        %v4308 = vadd.f32 0.0, %v4307
        %v4309 = vpop.f32.mrb[0].mxu0
        %4310 = vmatprep.mubr.bf16.mxu0 0
        %4311 = vmatmul.mubr.bf16.gmra.mrb[0].mxu0 %v4186
        %v4312 = vpop.f32.mrb[0].mxu0
        %v4313 = vadd.f32 0.0, %v4312
        %v4314 = vpop.f32.mrb[0].mxu0
        %v4315 = vpop.f32.mrb[0].mxu0
        %v4316 = vadd.f32 0.0, %v4315
        %v4317 = vpop.f32.mrb[0].mxu0
        %4318 = vmatprep.mubr.bf16.mxu0 0
        %4319 = vmatmul.mubr.bf16.gmra.mrb[0].mxu0 %v4189
        %v4320 = vpop.f32.mrb[0].mxu0
        %v4321 = vadd.f32 0.0, %v4320
        %v4322 = vpop.f32.mrb[0].mxu0
        %v4323 = vpop.f32.mrb[0].mxu0
        %v4324 = vadd.f32 0.0, %v4323
        %v4325 = vpop.f32.mrb[0].mxu0
        %4326 = vmatprep.mubr.bf16.mxu0 0
        %4327 = vmatmul.mubr.bf16.gmra.mrb[0].mxu0 %v4192
        %v4328 = vpop.f32.mrb[0].mxu0
        %v4329 = vadd.f32 0.0, %v4328
        %v4330 = vpop.f32.mrb[0].mxu0
        %v4331 = vpop.f32.mrb[0].mxu0
        %v4332 = vadd.f32 0.0, %v4331
        %v4333 = vpop.f32.mrb[0].mxu0
        %4334 = vmatprep.mubr.bf16.mxu0 0
        %4335 = vmatmul.mubr.bf16.gmra.mrb[0].mxu0 %v4195
        %v4336 = vpop.f32.mrb[0].mxu0
        %v4337 = vadd.f32 0.0, %v4336
        %v4338 = vpop.f32.mrb[0].mxu0
        %v4339 = vpop.f32.mrb[0].mxu0
        %v4340 = vadd.f32 0.0, %v4339
        %v4341 = vpop.f32.mrb[0].mxu0
        %4342 = vmatprep.mubr.bf16.mxu0 0
        %4343 = vmatmul.mubr.bf16.gmra.mrb[0].mxu0 %v4198
        %v4344 = vpop.f32.mrb[0].mxu0
        %v4345 = vadd.f32 0.0, %v4344
        %v4346 = vpop.f32.mrb[0].mxu0
        %v4347 = vpop.f32.mrb[0].mxu0
        %v4348 = vadd.f32 0.0, %v4347
        %v4349 = vpop.f32.mrb[0].mxu0
        %4350 = vmatprep.mubr.bf16.mxu0 0
        %4351 = vmatmul.mubr.bf16.gmra.mrb[0].mxu0 %v4201
        %v4352 = vpop.f32.mrb[0].mxu0
        %v4353 = vadd.f32 0.0, %v4352
        %v4354 = vpop.f32.mrb[0].mxu0
        %v4355 = vpop.f32.mrb[0].mxu0
        %v4356 = vadd.f32 0.0, %v4355
        %v4357 = vpop.f32.mrb[0].mxu0
        %4358 = vmatprep.mubr.bf16.mxu0 0
        %4359 = vmatmul.mubr.bf16.gmra.mrb[0].mxu0 %v4204
        %v4360 = vpop.f32.mrb[0].mxu0
        %v4361 = vadd.f32 0.0, %v4360
        %v4362 = vpop.f32.mrb[0].mxu0
        %v4363 = vpop.f32.mrb[0].mxu0
        %v4364 = vadd.f32 0.0, %v4363
        %v4365 = vpop.f32.mrb[0].mxu0
        %4366 = vdwg.mxu0
        %v4367 = vadd.f32 %v3629, %v4241
        %v4368 = vadd.f32 %v3630, %v4244
        %v4369 = vadd.f32 %v3631, %v4249
        %v4370 = vadd.f32 %v3632, %v4252
        %v4371 = vadd.f32 %v3633, %v4257
        %v4372 = vadd.f32 %v3634, %v4260
        %v4373 = vadd.f32 %v3635, %v4265
        %v4374 = vadd.f32 %v3636, %v4268
        %v4375 = vadd.f32 %v3637, %v4273
        %v4376 = vadd.f32 %v3638, %v4276
        %v4377 = vadd.f32 %v3639, %v4281
        %v4378 = vadd.f32 %v3640, %v4284
        %v4379 = vadd.f32 %v3641, %v4289
        %v4380 = vadd.f32 %v3642, %v4292
        %v4381 = vadd.f32 %v3643, %v4297
        %v4382 = vadd.f32 %v3644, %v4300
        %v4383 = vadd.f32 %v3645, %v4305
        %v4384 = vadd.f32 %v3646, %v4308
        %v4385 = vadd.f32 %v3647, %v4313
        %v4386 = vadd.f32 %v3648, %v4316
        %v4387 = vadd.f32 %v3649, %v4321
        %v4388 = vadd.f32 %v3650, %v4324
        %v4389 = vadd.f32 %v3651, %v4329
        %v4390 = vadd.f32 %v3652, %v4332
        %v4391 = vadd.f32 %v3653, %v4337
        %v4392 = vadd.f32 %v3654, %v4340
        %v4393 = vadd.f32 %v3655, %v4345
        %v4394 = vadd.f32 %v3656, %v4348
        %v4395 = vadd.f32 %v3657, %v4353
        %v4396 = vadd.f32 %v3658, %v4356
        %v4397 = vadd.f32 %v3659, %v4361
        %v4398 = vadd.f32 %v3660, %v4364
        %v4399 = vld [vmem:[%s3290] sm:$0xe]
        %v4400 = vld [vmem:[%s3290 + $0xc] sm:$0xe]
        %v4401 = vld [vmem:[%s3290 + $0x18] sm:$0xe]
        %v4402 = vld [vmem:[%s3290 + $0x24] sm:$0xe]
        %v4403 = vld [vmem:[%s3290 + $0x30] sm:$0xe]
        %v4404 = vld [vmem:[%s3290 + $0x3c] sm:$0xe]
        %v4405 = vld [vmem:[%s3290 + $0x48] sm:$0xe]
        %v4406 = vld [vmem:[%s3290 + $0x54] sm:$0xe]
        %v4407 = vld [vmem:[%s3290 + $0x60] sm:$0xe]
        %v4408 = vld [vmem:[%s3290 + $0x6c] sm:$0xe]
        %v4409 = vld [vmem:[%s3290 + $0x78] sm:$0xe]
        %v4410 = vld [vmem:[%s3290 + $0x84] sm:$0xe]
        %v4411 = vld [vmem:[%s3290 + $0x90] sm:$0xe]
        %v4412 = vld [vmem:[%s3290 + $0x9c] sm:$0xe]
        %v4413 = vld [vmem:[%s3290 + $0xa8] sm:$0xe]
        %v4414 = vld [vmem:[%s3290 + $0xb4] sm:$0xe]
        %v4463 = vrot.slane %v4399, 5
        %v4464 = vrot.slane %v4463, 4
        %v4465 = vrot.slane %v3662, 5
        %v4466 = vsel %vm1280, %v4464, %v4465
        %v4467 = vrot.slane %v4465, 4
        %v4468 = vrot.slane %v3663, 5
        %v4469 = vsel %vm1280, %v4467, %v4468
        %v4470 = vrot.slane %v4400, 5
        %v4471 = vrot.slane %v4470, 4
        %v4472 = vrot.slane %v3665, 5
        %v4473 = vsel %vm1280, %v4471, %v4472
        %v4474 = vrot.slane %v4472, 4
        %v4475 = vrot.slane %v3666, 5
        %v4476 = vsel %vm1280, %v4474, %v4475
        %v4477 = vrot.slane %v4401, 5
        %v4478 = vrot.slane %v4477, 4
        %v4479 = vrot.slane %v3668, 5
        %v4480 = vsel %vm1280, %v4478, %v4479
        %v4481 = vrot.slane %v4479, 4
        %v4482 = vrot.slane %v3669, 5
        %v4483 = vsel %vm1280, %v4481, %v4482
        %v4484 = vrot.slane %v4402, 5
        %v4485 = vrot.slane %v4484, 4
        %v4486 = vrot.slane %v3671, 5
        %v4487 = vsel %vm1280, %v4485, %v4486
        %v4488 = vrot.slane %v4486, 4
        %v4489 = vrot.slane %v3672, 5
        %v4490 = vsel %vm1280, %v4488, %v4489
        %v4491 = vrot.slane %v4403, 5
        %v4492 = vrot.slane %v4491, 4
        %v4493 = vrot.slane %v3674, 5
        %v4494 = vsel %vm1280, %v4492, %v4493
        %v4495 = vrot.slane %v4493, 4
        %v4496 = vrot.slane %v3675, 5
        %v4497 = vsel %vm1280, %v4495, %v4496
        %v4498 = vrot.slane %v4404, 5
        %v4499 = vrot.slane %v4498, 4
        %v4500 = vrot.slane %v3677, 5
        %v4501 = vsel %vm1280, %v4499, %v4500
        %v4502 = vrot.slane %v4500, 4
        %v4503 = vrot.slane %v3678, 5
        %v4504 = vsel %vm1280, %v4502, %v4503
        %v4505 = vrot.slane %v4405, 5
        %v4506 = vrot.slane %v4505, 4
        %v4507 = vrot.slane %v3680, 5
        %v4508 = vsel %vm1280, %v4506, %v4507
        %v4509 = vrot.slane %v4507, 4
        %v4510 = vrot.slane %v3681, 5
        %v4511 = vsel %vm1280, %v4509, %v4510
        %v4512 = vrot.slane %v4406, 5
        %v4513 = vrot.slane %v4512, 4
        %v4514 = vrot.slane %v3683, 5
        %v4515 = vsel %vm1280, %v4513, %v4514
        %v4516 = vrot.slane %v4514, 4
        %v4517 = vrot.slane %v3684, 5
        %v4518 = vsel %vm1280, %v4516, %v4517
        %v4519 = vrot.slane %v4407, 5
        %v4520 = vrot.slane %v4519, 4
        %v4521 = vrot.slane %v3686, 5
        %v4522 = vsel %vm1280, %v4520, %v4521
        %v4523 = vrot.slane %v4521, 4
        %v4524 = vrot.slane %v3687, 5
        %v4525 = vsel %vm1280, %v4523, %v4524
        %v4526 = vrot.slane %v4408, 5
        %v4527 = vrot.slane %v4526, 4
        %v4528 = vrot.slane %v3689, 5
        %v4529 = vsel %vm1280, %v4527, %v4528
        %v4530 = vrot.slane %v4528, 4
        %v4531 = vrot.slane %v3690, 5
        %v4532 = vsel %vm1280, %v4530, %v4531
        %v4533 = vrot.slane %v4409, 5
        %v4534 = vrot.slane %v4533, 4
        %v4535 = vrot.slane %v3692, 5
        %v4536 = vsel %vm1280, %v4534, %v4535
        %v4537 = vrot.slane %v4535, 4
        %v4538 = vrot.slane %v3693, 5
        %v4539 = vsel %vm1280, %v4537, %v4538
        %v4540 = vrot.slane %v4410, 5
        %v4541 = vrot.slane %v4540, 4
        %v4542 = vrot.slane %v3695, 5
        %v4543 = vsel %vm1280, %v4541, %v4542
        %v4544 = vrot.slane %v4542, 4
        %v4545 = vrot.slane %v3696, 5
        %v4546 = vsel %vm1280, %v4544, %v4545
        %v4547 = vrot.slane %v4411, 5
        %v4548 = vrot.slane %v4547, 4
        %v4549 = vrot.slane %v3698, 5
        %v4550 = vsel %vm1280, %v4548, %v4549
        %v4551 = vrot.slane %v4549, 4
        %v4552 = vrot.slane %v3699, 5
        %v4553 = vsel %vm1280, %v4551, %v4552
        %v4554 = vrot.slane %v4412, 5
        %v4555 = vrot.slane %v4554, 4
        %v4556 = vrot.slane %v3701, 5
        %v4557 = vsel %vm1280, %v4555, %v4556
        %v4558 = vrot.slane %v4556, 4
        %v4559 = vrot.slane %v3702, 5
        %v4560 = vsel %vm1280, %v4558, %v4559
        %v4561 = vrot.slane %v4413, 5
        %v4562 = vrot.slane %v4561, 4
        %v4563 = vrot.slane %v3704, 5
        %v4564 = vsel %vm1280, %v4562, %v4563
        %v4565 = vrot.slane %v4563, 4
        %v4566 = vrot.slane %v3705, 5
        %v4567 = vsel %vm1280, %v4565, %v4566
        %v4568 = vrot.slane %v4414, 5
        %v4569 = vrot.slane %v4568, 4
        %v4570 = vrot.slane %v3707, 5
        %v4571 = vsel %vm1280, %v4569, %v4570
        %v4572 = vrot.slane %v4570, 4
        %v4573 = vrot.slane %v3708, 5
        %v4574 = vsel %vm1280, %v4572, %v4573
        %s4575 = scalar_lea.vmem %s210, 128
        %v4576 = vld [vmem:[%s4575] sm:$0xf]
        %v4577 = vld [vmem:[%s4575 + $0x4] sm:$0xf]
        %v4578 = vld [vmem:[%s4575 + $0x8] sm:$0xf]
        %v4579 = vld [vmem:[%s4575 + $0xc] sm:$0xf]
        %v4580 = vunpack.c.l.b16 %v4466
        %v4581 = vunpack.c.l.b16 %v4469
        %v4582 = vunpack.c.l.b16 %v4473
        %v4583 = vunpack.c.l.b16 %v4476
        %v4584 = vunpack.c.l.b16 %v4480
        %v4585 = vunpack.c.l.b16 %v4483
        %v4586 = vunpack.c.l.b16 %v4487
        %v4587 = vunpack.c.l.b16 %v4490
        %v4588 = vunpack.c.l.b16 %v4494
        %v4589 = vunpack.c.l.b16 %v4497
        %v4590 = vunpack.c.l.b16 %v4501
        %v4591 = vunpack.c.l.b16 %v4504
        %v4592 = vunpack.c.l.b16 %v4508
        %v4593 = vunpack.c.l.b16 %v4511
        %v4594 = vunpack.c.l.b16 %v4515
        %v4595 = vunpack.c.l.b16 %v4518
        %v4596 = vunpack.c.l.b16 %v4522
        %v4597 = vunpack.c.l.b16 %v4525
        %v4598 = vunpack.c.l.b16 %v4529
        %v4599 = vunpack.c.l.b16 %v4532
        %v4600 = vunpack.c.l.b16 %v4536
        %v4601 = vunpack.c.l.b16 %v4539
        %v4602 = vunpack.c.l.b16 %v4543
        %v4603 = vunpack.c.l.b16 %v4546
        %v4604 = vunpack.c.l.b16 %v4550
        %v4605 = vunpack.c.l.b16 %v4553
        %v4606 = vunpack.c.l.b16 %v4557
        %v4607 = vunpack.c.l.b16 %v4560
        %v4608 = vunpack.c.l.b16 %v4564
        %v4609 = vunpack.c.l.b16 %v4567
        %v4610 = vunpack.c.l.b16 %v4571
        %v4611 = vunpack.c.l.b16 %v4574
        %v4612 = vpack.c.b16 %v4581, %v4580
        %v4613 = vpack.c.b16 %v4583, %v4582
        %v4614 = vpack.c.b16 %v4585, %v4584
        %v4615 = vpack.c.b16 %v4587, %v4586
        %v4616 = vpack.c.b16 %v4589, %v4588
        %v4617 = vpack.c.b16 %v4591, %v4590
        %v4618 = vpack.c.b16 %v4593, %v4592
        %v4619 = vpack.c.b16 %v4595, %v4594
        %v4620 = vpack.c.b16 %v4597, %v4596
        %v4621 = vpack.c.b16 %v4599, %v4598
        %v4622 = vpack.c.b16 %v4601, %v4600
        %v4623 = vpack.c.b16 %v4603, %v4602
        %v4624 = vpack.c.b16 %v4605, %v4604
        %v4625 = vpack.c.b16 %v4607, %v4606
        %v4626 = vpack.c.b16 %v4609, %v4608
        %v4627 = vpack.c.b16 %v4611, %v4610
        %v4632 = vunpack.c.l.b16 %v4576
        %v4633 = vunpack.c.l.b16 %v4577
        %v4634 = vunpack.c.l.b16 %v4578
        %v4635 = vunpack.c.l.b16 %v4579
        %v4636 = vpack.c.b16 %v4633, %v4632
        %v4637 = vpack.c.b16 %v4635, %v4634
        %v4641 = vsel %vm719, %v4612, 0
        %v4644 = vsel %vm719, %v4613, 0
        %v4647 = vsel %vm719, %v4614, 0
        %v4650 = vsel %vm719, %v4615, 0
        %v4653 = vsel %vm719, %v4616, 0
        %v4656 = vsel %vm719, %v4617, 0
        %v4659 = vsel %vm719, %v4618, 0
        %v4662 = vsel %vm719, %v4619, 0
        %v4665 = vsel %vm719, %v4620, 0
        %v4668 = vsel %vm719, %v4621, 0
        %v4671 = vsel %vm719, %v4622, 0
        %v4674 = vsel %vm719, %v4623, 0
        %v4677 = vsel %vm719, %v4624, 0
        %v4680 = vsel %vm719, %v4625, 0
        %v4683 = vsel %vm719, %v4626, 0
        %v4686 = vsel %vm719, %v4627, 0
        %4688 = vmatprep.subr.bf16.mxu0 0
        %4689 = vmatpush1.bf16.msra.mxu0 %v4636
        %4690 = vmatprep.subr.bf16.mxu0 0
        %4691 = vmatpush1.bf16.msra.mxu0 %v4637
        %4692 = vmatprep.subr.bf16.mxu0 0
        %4693 = vmatpush1.bf16.msra.mxu0 0
        %4694 = vmatprep.subr.bf16.mxu0 0
        %4695 = vmatpush1.bf16.msra.mxu0 0
        %4696 = vmatprep.subr.bf16.mxu0 0
        %4697 = vmatpush1.bf16.msra.mxu0 0
        %4698 = vmatprep.subr.bf16.mxu0 0
        %4699 = vmatpush1.bf16.msra.mxu0 0
        %4700 = vmatprep.subr.bf16.mxu0 0
        %4701 = vmatpush1.bf16.msra.mxu0 0
        %4702 = vmatprep.subr.bf16.mxu0 0
        %4703 = vmatpush1.bf16.msra.mxu0 0
        %4704 = vmatprep.subr.bf16.mxu0 0
        %4705 = vmatpush1.bf16.msra.mxu0 0
        %4706 = vmatprep.subr.bf16.mxu0 0
        %4707 = vmatpush1.bf16.msra.mxu0 0
        %4708 = vmatprep.subr.bf16.mxu0 0
        %4709 = vmatpush1.bf16.msra.mxu0 0
        %4710 = vmatprep.subr.bf16.mxu0 0
        %4711 = vmatpush1.bf16.msra.mxu0 0
        %4712 = vmatprep.subr.bf16.mxu0 0
        %4713 = vmatpush1.bf16.msra.mxu0 0
        %4714 = vmatprep.subr.bf16.mxu0 0
        %4715 = vmatpush1.bf16.msra.mxu0 0
        %4716 = vmatprep.subr.bf16.mxu0 0
        %4717 = vmatpush1.bf16.msra.mxu0 0
        %4718 = vmatprep.subr.bf16.mxu0 0
        %4719 = vmatpush1.bf16.msra.mxu0 0
        %4720 = vmatprep.mubr.bf16.mxu0 0
        %4721 = vmatmul.mubr.bf16.gmra.mrb[0].mxu0 %v4641
        %v4722 = vpop.f32.mrb[0].mxu0
        %v4723 = vadd.f32 0.0, %v4722
        %v4724 = vpop.f32.mrb[0].mxu0
        %v4725 = vpop.f32.mrb[0].mxu0
        %v4726 = vadd.f32 0.0, %v4725
        %v4727 = vpop.f32.mrb[0].mxu0
        %4728 = vmatprep.mubr.bf16.mxu0 0
        %4729 = vmatmul.mubr.bf16.gmra.mrb[0].mxu0 %v4644
        %v4730 = vpop.f32.mrb[0].mxu0
        %v4731 = vadd.f32 0.0, %v4730
        %v4732 = vpop.f32.mrb[0].mxu0
        %v4733 = vpop.f32.mrb[0].mxu0
        %v4734 = vadd.f32 0.0, %v4733
        %v4735 = vpop.f32.mrb[0].mxu0
        %4736 = vmatprep.mubr.bf16.mxu0 0
        %4737 = vmatmul.mubr.bf16.gmra.mrb[0].mxu0 %v4647
        %v4738 = vpop.f32.mrb[0].mxu0
        %v4739 = vadd.f32 0.0, %v4738
        %v4740 = vpop.f32.mrb[0].mxu0
        %v4741 = vpop.f32.mrb[0].mxu0
        %v4742 = vadd.f32 0.0, %v4741
        %v4743 = vpop.f32.mrb[0].mxu0
        %4744 = vmatprep.mubr.bf16.mxu0 0
        %4745 = vmatmul.mubr.bf16.gmra.mrb[0].mxu0 %v4650
        %v4746 = vpop.f32.mrb[0].mxu0
        %v4747 = vadd.f32 0.0, %v4746
        %v4748 = vpop.f32.mrb[0].mxu0
        %v4749 = vpop.f32.mrb[0].mxu0
        %v4750 = vadd.f32 0.0, %v4749
        %v4751 = vpop.f32.mrb[0].mxu0
        %4752 = vmatprep.mubr.bf16.mxu0 0
        %4753 = vmatmul.mubr.bf16.gmra.mrb[0].mxu0 %v4653
        %v4754 = vpop.f32.mrb[0].mxu0
        %v4755 = vadd.f32 0.0, %v4754
        %v4756 = vpop.f32.mrb[0].mxu0
        %v4757 = vpop.f32.mrb[0].mxu0
        %v4758 = vadd.f32 0.0, %v4757
        %v4759 = vpop.f32.mrb[0].mxu0
        %4760 = vmatprep.mubr.bf16.mxu0 0
        %4761 = vmatmul.mubr.bf16.gmra.mrb[0].mxu0 %v4656
        %v4762 = vpop.f32.mrb[0].mxu0
        %v4763 = vadd.f32 0.0, %v4762
        %v4764 = vpop.f32.mrb[0].mxu0
        %v4765 = vpop.f32.mrb[0].mxu0
        %v4766 = vadd.f32 0.0, %v4765
        %v4767 = vpop.f32.mrb[0].mxu0
        %4768 = vmatprep.mubr.bf16.mxu0 0
        %4769 = vmatmul.mubr.bf16.gmra.mrb[0].mxu0 %v4659
        %v4770 = vpop.f32.mrb[0].mxu0
        %v4771 = vadd.f32 0.0, %v4770
        %v4772 = vpop.f32.mrb[0].mxu0
        %v4773 = vpop.f32.mrb[0].mxu0
        %v4774 = vadd.f32 0.0, %v4773
        %v4775 = vpop.f32.mrb[0].mxu0
        %4776 = vmatprep.mubr.bf16.mxu0 0
        %4777 = vmatmul.mubr.bf16.gmra.mrb[0].mxu0 %v4662
        %v4778 = vpop.f32.mrb[0].mxu0
        %v4779 = vadd.f32 0.0, %v4778
        %v4780 = vpop.f32.mrb[0].mxu0
        %v4781 = vpop.f32.mrb[0].mxu0
        %v4782 = vadd.f32 0.0, %v4781
        %v4783 = vpop.f32.mrb[0].mxu0
        %4784 = vmatprep.mubr.bf16.mxu0 0
        %4785 = vmatmul.mubr.bf16.gmra.mrb[0].mxu0 %v4665
        %v4786 = vpop.f32.mrb[0].mxu0
        %v4787 = vadd.f32 0.0, %v4786
        %v4788 = vpop.f32.mrb[0].mxu0
        %v4789 = vpop.f32.mrb[0].mxu0
        %v4790 = vadd.f32 0.0, %v4789
        %v4791 = vpop.f32.mrb[0].mxu0
        %4792 = vmatprep.mubr.bf16.mxu0 0
        %4793 = vmatmul.mubr.bf16.gmra.mrb[0].mxu0 %v4668
        %v4794 = vpop.f32.mrb[0].mxu0
        %v4795 = vadd.f32 0.0, %v4794
        %v4796 = vpop.f32.mrb[0].mxu0
        %v4797 = vpop.f32.mrb[0].mxu0
        %v4798 = vadd.f32 0.0, %v4797
        %v4799 = vpop.f32.mrb[0].mxu0
        %4800 = vmatprep.mubr.bf16.mxu0 0
        %4801 = vmatmul.mubr.bf16.gmra.mrb[0].mxu0 %v4671
        %v4802 = vpop.f32.mrb[0].mxu0
        %v4803 = vadd.f32 0.0, %v4802
        %v4804 = vpop.f32.mrb[0].mxu0
        %v4805 = vpop.f32.mrb[0].mxu0
        %v4806 = vadd.f32 0.0, %v4805
        %v4807 = vpop.f32.mrb[0].mxu0
        %4808 = vmatprep.mubr.bf16.mxu0 0
        %4809 = vmatmul.mubr.bf16.gmra.mrb[0].mxu0 %v4674
        %v4810 = vpop.f32.mrb[0].mxu0
        %v4811 = vadd.f32 0.0, %v4810
        %v4812 = vpop.f32.mrb[0].mxu0
        %v4813 = vpop.f32.mrb[0].mxu0
        %v4814 = vadd.f32 0.0, %v4813
        %v4815 = vpop.f32.mrb[0].mxu0
        %4816 = vmatprep.mubr.bf16.mxu0 0
        %4817 = vmatmul.mubr.bf16.gmra.mrb[0].mxu0 %v4677
        %v4818 = vpop.f32.mrb[0].mxu0
        %v4819 = vadd.f32 0.0, %v4818
        %v4820 = vpop.f32.mrb[0].mxu0
        %v4821 = vpop.f32.mrb[0].mxu0
        %v4822 = vadd.f32 0.0, %v4821
        %v4823 = vpop.f32.mrb[0].mxu0
        %4824 = vmatprep.mubr.bf16.mxu0 0
        %4825 = vmatmul.mubr.bf16.gmra.mrb[0].mxu0 %v4680
        %v4826 = vpop.f32.mrb[0].mxu0
        %v4827 = vadd.f32 0.0, %v4826
        %v4828 = vpop.f32.mrb[0].mxu0
        %v4829 = vpop.f32.mrb[0].mxu0
        %v4830 = vadd.f32 0.0, %v4829
        %v4831 = vpop.f32.mrb[0].mxu0
        %4832 = vmatprep.mubr.bf16.mxu0 0
        %4833 = vmatmul.mubr.bf16.gmra.mrb[0].mxu0 %v4683
        %v4834 = vpop.f32.mrb[0].mxu0
        %v4835 = vadd.f32 0.0, %v4834
        %v4836 = vpop.f32.mrb[0].mxu0
        %v4837 = vpop.f32.mrb[0].mxu0
        %v4838 = vadd.f32 0.0, %v4837
        %v4839 = vpop.f32.mrb[0].mxu0
        %4840 = vmatprep.mubr.bf16.mxu0 0
        %4841 = vmatmul.mubr.bf16.gmra.mrb[0].mxu0 %v4686
        %v4842 = vpop.f32.mrb[0].mxu0
        %v4843 = vadd.f32 0.0, %v4842
        %v4844 = vpop.f32.mrb[0].mxu0
        %v4845 = vpop.f32.mrb[0].mxu0
        %v4846 = vadd.f32 0.0, %v4845
        %v4847 = vpop.f32.mrb[0].mxu0
        %4848 = vdwg.mxu0
        %v4849 = vadd.f32 %v4367, %v4723
        %v4850 = vadd.f32 %v4368, %v4726
        %v4851 = vadd.f32 %v4369, %v4731
        %v4852 = vadd.f32 %v4370, %v4734
        %v4853 = vadd.f32 %v4371, %v4739
        %v4854 = vadd.f32 %v4372, %v4742
        %v4855 = vadd.f32 %v4373, %v4747
        %v4856 = vadd.f32 %v4374, %v4750
        %v4857 = vadd.f32 %v4375, %v4755
        %v4858 = vadd.f32 %v4376, %v4758
        %v4859 = vadd.f32 %v4377, %v4763
        %v4860 = vadd.f32 %v4378, %v4766
        %v4861 = vadd.f32 %v4379, %v4771
        %v4862 = vadd.f32 %v4380, %v4774
        %v4863 = vadd.f32 %v4381, %v4779
        %v4864 = vadd.f32 %v4382, %v4782
        %v4865 = vadd.f32 %v4383, %v4787
        %v4866 = vadd.f32 %v4384, %v4790
        %v4867 = vadd.f32 %v4385, %v4795
        %v4868 = vadd.f32 %v4386, %v4798
        %v4869 = vadd.f32 %v4387, %v4803
        %v4870 = vadd.f32 %v4388, %v4806
        %v4871 = vadd.f32 %v4389, %v4811
        %v4872 = vadd.f32 %v4390, %v4814
        %v4873 = vadd.f32 %v4391, %v4819
        %v4874 = vadd.f32 %v4392, %v4822
        %v4875 = vadd.f32 %v4393, %v4827
        %v4876 = vadd.f32 %v4394, %v4830
        %v4877 = vadd.f32 %v4395, %v4835
        %v4878 = vadd.f32 %v4396, %v4838
        %v4879 = vadd.f32 %v4397, %v4843
        %v4880 = vadd.f32 %v4398, %v4846
        %v4881 = vld [vmem:[%s213] sm:$0x1]
        %v4883 = vlaneseq
        %v4884 = vshrl.u32 %v4883, 7
        %v4885 = vsub.s32 0, %v4884
        %v4886 = vrot.slane %v4881, %v4885
        %v4888 = vadd.f32 %v4849, %v4886
        %v4889 = vadd.f32 %v4850, %v4886
        %v4890 = vadd.f32 %v4851, %v4886
        %v4891 = vadd.f32 %v4852, %v4886
        %v4892 = vadd.f32 %v4853, %v4886
        %v4893 = vadd.f32 %v4854, %v4886
        %v4894 = vadd.f32 %v4855, %v4886
        %v4895 = vadd.f32 %v4856, %v4886
        %v4896 = vadd.f32 %v4857, %v4886
        %v4897 = vadd.f32 %v4858, %v4886
        %v4898 = vadd.f32 %v4859, %v4886
        %v4899 = vadd.f32 %v4860, %v4886
        %v4900 = vadd.f32 %v4861, %v4886
        %v4901 = vadd.f32 %v4862, %v4886
        %v4902 = vadd.f32 %v4863, %v4886
        %v4903 = vadd.f32 %v4864, %v4886
        %v4904 = vadd.f32 %v4865, %v4886
        %v4905 = vadd.f32 %v4866, %v4886
        %v4906 = vadd.f32 %v4867, %v4886
        %v4907 = vadd.f32 %v4868, %v4886
        %v4908 = vadd.f32 %v4869, %v4886
        %v4909 = vadd.f32 %v4870, %v4886
        %v4910 = vadd.f32 %v4871, %v4886
        %v4911 = vadd.f32 %v4872, %v4886
        %v4912 = vadd.f32 %v4873, %v4886
        %v4913 = vadd.f32 %v4874, %v4886
        %v4914 = vadd.f32 %v4875, %v4886
        %v4915 = vadd.f32 %v4876, %v4886
        %v4916 = vadd.f32 %v4877, %v4886
        %v4917 = vadd.f32 %v4878, %v4886
        %v4918 = vadd.f32 %v4879, %v4886
        %v4919 = vadd.f32 %v4880, %v4886
        %v4920 = vmax.f32 %v4888, 0.0
        %v4921 = vmax.f32 %v4889, 0.0
        %v4922 = vmax.f32 %v4890, 0.0
        %v4923 = vmax.f32 %v4891, 0.0
        %v4924 = vmax.f32 %v4892, 0.0
        %v4925 = vmax.f32 %v4893, 0.0
        %v4926 = vmax.f32 %v4894, 0.0
        %v4927 = vmax.f32 %v4895, 0.0
        %v4928 = vmax.f32 %v4896, 0.0
        %v4929 = vmax.f32 %v4897, 0.0
        %v4930 = vmax.f32 %v4898, 0.0
        %v4931 = vmax.f32 %v4899, 0.0
        %v4932 = vmax.f32 %v4900, 0.0
        %v4933 = vmax.f32 %v4901, 0.0
        %v4934 = vmax.f32 %v4902, 0.0
        %v4935 = vmax.f32 %v4903, 0.0
        %v4936 = vmax.f32 %v4904, 0.0
        %v4937 = vmax.f32 %v4905, 0.0
        %v4938 = vmax.f32 %v4906, 0.0
        %v4939 = vmax.f32 %v4907, 0.0
        %v4940 = vmax.f32 %v4908, 0.0
        %v4941 = vmax.f32 %v4909, 0.0
        %v4942 = vmax.f32 %v4910, 0.0
        %v4943 = vmax.f32 %v4911, 0.0
        %v4944 = vmax.f32 %v4912, 0.0
        %v4945 = vmax.f32 %v4913, 0.0
        %v4946 = vmax.f32 %v4914, 0.0
        %v4947 = vmax.f32 %v4915, 0.0
        %v4948 = vmax.f32 %v4916, 0.0
        %v4949 = vmax.f32 %v4917, 0.0
        %v4950 = vmax.f32 %v4918, 0.0
        %v4951 = vmax.f32 %v4919, 0.0
        %vm4952 = vcmask 523264
        %4953 = vst.msk [vmem:[%s201] sm:$0xff] %vm4952, %v4920
        %4954 = vst.msk [vmem:[%s201 + $0x8] sm:$0xff] %vm4952, %v4921
        %4955 = vst.msk [vmem:[%s201 + $0x10] sm:$0xff] %vm4952, %v4922
        %4956 = vst.msk [vmem:[%s201 + $0x18] sm:$0xff] %vm4952, %v4923
        %4957 = vst.msk [vmem:[%s201 + $0x20] sm:$0xff] %vm4952, %v4924
        %4958 = vst.msk [vmem:[%s201 + $0x28] sm:$0xff] %vm4952, %v4925
        %4959 = vst.msk [vmem:[%s201 + $0x30] sm:$0xff] %vm4952, %v4926
        %4960 = vst.msk [vmem:[%s201 + $0x38] sm:$0xff] %vm4952, %v4927
        %4961 = vst.msk [vmem:[%s201 + $0x40] sm:$0xff] %vm4952, %v4928
        %4962 = vst.msk [vmem:[%s201 + $0x48] sm:$0xff] %vm4952, %v4929
        %4963 = vst.msk [vmem:[%s201 + $0x50] sm:$0xff] %vm4952, %v4930
        %4964 = vst.msk [vmem:[%s201 + $0x58] sm:$0xff] %vm4952, %v4931
        %4965 = vst.msk [vmem:[%s201 + $0x60] sm:$0xff] %vm4952, %v4932
        %4966 = vst.msk [vmem:[%s201 + $0x68] sm:$0xff] %vm4952, %v4933
        %4967 = vst.msk [vmem:[%s201 + $0x70] sm:$0xff] %vm4952, %v4934
        %4968 = vst.msk [vmem:[%s201 + $0x78] sm:$0xff] %vm4952, %v4935
        %4969 = vst.msk [vmem:[%s201 + $0x80] sm:$0xff] %vm4952, %v4936
        %4970 = vst.msk [vmem:[%s201 + $0x88] sm:$0xff] %vm4952, %v4937
        %4971 = vst.msk [vmem:[%s201 + $0x90] sm:$0xff] %vm4952, %v4938
        %4972 = vst.msk [vmem:[%s201 + $0x98] sm:$0xff] %vm4952, %v4939
        %4973 = vst.msk [vmem:[%s201 + $0xa0] sm:$0xff] %vm4952, %v4940
        %4974 = vst.msk [vmem:[%s201 + $0xa8] sm:$0xff] %vm4952, %v4941
        %4975 = vst.msk [vmem:[%s201 + $0xb0] sm:$0xff] %vm4952, %v4942
        %4976 = vst.msk [vmem:[%s201 + $0xb8] sm:$0xff] %vm4952, %v4943
        %4977 = vst.msk [vmem:[%s201 + $0xc0] sm:$0xff] %vm4952, %v4944
        %4978 = vst.msk [vmem:[%s201 + $0xc8] sm:$0xff] %vm4952, %v4945
        %4979 = vst.msk [vmem:[%s201 + $0xd0] sm:$0xff] %vm4952, %v4946
        %4980 = vst.msk [vmem:[%s201 + $0xd8] sm:$0xff] %vm4952, %v4947
        %4981 = vst.msk [vmem:[%s201 + $0xe0] sm:$0xff] %vm4952, %v4948
        %4982 = vst.msk [vmem:[%s201 + $0xe8] sm:$0xff] %vm4952, %v4949
        %4983 = vst.msk [vmem:[%s201 + $0xf0] sm:$0xff] %vm4952, %v4950
        %4984 = vst.msk [vmem:[%s201 + $0xf8] sm:$0xff] %vm4952, %v4951
        %s4985 = sand.u32 %s117, 1
        %s4986 = scalar_lea.sflag [#allocation3], %s4985
        %s4987 = sand.u32 %s117, 1
        %s4988 = smul.addr %s4987, 256
        %s4989 = scalar_lea.vmem [#allocation2], %s4988
        // Predicated region
        $region33: #{fwd.3} parent=31 // pred_check
          %p4990 = pneg %p127
        $region34: #{fwd.3} parent=31 // pred_check_branch
          %4992 = sbr.rel (%p4990) target = $region36
        $region35: #{fwd.3} parent=31 // pred_region
          %s4994 = ssub.s32 4096, 4096
          %4995 = vsyncadd %s4986, %s4994
          %s4996 = smul.addr %s21, 32
          %s4997 = sadd.s32 %s22, %s4996
          %s4998 = smul.addr %s4997, 128
          %s4999 = scalar_lea.hbm %s3, %s4998
          %s5000 = sshll.u32 %s4989, 4
          %s5001 = int_to_ptr.vmem [resolvable:$true] %s5000
          %5006 = dma.vmem_to_hbm [thread:$0]  %s5001, 4096, %s4999, %s4986, 128, 128, 8
        $region36: #{fwd.3} parent=31 // pred_fallthru
          _
      $region32: #{fwd.3} parent=5 // pred_fallthru
        _
      %p5007 = scmp.le.s32.totalorder 2, %s12
      // Predicated region
      $region37: #{fwd.3} parent=5 // pred_check
        %p5008 = pneg %p5007
      $region38: #{fwd.3} parent=5 // pred_check_branch
        %5010 = sbr.rel (%p5008) target = $region40
      $region39: #{fwd.3} parent=5 // pred_region
        %s5011 = ssub.s32 %s12, 2
        // Predicated region
        $region41: #{fwd.3} parent=39 // pred_check
          %p5012 = pneg %p133
        $region42: #{fwd.3} parent=39 // pred_check_branch
          %5014 = sbr.rel (%p5012) target = $region44
        $region43: #{fwd.3} parent=39 // pred_region
          %s5015 = sand.u32 %s118, 1
          %s5016 = scalar_lea.sflag [#allocation3], %s5015
          %s5017 = sand.u32 %s118, 1
          %s5018 = smul.addr %s5017, 256
          %s5019 = scalar_lea.vmem [#allocation2], %s5018
          %5020 = dma.done %s5016, 4096
        $region44: #{fwd.3} parent=39 // pred_fallthru
          _
      $region40: #{fwd.3} parent=5 // pred_fallthru
        _
    $region6: #{fwd.3} parent=1 // loop_footer
      %s16 = sadd.s32 1, %s12
    $region7: #{fwd.3} parent=1 // loop_footer_branch
      %11 = sbr.rel target = $region3
    $region8: #{fwd.3} parent=1 // loop_exit
      _
    %5021 = vsyncpa [#allocation3], 1
    %s5022 = scalar_lea.sflag [#allocation3], 1
    %5023 = vsyncpa %s5022, 1

</llo_original>
